<compile_context>
chip_gen: v7x
topology: tpu7x:2x2x1
jax: 0.10.0
libtpu: 0.0.40
codegen_flags: <defaults>
</compile_context>

<pallas_src>
import jax
import jax.numpy as jnp
from jax.experimental import pallas as pl
from jax.experimental.pallas import tpu as pltpu

S_DIM = 5           # self.s_dim
F_DIM = 160         # self.f_dim (video + audio + title dims must sum to this)
N_HIDDEN = 160      # self.n_hidden
N_OUTPUT = 64       # self.n_output
ITEM_NUM = 5986     # self.ITEM_NUM
LEAKY_SLOPE = 0.01  # nn.LeakyReLU default negative_slope


# ----------------------------- Pallas kernel ------------------------------ #
def _net_kernel(feat_ref, w1_ref, b1_ref, w2_ref, b2_ref,
                mw1_ref, mb1_ref, mw2_ref, mb2_ref, emb_ref, out_ref):
    feat = feat_ref[...]                                              # (TB, F) bf16

    # mlp_signal: Linear(F,F) -> ReLU -> Linear(F,S); bf16 MXU, f32 accum.
    h = jnp.dot(feat, w1_ref[...], preferred_element_type=jnp.float32) + b1_ref[...]
    h = jnp.maximum(h, 0.0)
    signal = (jnp.dot(h.astype(jnp.bfloat16), w2_ref[...],
                      preferred_element_type=jnp.float32)
              + b2_ref[...])                                          # (TB, S) f32

    def meta_layer(sig, x_bf16, wcat_ref, b_ref, out_dim):
        # One wide matmul: wcat[in, s*out + o] == W[s, in, o]
        y = jnp.dot(x_bf16, wcat_ref[...],
                    preferred_element_type=jnp.float32)               # (TB, S*out)
        acc = jnp.dot(sig, b_ref[...],
                      preferred_element_type=jnp.float32)             # sig @ bias
        for s in range(S_DIM):  # tiny static loop: VPU scale + add per segment
            acc = acc + sig[:, s:s + 1] * y[:, s * out_dim:(s + 1) * out_dim]
        return acc

    x1 = meta_layer(signal, feat, mw1_ref, mb1_ref, N_HIDDEN)         # (TB, N_HIDDEN)
    x1 = jnp.where(x1 > 0, x1, LEAKY_SLOPE * x1)                      # LeakyReLU (f32)
    x2 = meta_layer(signal, x1.astype(jnp.bfloat16),
                    mw2_ref, mb2_ref, N_OUTPUT)                       # (TB, N_OUTPUT)

    # torch.cat((x, item_E[item_id]), dim=1): single lane-dense 128-wide store.
    out_ref[...] = jnp.concatenate([x2, emb_ref[...]], axis=1)


# ------------------------------- wrapper ----------------------------------- #
def net_forward(params, video, audio, title, item_id, *, batch_tile=256):
    feature = jnp.concatenate([video, audio, title], axis=1)          # (B, F_DIM)
    B = feature.shape[0]
    assert feature.shape[1] == F_DIM
    feature = feature.astype(jnp.bfloat16)

    # Embedding gather is glue (data-dependent row lookup) done in plain JAX.
    emb = params["item_E"][item_id, :]                                # (B, N_OUTPUT)

    # Pad batch to a multiple of batch_tile (padded rows are sliced off below).
    B_pad = batch_tile * pl.cdiv(B, batch_tile)
    if B_pad != B:
        pad = B_pad - B
        feature = jnp.pad(feature, ((0, pad), (0, 0)))
        emb = jnp.pad(emb, ((0, pad), (0, 0)))

    # Host-side weight prep: bf16 cast + MetaLayer weight concatenation.
    w1 = params["w1"].astype(jnp.bfloat16)                            # (F, F)
    w2 = params["w2"].astype(jnp.bfloat16)                            # (F, S)
    mw1_cat = jnp.transpose(params["mw1"], (1, 0, 2)).reshape(
        F_DIM, S_DIM * N_HIDDEN).astype(jnp.bfloat16)                 # (F, S*H)
    mw2_cat = jnp.transpose(params["mw2"], (1, 0, 2)).reshape(
        N_HIDDEN, S_DIM * N_OUTPUT).astype(jnp.bfloat16)              # (H, S*O)
    b1, b2 = params["b1"], params["b2"]                               # f32 biases
    mb1, mb2 = params["mb1"], params["mb2"]

    def rep_spec(shape):  # grid-invariant (weights/biases): constant block index
        n = len(shape)
        return pl.BlockSpec(tuple(shape), lambda i, _n=n: (0,) * _n)

    in_specs = [
        pl.BlockSpec((batch_tile, F_DIM), lambda i: (i, 0)),
        rep_spec(w1.shape), rep_spec(b1.shape),
        rep_spec(w2.shape), rep_spec(b2.shape),
        rep_spec(mw1_cat.shape), rep_spec(mb1.shape),
        rep_spec(mw2_cat.shape), rep_spec(mb2.shape),
        pl.BlockSpec((batch_tile, N_OUTPUT), lambda i: (i, 0)),
    ]
    out_specs = pl.BlockSpec((batch_tile, 2 * N_OUTPUT), lambda i: (i, 0))

    flops = 2 * B_pad * (F_DIM * F_DIM + F_DIM * S_DIM
                         + F_DIM * S_DIM * N_HIDDEN
                         + N_HIDDEN * S_DIM * N_OUTPUT)
    bytes_accessed = (B_pad * F_DIM * 2                    # feature (bf16)
                      + B_pad * N_OUTPUT * 4               # emb (f32)
                      + B_pad * 2 * N_OUTPUT * 4           # output (f32)
                      + (F_DIM * F_DIM + F_DIM * S_DIM
                         + F_DIM * S_DIM * N_HIDDEN
                         + N_HIDDEN * S_DIM * N_OUTPUT) * 2        # bf16 weights
                      + (F_DIM + S_DIM + S_DIM * N_HIDDEN
                         + S_DIM * N_OUTPUT) * 4)                  # f32 biases

    out = pl.pallas_call(
        _net_kernel,
        out_shape=jax.ShapeDtypeStruct((B_pad, 2 * N_OUTPUT), jnp.float32),
        grid=(B_pad // batch_tile,),
        in_specs=in_specs,
        out_specs=out_specs,
        compiler_params=pltpu.CompilerParams(dimension_semantics=("parallel",)),
        cost_estimate=pl.CostEstimate(flops=flops, transcendentals=0,
                                      bytes_accessed=bytes_accessed),
    )(feature, w1, b1, w2, b2, mw1_cat, mb1, mw2_cat, mb2, emb)

    return out[:B]


# --------------------------- parameter init -------------------------------- #
def init_params(key):
    def xavier(k, shape, fan_in, fan_out):
        bound = (6.0 / (fan_in + fan_out)) ** 0.5
        return jax.random.uniform(k, shape, jnp.float32, -bound, bound)

    ks = jax.random.split(key, 7)
    return {
        "w1": xavier(ks[0], (F_DIM, F_DIM), F_DIM, F_DIM),
        "b1": jnp.zeros((1, F_DIM), jnp.float32),
        "w2": xavier(ks[1], (F_DIM, S_DIM), F_DIM, S_DIM),
        "b2": jnp.zeros((1, S_DIM), jnp.float32),
        "mw1": xavier(ks[2], (S_DIM, F_DIM, N_HIDDEN), F_DIM, N_HIDDEN),
        "mb1": xavier(ks[3], (S_DIM, N_HIDDEN), S_DIM, N_HIDDEN),
        "mw2": xavier(ks[4], (S_DIM, N_HIDDEN, N_OUTPUT), N_HIDDEN, N_OUTPUT),
        "mb2": xavier(ks[5], (S_DIM, N_OUTPUT), S_DIM, N_OUTPUT),
        "item_E": xavier(ks[6], (ITEM_NUM, N_OUTPUT), ITEM_NUM, N_OUTPUT),
    }


# --------------------------- pure-JAX reference ----------------------------- #
# Mirrors the kernel's bf16 matmul operands (f32 accumulation) so the
# tolerance can stay tight; semantics match the f32 PyTorch forward.
def net_reference(params, video, audio, title, item_id):
    bf16, f32 = jnp.bfloat16, jnp.float32
    feature = jnp.concatenate([video, audio, title], axis=1).astype(bf16)

    def bdot(a, b):
        return jnp.dot(a.astype(bf16), b.astype(bf16), preferred_element_type=f32)

    h = jnp.maximum(bdot(feature, params["w1"]) + params["b1"], 0.0)
    signal = bdot(h, params["w2"]) + params["b2"]

    def meta(sig, x, W, b):
        y = jnp.einsum("bi,sio->bso", x.astype(bf16), W.astype(bf16),
                       preferred_element_type=f32)
        return jnp.sum(sig[:, :, None] * y, axis=1) + sig @ b

    x1 = meta(signal, feature, params["mw1"], params["mb1"])
    x1 = jnp.where(x1 > 0, x1, LEAKY_SLOPE * x1)
    x2 = meta(signal, x1, params["mw2"], params["mb2"])
    return jnp.concatenate([x2, params["item_E"][item_id, :]], axis=1)


# ---------------------------------- main ------------------------------------ #
if __name__ == "__main__":
    key = jax.random.PRNGKey(0)
    kp, kv, ka, kt, ki = jax.random.split(key, 5)

    params = init_params(kp)

    # B=300 exercises both the batch-padding path and a >1-step grid
    # (pads to 512 -> 2 grid steps of 256 rows).
    B = 300
    # video + audio + title feature dims must sum to F_DIM = 160
    video = jax.random.normal(kv, (B, 64), jnp.float32)
    audio = jax.random.normal(ka, (B, 64), jnp.float32)
    title = jax.random.normal(kt, (B, 32), jnp.float32)
    item_id = jax.random.randint(ki, (B,), 0, ITEM_NUM, jnp.int32)

    out = net_forward(params, video, audio, title, item_id)
    out = jax.block_until_ready(out)

    ref = net_reference(params, video, audio, title, item_id)
    assert out.shape == (B, 2 * N_OUTPUT), out.shape
    max_err = float(jnp.max(jnp.abs(out - ref)))
    assert jnp.allclose(out, ref, atol=2e-2, rtol=2e-2), f"mismatch vs ref, max_err={max_err}"

    print("KERNEL_OK")
</pallas_src>

<mosaic_0001>
module attributes {stable_mosaic.version = 11 : i64} {
  func.func @_net_kernel(%arg0: i32, %arg1: memref<256x160xbf16, #tpu.memory_space<vmem>>, %arg2: memref<160x160xbf16, #tpu.memory_space<vmem>>, %arg3: memref<1x160xf32, #tpu.memory_space<vmem>>, %arg4: memref<160x5xbf16, #tpu.memory_space<vmem>>, %arg5: memref<1x5xf32, #tpu.memory_space<vmem>>, %arg6: memref<160x800xbf16, #tpu.memory_space<vmem>>, %arg7: memref<5x160xf32, #tpu.memory_space<vmem>>, %arg8: memref<160x320xbf16, #tpu.memory_space<vmem>>, %arg9: memref<5x64xf32, #tpu.memory_space<vmem>>, %arg10: memref<256x64xf32, #tpu.memory_space<vmem>>, %arg11: memref<256x128xf32, #tpu.memory_space<vmem>>) attributes {dimension_semantics = [#tpu.dimension_semantics<parallel>], iteration_bounds = array<i64: 2>, scalar_prefetch = 0 : i64, scratch_operands = 0 : i64, tpu.core_type = #tpu.core_type<tc>, window_params = [{transform_indices = @transform_0, window_bounds = array<i64: 256, 160>}, {pipeline_mode = #tpu.pipeline_mode<synchronous>, transform_indices = @transform_1, window_bounds = array<i64: 160, 160>}, {pipeline_mode = #tpu.pipeline_mode<synchronous>, transform_indices = @transform_2, window_bounds = array<i64: 1, 160>}, {pipeline_mode = #tpu.pipeline_mode<synchronous>, transform_indices = @transform_3, window_bounds = array<i64: 160, 5>}, {pipeline_mode = #tpu.pipeline_mode<synchronous>, transform_indices = @transform_4, window_bounds = array<i64: 1, 5>}, {pipeline_mode = #tpu.pipeline_mode<synchronous>, transform_indices = @transform_5, window_bounds = array<i64: 160, 800>}, {pipeline_mode = #tpu.pipeline_mode<synchronous>, transform_indices = @transform_6, window_bounds = array<i64: 5, 160>}, {pipeline_mode = #tpu.pipeline_mode<synchronous>, transform_indices = @transform_7, window_bounds = array<i64: 160, 320>}, {pipeline_mode = #tpu.pipeline_mode<synchronous>, transform_indices = @transform_8, window_bounds = array<i64: 5, 64>}, {transform_indices = @transform_9, window_bounds = array<i64: 256, 64>}, {transform_indices = @transform_10, window_bounds = array<i64: 256, 128>}]} {
    %c0 = arith.constant 0 : index
    %c0_0 = arith.constant 0 : index
    %0 = vector.load %arg1[%c0, %c0_0] : memref<256x160xbf16, #tpu.memory_space<vmem>>, vector<256x160xbf16>
    %c0_1 = arith.constant 0 : index
    %c0_2 = arith.constant 0 : index
    %1 = vector.load %arg2[%c0_1, %c0_2] : memref<160x160xbf16, #tpu.memory_space<vmem>>, vector<160x160xbf16>
    %cst = arith.constant dense<0.000000e+00> : vector<256x160xf32>
    %2 = tpu.matmul %0, %1, %cst {dimension_numbers = #tpu.dot_dimension_numbers<[1], [0], [0], [1], [0, 0, 1, 1], [], []>} : vector<256x160xbf16>, vector<160x160xbf16>, vector<256x160xf32> -> vector<256x160xf32>
    %c0_3 = arith.constant 0 : index
    %c0_4 = arith.constant 0 : index
    %3 = vector.load %arg3[%c0_3, %c0_4] : memref<1x160xf32, #tpu.memory_space<vmem>>, vector<1x160xf32>
    %4 = vector.broadcast %3 : vector<1x160xf32> to vector<256x160xf32>
    %5 = arith.addf %2, %4 : vector<256x160xf32>
    %cst_5 = arith.constant 0.000000e+00 : f32
    %6 = vector.broadcast %cst_5 : f32 to vector<256x160xf32>
    %7 = arith.maximumf %5, %6 : vector<256x160xf32>
    %8 = arith.truncf %7 : vector<256x160xf32> to vector<256x160xbf16>
    %c0_6 = arith.constant 0 : index
    %c0_7 = arith.constant 0 : index
    %9 = vector.load %arg4[%c0_6, %c0_7] : memref<160x5xbf16, #tpu.memory_space<vmem>>, vector<160x5xbf16>
    %cst_8 = arith.constant dense<0.000000e+00> : vector<256x5xf32>
    %10 = tpu.matmul %8, %9, %cst_8 {dimension_numbers = #tpu.dot_dimension_numbers<[1], [0], [0], [1], [0, 0, 1, 1], [], []>} : vector<256x160xbf16>, vector<160x5xbf16>, vector<256x5xf32> -> vector<256x5xf32>
    %c0_9 = arith.constant 0 : index
    %c0_10 = arith.constant 0 : index
    %11 = vector.load %arg5[%c0_9, %c0_10] : memref<1x5xf32, #tpu.memory_space<vmem>>, vector<1x5xf32>
    %12 = vector.broadcast %11 : vector<1x5xf32> to vector<256x5xf32>
    %13 = arith.addf %10, %12 : vector<256x5xf32>
    %c0_11 = arith.constant 0 : index
    %c0_12 = arith.constant 0 : index
    %14 = vector.load %arg6[%c0_11, %c0_12] : memref<160x800xbf16, #tpu.memory_space<vmem>>, vector<160x800xbf16>
    %cst_13 = arith.constant dense<0.000000e+00> : vector<256x800xf32>
    %15 = tpu.matmul %0, %14, %cst_13 {dimension_numbers = #tpu.dot_dimension_numbers<[1], [0], [0], [1], [0, 0, 1, 1], [], []>} : vector<256x160xbf16>, vector<160x800xbf16>, vector<256x800xf32> -> vector<256x800xf32>
    %c0_14 = arith.constant 0 : index
    %c0_15 = arith.constant 0 : index
    %16 = vector.load %arg7[%c0_14, %c0_15] : memref<5x160xf32, #tpu.memory_space<vmem>>, vector<5x160xf32>
    %cst_16 = arith.constant dense<0.000000e+00> : vector<256x160xf32>
    %17 = tpu.matmul %13, %16, %cst_16 {dimension_numbers = #tpu.dot_dimension_numbers<[1], [0], [0], [1], [0, 0, 1, 1], [], []>} : vector<256x5xf32>, vector<5x160xf32>, vector<256x160xf32> -> vector<256x160xf32>
    %18 = vector.extract_strided_slice %13 {offsets = [0, 0], sizes = [256, 1], strides = [1, 1]} : vector<256x5xf32> to vector<256x1xf32>
    %19 = vector.extract_strided_slice %15 {offsets = [0, 0], sizes = [256, 160], strides = [1, 1]} : vector<256x800xf32> to vector<256x160xf32>
    %20 = vector.broadcast %18 : vector<256x1xf32> to vector<256x160xf32>
    %21 = arith.mulf %20, %19 : vector<256x160xf32>
    %22 = arith.addf %17, %21 : vector<256x160xf32>
    %23 = vector.extract_strided_slice %13 {offsets = [0, 1], sizes = [256, 1], strides = [1, 1]} : vector<256x5xf32> to vector<256x1xf32>
    %24 = vector.extract_strided_slice %15 {offsets = [0, 160], sizes = [256, 160], strides = [1, 1]} : vector<256x800xf32> to vector<256x160xf32>
    %25 = vector.broadcast %23 : vector<256x1xf32> to vector<256x160xf32>
    %26 = arith.mulf %25, %24 : vector<256x160xf32>
    %27 = arith.addf %22, %26 : vector<256x160xf32>
    %28 = vector.extract_strided_slice %13 {offsets = [0, 2], sizes = [256, 1], strides = [1, 1]} : vector<256x5xf32> to vector<256x1xf32>
    %29 = vector.extract_strided_slice %15 {offsets = [0, 320], sizes = [256, 160], strides = [1, 1]} : vector<256x800xf32> to vector<256x160xf32>
    %30 = vector.broadcast %28 : vector<256x1xf32> to vector<256x160xf32>
    %31 = arith.mulf %30, %29 : vector<256x160xf32>
    %32 = arith.addf %27, %31 : vector<256x160xf32>
    %33 = vector.extract_strided_slice %13 {offsets = [0, 3], sizes = [256, 1], strides = [1, 1]} : vector<256x5xf32> to vector<256x1xf32>
    %34 = vector.extract_strided_slice %15 {offsets = [0, 480], sizes = [256, 160], strides = [1, 1]} : vector<256x800xf32> to vector<256x160xf32>
    %35 = vector.broadcast %33 : vector<256x1xf32> to vector<256x160xf32>
    %36 = arith.mulf %35, %34 : vector<256x160xf32>
    %37 = arith.addf %32, %36 : vector<256x160xf32>
    %38 = vector.extract_strided_slice %13 {offsets = [0, 4], sizes = [256, 1], strides = [1, 1]} : vector<256x5xf32> to vector<256x1xf32>
    %39 = vector.extract_strided_slice %15 {offsets = [0, 640], sizes = [256, 160], strides = [1, 1]} : vector<256x800xf32> to vector<256x160xf32>
    %40 = vector.broadcast %38 : vector<256x1xf32> to vector<256x160xf32>
    %41 = arith.mulf %40, %39 : vector<256x160xf32>
    %42 = arith.addf %37, %41 : vector<256x160xf32>
    %cst_17 = arith.constant 0.000000e+00 : f32
    %43 = vector.broadcast %cst_17 : f32 to vector<256x160xf32>
    %44 = arith.cmpf ogt, %42, %43 : vector<256x160xf32>
    %cst_18 = arith.constant 0.00999999977 : f32
    %45 = vector.broadcast %cst_18 : f32 to vector<256x160xf32>
    %46 = arith.mulf %45, %42 : vector<256x160xf32>
    %47 = arith.select %44, %42, %46 : vector<256x160xi1>, vector<256x160xf32>
    %48 = arith.truncf %47 : vector<256x160xf32> to vector<256x160xbf16>
    %c0_19 = arith.constant 0 : index
    %c0_20 = arith.constant 0 : index
    %49 = vector.load %arg8[%c0_19, %c0_20] : memref<160x320xbf16, #tpu.memory_space<vmem>>, vector<160x320xbf16>
    %cst_21 = arith.constant dense<0.000000e+00> : vector<256x320xf32>
    %50 = tpu.matmul %48, %49, %cst_21 {dimension_numbers = #tpu.dot_dimension_numbers<[1], [0], [0], [1], [0, 0, 1, 1], [], []>} : vector<256x160xbf16>, vector<160x320xbf16>, vector<256x320xf32> -> vector<256x320xf32>
    %c0_22 = arith.constant 0 : index
    %c0_23 = arith.constant 0 : index
    %51 = vector.load %arg9[%c0_22, %c0_23] : memref<5x64xf32, #tpu.memory_space<vmem>>, vector<5x64xf32>
    %cst_24 = arith.constant dense<0.000000e+00> : vector<256x64xf32>
    %52 = tpu.matmul %13, %51, %cst_24 {dimension_numbers = #tpu.dot_dimension_numbers<[1], [0], [0], [1], [0, 0, 1, 1], [], []>} : vector<256x5xf32>, vector<5x64xf32>, vector<256x64xf32> -> vector<256x64xf32>
    %53 = vector.extract_strided_slice %13 {offsets = [0, 0], sizes = [256, 1], strides = [1, 1]} : vector<256x5xf32> to vector<256x1xf32>
    %54 = vector.extract_strided_slice %50 {offsets = [0, 0], sizes = [256, 64], strides = [1, 1]} : vector<256x320xf32> to vector<256x64xf32>
    %55 = vector.broadcast %53 : vector<256x1xf32> to vector<256x64xf32>
    %56 = arith.mulf %55, %54 : vector<256x64xf32>
    %57 = arith.addf %52, %56 : vector<256x64xf32>
    %58 = vector.extract_strided_slice %13 {offsets = [0, 1], sizes = [256, 1], strides = [1, 1]} : vector<256x5xf32> to vector<256x1xf32>
    %59 = vector.extract_strided_slice %50 {offsets = [0, 64], sizes = [256, 64], strides = [1, 1]} : vector<256x320xf32> to vector<256x64xf32>
    %60 = vector.broadcast %58 : vector<256x1xf32> to vector<256x64xf32>
    %61 = arith.mulf %60, %59 : vector<256x64xf32>
    %62 = arith.addf %57, %61 : vector<256x64xf32>
    %63 = vector.extract_strided_slice %13 {offsets = [0, 2], sizes = [256, 1], strides = [1, 1]} : vector<256x5xf32> to vector<256x1xf32>
    %64 = vector.extract_strided_slice %50 {offsets = [0, 128], sizes = [256, 64], strides = [1, 1]} : vector<256x320xf32> to vector<256x64xf32>
    %65 = vector.broadcast %63 : vector<256x1xf32> to vector<256x64xf32>
    %66 = arith.mulf %65, %64 : vector<256x64xf32>
    %67 = arith.addf %62, %66 : vector<256x64xf32>
    %68 = vector.extract_strided_slice %13 {offsets = [0, 3], sizes = [256, 1], strides = [1, 1]} : vector<256x5xf32> to vector<256x1xf32>
    %69 = vector.extract_strided_slice %50 {offsets = [0, 192], sizes = [256, 64], strides = [1, 1]} : vector<256x320xf32> to vector<256x64xf32>
    %70 = vector.broadcast %68 : vector<256x1xf32> to vector<256x64xf32>
    %71 = arith.mulf %70, %69 : vector<256x64xf32>
    %72 = arith.addf %67, %71 : vector<256x64xf32>
    %73 = vector.extract_strided_slice %13 {offsets = [0, 4], sizes = [256, 1], strides = [1, 1]} : vector<256x5xf32> to vector<256x1xf32>
    %74 = vector.extract_strided_slice %50 {offsets = [0, 256], sizes = [256, 64], strides = [1, 1]} : vector<256x320xf32> to vector<256x64xf32>
    %75 = vector.broadcast %73 : vector<256x1xf32> to vector<256x64xf32>
    %76 = arith.mulf %75, %74 : vector<256x64xf32>
    %77 = arith.addf %72, %76 : vector<256x64xf32>
    %c0_25 = arith.constant 0 : index
    %c0_26 = arith.constant 0 : index
    %78 = vector.load %arg10[%c0_25, %c0_26] : memref<256x64xf32, #tpu.memory_space<vmem>>, vector<256x64xf32>
    %79 = tpu.concatenate %77, %78 in 1 : vector<256x64xf32>, vector<256x64xf32> -> vector<256x128xf32>
    %c0_27 = arith.constant 0 : index
    %c0_28 = arith.constant 0 : index
    %80 = vector.load %arg11[%c0_27, %c0_28] : memref<256x128xf32, #tpu.memory_space<vmem>>, vector<256x128xf32>
    tpu.vector_store %arg11[%c0_27, %c0_28], %79 {strides = array<i32>} : memref<256x128xf32, #tpu.memory_space<vmem>>, vector<256x128xf32>,
    return
  }
  func.func @transform_0(%arg0: i32) -> (i32, i32) {
    %c0_i32 = arith.constant 0 : i32
    %c0_i32_0 = arith.constant 0 : i32
    return %arg0, %c0_i32 : i32, i32
  }
  func.func @transform_1(%arg0: i32) -> (i32, i32) {
    %c0_i32 = arith.constant 0 : i32
    %c0_i32_0 = arith.constant 0 : i32
    %c0_i32_1 = arith.constant 0 : i32
    return %c0_i32, %c0_i32_0 : i32, i32
  }
  func.func @transform_2(%arg0: i32) -> (i32, i32) {
    %c0_i32 = arith.constant 0 : i32
    %c0_i32_0 = arith.constant 0 : i32
    %c0_i32_1 = arith.constant 0 : i32
    return %c0_i32, %c0_i32_0 : i32, i32
  }
  func.func @transform_3(%arg0: i32) -> (i32, i32) {
    %c0_i32 = arith.constant 0 : i32
    %c0_i32_0 = arith.constant 0 : i32
    %c0_i32_1 = arith.constant 0 : i32
    return %c0_i32, %c0_i32_0 : i32, i32
  }
  func.func @transform_4(%arg0: i32) -> (i32, i32) {
    %c0_i32 = arith.constant 0 : i32
    %c0_i32_0 = arith.constant 0 : i32
    %c0_i32_1 = arith.constant 0 : i32
    return %c0_i32, %c0_i32_0 : i32, i32
  }
  func.func @transform_5(%arg0: i32) -> (i32, i32) {
    %c0_i32 = arith.constant 0 : i32
    %c0_i32_0 = arith.constant 0 : i32
    %c0_i32_1 = arith.constant 0 : i32
    return %c0_i32, %c0_i32_0 : i32, i32
  }
  func.func @transform_6(%arg0: i32) -> (i32, i32) {
    %c0_i32 = arith.constant 0 : i32
    %c0_i32_0 = arith.constant 0 : i32
    %c0_i32_1 = arith.constant 0 : i32
    return %c0_i32, %c0_i32_0 : i32, i32
  }
  func.func @transform_7(%arg0: i32) -> (i32, i32) {
    %c0_i32 = arith.constant 0 : i32
    %c0_i32_0 = arith.constant 0 : i32
    %c0_i32_1 = arith.constant 0 : i32
    return %c0_i32, %c0_i32_0 : i32, i32
  }
  func.func @transform_8(%arg0: i32) -> (i32, i32) {
    %c0_i32 = arith.constant 0 : i32
    %c0_i32_0 = arith.constant 0 : i32
    %c0_i32_1 = arith.constant 0 : i32
    return %c0_i32, %c0_i32_0 : i32, i32
  }
  func.func @transform_9(%arg0: i32) -> (i32, i32) {
    %c0_i32 = arith.constant 0 : i32
    %c0_i32_0 = arith.constant 0 : i32
    return %arg0, %c0_i32 : i32, i32
  }
  func.func @transform_10(%arg0: i32) -> (i32, i32) {
    %c0_i32 = arith.constant 0 : i32
    %c0_i32_0 = arith.constant 0 : i32
    return %arg0, %c0_i32 : i32, i32
  }
}

</mosaic_0001>

<llo_original>
// kernel: tpu_custom_call.1
$region0: #{tpu_custom_call.1}
  #allocation0 [shape = 'u32[]', space=smem, size = 0x4, offset = 0x4, fixed_abs, tag = 'smem constant byte address 0x4 - core index']
  #allocation1 [shape = 'u32[144,128]{1,0:T(1,128)}', space=vmem, size = 0x12000, scoped, tag = 'internal scratch']
  %s0 = inlined_call_operand.vmem [shape: bf16[512,160], index: 0, kind: input, shape index: {}]
  %s1 = inlined_call_operand.vmem [shape: bf16[160,160], index: 1, kind: input, shape index: {}]
  %s2 = inlined_call_operand.vmem [shape: f32[1,160], index: 2, kind: input, shape index: {}]
  %s3 = inlined_call_operand.vmem [shape: bf16[160,5], index: 3, kind: input, shape index: {}]
  %s4 = inlined_call_operand.vmem [shape: f32[1,5], index: 4, kind: input, shape index: {}]
  %s5 = inlined_call_operand.vmem [shape: bf16[160,800], index: 5, kind: input, shape index: {}]
  %s6 = inlined_call_operand.vmem [shape: f32[5,160], index: 6, kind: input, shape index: {}]
  %s7 = inlined_call_operand.vmem [shape: bf16[160,320], index: 7, kind: input, shape index: {}]
  %s8 = inlined_call_operand.vmem [shape: f32[5,64], index: 8, kind: input, shape index: {}]
  %s9 = inlined_call_operand.vmem [shape: f32[512,64], index: 9, kind: input, shape index: {}]
  %s10 = inlined_call_operand.hbm [shape: f32[512,128], index: 10, kind: output, shape index: {}]
  %s11 = sld [smem:[#allocation0]]
  $region73: #{tpu_custom_call.1} parent=0
    _
  %s13 = ssub.s32 1, %s11
  %s14 = scalar_select 0, %s13, %s11
  $region1: #{tpu_custom_call.1} parent=0
    #allocation2 [shape = 'u8[262144]{0}', space=vmem, size = 0x40000, scoped, tag = 'output window, operand 0']
    #allocation3 [shape = 's32[2]{0}', space=sflag, size = 0x8, scoped, tag = 'scoped memory for tpu_custom_call.1']
    %15 = vsyncpa [#allocation3], 0
    %s16 = scalar_lea.sflag [#allocation3], 1
    %17 = vsyncpa %s16, 0
    loop: start=0, step=1, limit=4
    $region2: #{tpu_custom_call.1} parent=1 // loop_pre_header
      _
    $region3: #{tpu_custom_call.1} parent=1 // loop_header
      %s19 = sphi 0, %s23
      %p20 = scmp.ge.s32.totalorder %s19, 4
      %s29 = sphi 0, %s31
      %s32 = sphi 0, %s29
      %s33 = sphi 0, %s32
      %s49 = sphi 0, %s33
      %s53 = sphi 0, %s53
      %s55 = sphi 0, %s53
      %s56 = sphi 0, %s55
      %s70 = sphi 0, %s56
      %s74 = sphi 0, %s74
      %s76 = sphi 0, %s74
      %s77 = sphi 0, %s76
      %s91 = sphi 0, %s77
      %s95 = sphi 0, %s95
      %s97 = sphi 0, %s95
      %s98 = sphi 0, %s97
      %s112 = sphi 0, %s98
      %s116 = sphi 0, %s116
      %s118 = sphi 0, %s116
      %s119 = sphi 0, %s118
      %s133 = sphi 0, %s119
      %s137 = sphi 0, %s137
      %s139 = sphi 0, %s137
      %s140 = sphi 0, %s139
      %s154 = sphi 0, %s140
      %s158 = sphi 0, %s158
      %s160 = sphi 0, %s158
      %s161 = sphi 0, %s160
      %s175 = sphi 0, %s161
      %s179 = sphi 0, %s179
      %s181 = sphi 0, %s179
      %s182 = sphi 0, %s181
      %s196 = sphi 0, %s182
      %s200 = sphi 0, %s200
      %s202 = sphi 0, %s200
      %s203 = sphi 0, %s202
      %s217 = sphi 0, %s203
      %s223 = sphi 0, %s225
      %s226 = sphi 0, %s223
      %s227 = sphi 0, %s226
      %s243 = sphi 0, %s227
      %s249 = sphi 0, %s251
      %s252 = sphi 0, %s249
      %s253 = sphi 0, %s252
      %s269 = sphi 0, %s253
    $region4: #{tpu_custom_call.1} parent=1 // loop_header_branch
      %22 = sbr.rel (%p20) target = $region8
    $region5: #{tpu_custom_call.1} parent=1 // loop_body
      %s24 = ssub.s32 %s19, 1
      %s25 = ssub.s32 %s19, 2
      %s26 = sadd.s32 %s19, 1
      %s27 = ssub.s32 %s19, %s26
      %p28 = scmp.eq.s32.totalorder %s27, 0
      %s30 = sadd.s32 %s29, 1
      %s31 = scalar_select %p28, %s29, %s30
      %p34 = pneg %p28
      %p35 = scmp.eq.s32.totalorder %s19, 1
      %p36 = por %p34, %p35
      %p37 = scmp.ne.s32.totalorder %s29, %s32
      %p38 = scmp.eq.s32.totalorder %s19, 0
      %p39 = por %p37, %p38
      %p40 = scmp.ne.s32.totalorder %s29, %s32
      %p41 = scmp.eq.s32.totalorder %s24, 1
      %p42 = por %p40, %p41
      %p43 = scmp.ne.s32.totalorder %s32, %s33
      %p44 = scmp.eq.s32.totalorder %s24, 0
      %p45 = por %p43, %p44
      %p46 = scmp.ne.s32.totalorder %s32, %s33
      %p47 = scmp.eq.s32.totalorder %s25, 1
      %p48 = por %p46, %p47
      %p50 = scmp.ne.s32.totalorder %s33, %s49
      %p51 = scmp.eq.s32.totalorder %s25, 0
      %p52 = por %p50, %p51
      %s54 = sadd.s32 %s53, 1
      %p57 = scmp.eq.s32.totalorder %s19, 1
      %p58 = scmp.ne.s32.totalorder %s53, %s55
      %p59 = scmp.eq.s32.totalorder %s19, 0
      %p60 = por %p58, %p59
      %p61 = scmp.ne.s32.totalorder %s53, %s55
      %p62 = scmp.eq.s32.totalorder %s24, 1
      %p63 = por %p61, %p62
      %p64 = scmp.ne.s32.totalorder %s55, %s56
      %p65 = scmp.eq.s32.totalorder %s24, 0
      %p66 = por %p64, %p65
      %p67 = scmp.ne.s32.totalorder %s55, %s56
      %p68 = scmp.eq.s32.totalorder %s25, 1
      %p69 = por %p67, %p68
      %p71 = scmp.ne.s32.totalorder %s56, %s70
      %p72 = scmp.eq.s32.totalorder %s25, 0
      %p73 = por %p71, %p72
      %s75 = sadd.s32 %s74, 1
      %p78 = scmp.eq.s32.totalorder %s19, 1
      %p79 = scmp.ne.s32.totalorder %s74, %s76
      %p80 = scmp.eq.s32.totalorder %s19, 0
      %p81 = por %p79, %p80
      %p82 = scmp.ne.s32.totalorder %s74, %s76
      %p83 = scmp.eq.s32.totalorder %s24, 1
      %p84 = por %p82, %p83
      %p85 = scmp.ne.s32.totalorder %s76, %s77
      %p86 = scmp.eq.s32.totalorder %s24, 0
      %p87 = por %p85, %p86
      %p88 = scmp.ne.s32.totalorder %s76, %s77
      %p89 = scmp.eq.s32.totalorder %s25, 1
      %p90 = por %p88, %p89
      %p92 = scmp.ne.s32.totalorder %s77, %s91
      %p93 = scmp.eq.s32.totalorder %s25, 0
      %p94 = por %p92, %p93
      %s96 = sadd.s32 %s95, 1
      %p99 = scmp.eq.s32.totalorder %s19, 1
      %p100 = scmp.ne.s32.totalorder %s95, %s97
      %p101 = scmp.eq.s32.totalorder %s19, 0
      %p102 = por %p100, %p101
      %p103 = scmp.ne.s32.totalorder %s95, %s97
      %p104 = scmp.eq.s32.totalorder %s24, 1
      %p105 = por %p103, %p104
      %p106 = scmp.ne.s32.totalorder %s97, %s98
      %p107 = scmp.eq.s32.totalorder %s24, 0
      %p108 = por %p106, %p107
      %p109 = scmp.ne.s32.totalorder %s97, %s98
      %p110 = scmp.eq.s32.totalorder %s25, 1
      %p111 = por %p109, %p110
      %p113 = scmp.ne.s32.totalorder %s98, %s112
      %p114 = scmp.eq.s32.totalorder %s25, 0
      %p115 = por %p113, %p114
      %s117 = sadd.s32 %s116, 1
      %p120 = scmp.eq.s32.totalorder %s19, 1
      %p121 = scmp.ne.s32.totalorder %s116, %s118
      %p122 = scmp.eq.s32.totalorder %s19, 0
      %p123 = por %p121, %p122
      %p124 = scmp.ne.s32.totalorder %s116, %s118
      %p125 = scmp.eq.s32.totalorder %s24, 1
      %p126 = por %p124, %p125
      %p127 = scmp.ne.s32.totalorder %s118, %s119
      %p128 = scmp.eq.s32.totalorder %s24, 0
      %p129 = por %p127, %p128
      %p130 = scmp.ne.s32.totalorder %s118, %s119
      %p131 = scmp.eq.s32.totalorder %s25, 1
      %p132 = por %p130, %p131
      %p134 = scmp.ne.s32.totalorder %s119, %s133
      %p135 = scmp.eq.s32.totalorder %s25, 0
      %p136 = por %p134, %p135
      %s138 = sadd.s32 %s137, 1
      %p141 = scmp.eq.s32.totalorder %s19, 1
      %p142 = scmp.ne.s32.totalorder %s137, %s139
      %p143 = scmp.eq.s32.totalorder %s19, 0
      %p144 = por %p142, %p143
      %p145 = scmp.ne.s32.totalorder %s137, %s139
      %p146 = scmp.eq.s32.totalorder %s24, 1
      %p147 = por %p145, %p146
      %p148 = scmp.ne.s32.totalorder %s139, %s140
      %p149 = scmp.eq.s32.totalorder %s24, 0
      %p150 = por %p148, %p149
      %p151 = scmp.ne.s32.totalorder %s139, %s140
      %p152 = scmp.eq.s32.totalorder %s25, 1
      %p153 = por %p151, %p152
      %p155 = scmp.ne.s32.totalorder %s140, %s154
      %p156 = scmp.eq.s32.totalorder %s25, 0
      %p157 = por %p155, %p156
      %s159 = sadd.s32 %s158, 1
      %p162 = scmp.eq.s32.totalorder %s19, 1
      %p163 = scmp.ne.s32.totalorder %s158, %s160
      %p164 = scmp.eq.s32.totalorder %s19, 0
      %p165 = por %p163, %p164
      %p166 = scmp.ne.s32.totalorder %s158, %s160
      %p167 = scmp.eq.s32.totalorder %s24, 1
      %p168 = por %p166, %p167
      %p169 = scmp.ne.s32.totalorder %s160, %s161
      %p170 = scmp.eq.s32.totalorder %s24, 0
      %p171 = por %p169, %p170
      %p172 = scmp.ne.s32.totalorder %s160, %s161
      %p173 = scmp.eq.s32.totalorder %s25, 1
      %p174 = por %p172, %p173
      %p176 = scmp.ne.s32.totalorder %s161, %s175
      %p177 = scmp.eq.s32.totalorder %s25, 0
      %p178 = por %p176, %p177
      %s180 = sadd.s32 %s179, 1
      %p183 = scmp.eq.s32.totalorder %s19, 1
      %p184 = scmp.ne.s32.totalorder %s179, %s181
      %p185 = scmp.eq.s32.totalorder %s19, 0
      %p186 = por %p184, %p185
      %p187 = scmp.ne.s32.totalorder %s179, %s181
      %p188 = scmp.eq.s32.totalorder %s24, 1
      %p189 = por %p187, %p188
      %p190 = scmp.ne.s32.totalorder %s181, %s182
      %p191 = scmp.eq.s32.totalorder %s24, 0
      %p192 = por %p190, %p191
      %p193 = scmp.ne.s32.totalorder %s181, %s182
      %p194 = scmp.eq.s32.totalorder %s25, 1
      %p195 = por %p193, %p194
      %p197 = scmp.ne.s32.totalorder %s182, %s196
      %p198 = scmp.eq.s32.totalorder %s25, 0
      %p199 = por %p197, %p198
      %s201 = sadd.s32 %s200, 1
      %p204 = scmp.eq.s32.totalorder %s19, 1
      %p205 = scmp.ne.s32.totalorder %s200, %s202
      %p206 = scmp.eq.s32.totalorder %s19, 0
      %p207 = por %p205, %p206
      %p208 = scmp.ne.s32.totalorder %s200, %s202
      %p209 = scmp.eq.s32.totalorder %s24, 1
      %p210 = por %p208, %p209
      %p211 = scmp.ne.s32.totalorder %s202, %s203
      %p212 = scmp.eq.s32.totalorder %s24, 0
      %p213 = por %p211, %p212
      %p214 = scmp.ne.s32.totalorder %s202, %s203
      %p215 = scmp.eq.s32.totalorder %s25, 1
      %p216 = por %p214, %p215
      %p218 = scmp.ne.s32.totalorder %s203, %s217
      %p219 = scmp.eq.s32.totalorder %s25, 0
      %p220 = por %p218, %p219
      %s221 = ssub.s32 %s19, %s26
      %p222 = scmp.eq.s32.totalorder %s221, 0
      %s224 = sadd.s32 %s223, 1
      %s225 = scalar_select %p222, %s223, %s224
      %p228 = pneg %p222
      %p229 = scmp.eq.s32.totalorder %s19, 1
      %p230 = por %p228, %p229
      %p231 = scmp.ne.s32.totalorder %s223, %s226
      %p232 = scmp.eq.s32.totalorder %s19, 0
      %p233 = por %p231, %p232
      %p234 = scmp.ne.s32.totalorder %s223, %s226
      %p235 = scmp.eq.s32.totalorder %s24, 1
      %p236 = por %p234, %p235
      %p237 = scmp.ne.s32.totalorder %s226, %s227
      %p238 = scmp.eq.s32.totalorder %s24, 0
      %p239 = por %p237, %p238
      %p240 = scmp.ne.s32.totalorder %s226, %s227
      %p241 = scmp.eq.s32.totalorder %s25, 1
      %p242 = por %p240, %p241
      %p244 = scmp.ne.s32.totalorder %s227, %s243
      %p245 = scmp.eq.s32.totalorder %s25, 0
      %p246 = por %p244, %p245
      %s247 = ssub.s32 %s19, %s26
      %p248 = scmp.eq.s32.totalorder %s247, 0
      %s250 = sadd.s32 %s249, 1
      %s251 = scalar_select %p248, %s249, %s250
      %p254 = pneg %p248
      %p255 = scmp.eq.s32.totalorder %s19, 1
      %p256 = por %p254, %p255
      %p257 = scmp.ne.s32.totalorder %s249, %s252
      %p258 = scmp.eq.s32.totalorder %s19, 0
      %p259 = por %p257, %p258
      %p260 = scmp.ne.s32.totalorder %s249, %s252
      %p261 = scmp.eq.s32.totalorder %s24, 1
      %p262 = por %p260, %p261
      %p263 = scmp.ne.s32.totalorder %s252, %s253
      %p264 = scmp.eq.s32.totalorder %s24, 0
      %p265 = por %p263, %p264
      %p266 = scmp.ne.s32.totalorder %s252, %s253
      %p267 = scmp.eq.s32.totalorder %s25, 1
      %p268 = por %p266, %p267
      %p270 = scmp.ne.s32.totalorder %s253, %s269
      %p271 = scmp.eq.s32.totalorder %s25, 0
      %p272 = por %p270, %p271
      %p273 = scmp.le.s32.totalorder 1, %s19
      %p274 = scmp.lt.s32.totalorder %s19, 3
      %p275 = pnand %p273, %p274
      %p276 = pneg %p275
      // Predicated region
      $region9: #{tpu_custom_call.1} parent=5 // pred_check
        _
      $region10: #{tpu_custom_call.1} parent=5 // pred_check_branch
        %278 = sbr.rel (%p275) target = $region12
      $region11: #{tpu_custom_call.1} parent=5 // pred_region
        %s279 = ssub.s32 %s19, 1
        // Predicated region
        $region13: #{tpu_custom_call.1} parent=11 // pred_check
          %p280 = pneg %p66
        $region14: #{tpu_custom_call.1} parent=11 // pred_check_branch
          %282 = sbr.rel (%p280) target = $region16
        $region15: #{tpu_custom_call.1} parent=11 // pred_region
          _
        $region16: #{tpu_custom_call.1} parent=11 // pred_fallthru
          _
        // Predicated region
        $region17: #{tpu_custom_call.1} parent=11 // pred_check
          %p283 = pneg %p87
        $region18: #{tpu_custom_call.1} parent=11 // pred_check_branch
          %285 = sbr.rel (%p283) target = $region20
        $region19: #{tpu_custom_call.1} parent=11 // pred_region
          _
        $region20: #{tpu_custom_call.1} parent=11 // pred_fallthru
          _
        // Predicated region
        $region21: #{tpu_custom_call.1} parent=11 // pred_check
          %p286 = pneg %p108
        $region22: #{tpu_custom_call.1} parent=11 // pred_check_branch
          %288 = sbr.rel (%p286) target = $region24
        $region23: #{tpu_custom_call.1} parent=11 // pred_region
          _
        $region24: #{tpu_custom_call.1} parent=11 // pred_fallthru
          _
        // Predicated region
        $region25: #{tpu_custom_call.1} parent=11 // pred_check
          %p289 = pneg %p129
        $region26: #{tpu_custom_call.1} parent=11 // pred_check_branch
          %291 = sbr.rel (%p289) target = $region28
        $region27: #{tpu_custom_call.1} parent=11 // pred_region
          _
        $region28: #{tpu_custom_call.1} parent=11 // pred_fallthru
          _
        // Predicated region
        $region29: #{tpu_custom_call.1} parent=11 // pred_check
          %p292 = pneg %p150
        $region30: #{tpu_custom_call.1} parent=11 // pred_check_branch
          %294 = sbr.rel (%p292) target = $region32
        $region31: #{tpu_custom_call.1} parent=11 // pred_region
          _
        $region32: #{tpu_custom_call.1} parent=11 // pred_fallthru
          _
        // Predicated region
        $region33: #{tpu_custom_call.1} parent=11 // pred_check
          %p295 = pneg %p171
        $region34: #{tpu_custom_call.1} parent=11 // pred_check_branch
          %297 = sbr.rel (%p295) target = $region36
        $region35: #{tpu_custom_call.1} parent=11 // pred_region
          _
        $region36: #{tpu_custom_call.1} parent=11 // pred_fallthru
          _
        // Predicated region
        $region37: #{tpu_custom_call.1} parent=11 // pred_check
          %p298 = pneg %p192
        $region38: #{tpu_custom_call.1} parent=11 // pred_check_branch
          %300 = sbr.rel (%p298) target = $region40
        $region39: #{tpu_custom_call.1} parent=11 // pred_region
          _
        $region40: #{tpu_custom_call.1} parent=11 // pred_fallthru
          _
        // Predicated region
        $region41: #{tpu_custom_call.1} parent=11 // pred_check
          %p301 = pneg %p213
        $region42: #{tpu_custom_call.1} parent=11 // pred_check_branch
          %303 = sbr.rel (%p301) target = $region44
        $region43: #{tpu_custom_call.1} parent=11 // pred_region
          _
        $region44: #{tpu_custom_call.1} parent=11 // pred_fallthru
          _
      $region12: #{tpu_custom_call.1} parent=5 // pred_fallthru
        _
      %p304 = scmp.lt.s32.totalorder %s19, 2
      // Predicated region
      $region45: #{tpu_custom_call.1} parent=5 // pred_check
        %p305 = pneg %p304
      $region46: #{tpu_custom_call.1} parent=5 // pred_check_branch
        %307 = sbr.rel (%p305) target = $region48
      $region47: #{tpu_custom_call.1} parent=5 // pred_region
        // Predicated region
        $region49: #{tpu_custom_call.1} parent=47 // pred_check
          %p308 = pneg %p39
        $region50: #{tpu_custom_call.1} parent=47 // pred_check_branch
          %310 = sbr.rel (%p308) target = $region52
        $region51: #{tpu_custom_call.1} parent=47 // pred_region
          %s311 = smul.u32 32, %s19
          %p312 = scmp.lt.s32.totalorder %s311, 63
          %s313 = scalar_select %p312, %s311, 63
          %s314 = smul.addr %s313, 2
          %s315 = smul.addr %s314, 4
          %s316 = scalar_lea.vmem %s0, %s315
          %s317 = smul.u32 32, %s19
        $region52: #{tpu_custom_call.1} parent=47 // pred_fallthru
          _
        // Predicated region
        $region53: #{tpu_custom_call.1} parent=47 // pred_check
          %p318 = pneg %p233
        $region54: #{tpu_custom_call.1} parent=47 // pred_check_branch
          %320 = sbr.rel (%p318) target = $region56
        $region55: #{tpu_custom_call.1} parent=47 // pred_region
          %s321 = smul.u32 32, %s19
          %p322 = scmp.lt.s32.totalorder %s321, 63
          %s323 = scalar_select %p322, %s321, 63
          %s324 = smul.addr %s323, 8
          %s325 = scalar_lea.vmem %s9, %s324
          %s326 = smul.u32 32, %s19
        $region56: #{tpu_custom_call.1} parent=47 // pred_fallthru
          _
      $region48: #{tpu_custom_call.1} parent=5 // pred_fallthru
        _
      %p327 = scmp.le.s32.totalorder 1, %s19
      %p328 = scmp.lt.s32.totalorder %s19, 3
      %p329 = pnand %p327, %p328
      %p330 = pneg %p329
      // Predicated region
      $region57: #{tpu_custom_call.1} parent=5 // pred_check
        _
      $region58: #{tpu_custom_call.1} parent=5 // pred_check_branch
        %332 = sbr.rel (%p329) target = $region60
      $region59: #{tpu_custom_call.1} parent=5 // pred_region
        %s333 = ssub.s32 %s19, 1
        %s334 = smul.u32 32, %s24
        %p335 = scmp.lt.s32.totalorder %s334, 63
        %s336 = scalar_select %p335, %s334, 63
        %s337 = smul.addr %s336, 2
        %s338 = smul.addr %s337, 4
        %s339 = scalar_lea.vmem %s0, %s338
        %p340 = pneg %p45
        %p341 = pneg %p42
        %p342 = pneg %p66
        %p343 = pneg %p63
        %p344 = pneg %p87
        %p345 = pneg %p84
        %p346 = pneg %p108
        %p347 = pneg %p105
        %p348 = pneg %p129
        %p349 = pneg %p126
        %p350 = pneg %p150
        %p351 = pneg %p147
        %p352 = pneg %p171
        %p353 = pneg %p168
        %p354 = pneg %p192
        %p355 = pneg %p189
        %p356 = pneg %p213
        %p357 = pneg %p210
        %s358 = smul.u32 32, %s24
        %p359 = scmp.lt.s32.totalorder %s358, 63
        %s360 = scalar_select %p359, %s358, 63
        %s361 = smul.addr %s360, 8
        %s362 = scalar_lea.vmem %s9, %s361
        %p363 = pneg %p239
        %p364 = pneg %p236
        %p365 = pneg %p265
        %p366 = pneg %p262
        %s367 = sand.u32 %s252, 1
        %s368 = scalar_lea.sflag [#allocation3], %s367
        %s369 = sand.u32 %s252, 1
        %s370 = smul.addr %s369, 256
        %s371 = scalar_lea.vmem [#allocation2], %s370
        %s372 = smul.u32 32, %s24
        %p373 = scmp.lt.s32.totalorder %s372, 63
        %s374 = scalar_select %p373, %s372, 63
        %s375 = smul.addr %s374, 2
        %s376 = smul.addr %s375, 4
        %s377 = scalar_lea.vmem %s0, %s376
        %s378 = smul.u32 32, %s24
        %s379 = smul.u32 32, %s24
        %p380 = scmp.lt.s32.totalorder %s379, 63
        %s381 = scalar_select %p380, %s379, 63
        %s382 = smul.addr %s381, 8
        %s383 = scalar_lea.vmem %s9, %s382
        %s384 = smul.u32 32, %s24
        %s385 = smul.u32 32, %s24
        %v387 = vld [vmem:[%s377] sm:$0xff]
        %v388 = vld [vmem:[%s377 + $0x8] sm:$0xff]
        %v389 = vld [vmem:[%s377 + $0x10] sm:$0xff]
        %v390 = vld [vmem:[%s377 + $0x18] sm:$0xff]
        %v391 = vld [vmem:[%s377 + $0x20] sm:$0xff]
        %v392 = vld [vmem:[%s377 + $0x28] sm:$0xff]
        %v393 = vld [vmem:[%s377 + $0x30] sm:$0xff]
        %v394 = vld [vmem:[%s377 + $0x38] sm:$0xff]
        %v395 = vld [vmem:[%s377 + $0x40] sm:$0xff]
        %v396 = vld [vmem:[%s377 + $0x48] sm:$0xff]
        %v397 = vld [vmem:[%s377 + $0x50] sm:$0xff]
        %v398 = vld [vmem:[%s377 + $0x58] sm:$0xff]
        %v399 = vld [vmem:[%s377 + $0x60] sm:$0xff]
        %v400 = vld [vmem:[%s377 + $0x68] sm:$0xff]
        %v401 = vld [vmem:[%s377 + $0x70] sm:$0xff]
        %v402 = vld [vmem:[%s377 + $0x78] sm:$0xff]
        %v403 = vld [vmem:[%s377 + $0x80] sm:$0xff]
        %v404 = vld [vmem:[%s377 + $0x88] sm:$0xff]
        %v405 = vld [vmem:[%s377 + $0x90] sm:$0xff]
        %v406 = vld [vmem:[%s377 + $0x98] sm:$0xff]
        %v407 = vld [vmem:[%s377 + $0xa0] sm:$0xff]
        %v408 = vld [vmem:[%s377 + $0xa8] sm:$0xff]
        %v409 = vld [vmem:[%s377 + $0xb0] sm:$0xff]
        %v410 = vld [vmem:[%s377 + $0xb8] sm:$0xff]
        %v411 = vld [vmem:[%s377 + $0xc0] sm:$0xff]
        %v412 = vld [vmem:[%s377 + $0xc8] sm:$0xff]
        %v413 = vld [vmem:[%s377 + $0xd0] sm:$0xff]
        %v414 = vld [vmem:[%s377 + $0xd8] sm:$0xff]
        %v415 = vld [vmem:[%s377 + $0xe0] sm:$0xff]
        %v416 = vld [vmem:[%s377 + $0xe8] sm:$0xff]
        %v417 = vld [vmem:[%s377 + $0xf0] sm:$0xff]
        %v418 = vld [vmem:[%s377 + $0xf8] sm:$0xff]
        %v419 = vld [vmem:[%s1] sm:$0xff]
        %v420 = vld [vmem:[%s1 + $0x8] sm:$0xff]
        %v421 = vld [vmem:[%s1 + $0x10] sm:$0xff]
        %v422 = vld [vmem:[%s1 + $0x18] sm:$0xff]
        %v423 = vld [vmem:[%s1 + $0x20] sm:$0xff]
        %v424 = vld [vmem:[%s1 + $0x28] sm:$0xff]
        %v425 = vld [vmem:[%s1 + $0x30] sm:$0xff]
        %v426 = vld [vmem:[%s1 + $0x38] sm:$0xff]
        %v427 = vld [vmem:[%s1 + $0x40] sm:$0xff]
        %v428 = vld [vmem:[%s1 + $0x48] sm:$0xff]
        %v429 = vld [vmem:[%s1 + $0x50] sm:$0xff]
        %v430 = vld [vmem:[%s1 + $0x58] sm:$0xff]
        %v431 = vld [vmem:[%s1 + $0x60] sm:$0xff]
        %v432 = vld [vmem:[%s1 + $0x68] sm:$0xff]
        %v433 = vld [vmem:[%s1 + $0x70] sm:$0xff]
        %v434 = vld [vmem:[%s1 + $0x78] sm:$0xff]
        %v435 = vld [vmem:[%s1 + $0x80] sm:$0xff]
        %v436 = vld [vmem:[%s1 + $0x88] sm:$0xff]
        %v437 = vld [vmem:[%s1 + $0x90] sm:$0xff]
        %v438 = vld [vmem:[%s1 + $0x98] sm:$0xff]
        %v439 = vld [vmem:[%s2] sm:$0x3]
        %v441 = vlaneseq
        %v442 = vshrl.u32 %v441, 7
        %v443 = vsub.s32 0, %v442
        %v444 = vrot.slane %v439, %v443
        %v445 = vlaneseq
        %v446 = vshrl.u32 %v445, 7
        %v447 = vsub.s32 1, %v446
        %v448 = vrot.slane %v439, %v447
        %v483 = vunpack.c.l.b16 %v387
        %v484 = vunpack.c.h.b16 %v387
        %v485 = vunpack.c.l.b16 %v388
        %v486 = vunpack.c.h.b16 %v388
        %v487 = vunpack.c.l.b16 %v389
        %v488 = vunpack.c.h.b16 %v389
        %v489 = vunpack.c.l.b16 %v390
        %v490 = vunpack.c.h.b16 %v390
        %v491 = vunpack.c.l.b16 %v391
        %v492 = vunpack.c.h.b16 %v391
        %v493 = vunpack.c.l.b16 %v392
        %v494 = vunpack.c.h.b16 %v392
        %v495 = vunpack.c.l.b16 %v393
        %v496 = vunpack.c.h.b16 %v393
        %v497 = vunpack.c.l.b16 %v394
        %v498 = vunpack.c.h.b16 %v394
        %v499 = vunpack.c.l.b16 %v395
        %v500 = vunpack.c.h.b16 %v395
        %v501 = vunpack.c.l.b16 %v396
        %v502 = vunpack.c.h.b16 %v396
        %v503 = vunpack.c.l.b16 %v397
        %v504 = vunpack.c.h.b16 %v397
        %v505 = vunpack.c.l.b16 %v398
        %v506 = vunpack.c.h.b16 %v398
        %v507 = vunpack.c.l.b16 %v399
        %v508 = vunpack.c.h.b16 %v399
        %v509 = vunpack.c.l.b16 %v400
        %v510 = vunpack.c.h.b16 %v400
        %v511 = vunpack.c.l.b16 %v401
        %v512 = vunpack.c.h.b16 %v401
        %v513 = vunpack.c.l.b16 %v402
        %v514 = vunpack.c.h.b16 %v402
        %v515 = vunpack.c.l.b16 %v403
        %v516 = vunpack.c.h.b16 %v403
        %v517 = vunpack.c.l.b16 %v404
        %v518 = vunpack.c.h.b16 %v404
        %v519 = vunpack.c.l.b16 %v405
        %v520 = vunpack.c.h.b16 %v405
        %v521 = vunpack.c.l.b16 %v406
        %v522 = vunpack.c.h.b16 %v406
        %v523 = vunpack.c.l.b16 %v407
        %v524 = vunpack.c.h.b16 %v407
        %v525 = vunpack.c.l.b16 %v408
        %v526 = vunpack.c.h.b16 %v408
        %v527 = vunpack.c.l.b16 %v409
        %v528 = vunpack.c.h.b16 %v409
        %v529 = vunpack.c.l.b16 %v410
        %v530 = vunpack.c.h.b16 %v410
        %v531 = vunpack.c.l.b16 %v411
        %v532 = vunpack.c.h.b16 %v411
        %v533 = vunpack.c.l.b16 %v412
        %v534 = vunpack.c.h.b16 %v412
        %v535 = vunpack.c.l.b16 %v413
        %v536 = vunpack.c.h.b16 %v413
        %v537 = vunpack.c.l.b16 %v414
        %v538 = vunpack.c.h.b16 %v414
        %v539 = vunpack.c.l.b16 %v415
        %v540 = vunpack.c.h.b16 %v415
        %v541 = vunpack.c.l.b16 %v416
        %v542 = vunpack.c.h.b16 %v416
        %v543 = vunpack.c.l.b16 %v417
        %v544 = vunpack.c.h.b16 %v417
        %v545 = vunpack.c.l.b16 %v418
        %v546 = vunpack.c.h.b16 %v418
        %v547 = vpack.c.b16 %v485, %v483
        %v548 = vpack.c.b16 %v486, %v484
        %v549 = vpack.c.b16 %v489, %v487
        %v550 = vpack.c.b16 %v490, %v488
        %v551 = vpack.c.b16 %v493, %v491
        %v552 = vpack.c.b16 %v494, %v492
        %v553 = vpack.c.b16 %v497, %v495
        %v554 = vpack.c.b16 %v498, %v496
        %v555 = vpack.c.b16 %v501, %v499
        %v556 = vpack.c.b16 %v502, %v500
        %v557 = vpack.c.b16 %v505, %v503
        %v558 = vpack.c.b16 %v506, %v504
        %v559 = vpack.c.b16 %v509, %v507
        %v560 = vpack.c.b16 %v510, %v508
        %v561 = vpack.c.b16 %v513, %v511
        %v562 = vpack.c.b16 %v514, %v512
        %v563 = vpack.c.b16 %v517, %v515
        %v564 = vpack.c.b16 %v518, %v516
        %v565 = vpack.c.b16 %v521, %v519
        %v566 = vpack.c.b16 %v522, %v520
        %v567 = vpack.c.b16 %v525, %v523
        %v568 = vpack.c.b16 %v526, %v524
        %v569 = vpack.c.b16 %v529, %v527
        %v570 = vpack.c.b16 %v530, %v528
        %v571 = vpack.c.b16 %v533, %v531
        %v572 = vpack.c.b16 %v534, %v532
        %v573 = vpack.c.b16 %v537, %v535
        %v574 = vpack.c.b16 %v538, %v536
        %v575 = vpack.c.b16 %v541, %v539
        %v576 = vpack.c.b16 %v542, %v540
        %v577 = vpack.c.b16 %v545, %v543
        %v578 = vpack.c.b16 %v546, %v544
        %v615 = vunpack.c.l.b16 %v419
        %v616 = vunpack.c.h.b16 %v419
        %v617 = vunpack.c.l.b16 %v420
        %v618 = vunpack.c.h.b16 %v420
        %v619 = vunpack.c.l.b16 %v421
        %v620 = vunpack.c.h.b16 %v421
        %v621 = vunpack.c.l.b16 %v422
        %v622 = vunpack.c.h.b16 %v422
        %v623 = vunpack.c.l.b16 %v423
        %v624 = vunpack.c.h.b16 %v423
        %v625 = vunpack.c.l.b16 %v424
        %v626 = vunpack.c.h.b16 %v424
        %v627 = vunpack.c.l.b16 %v425
        %v628 = vunpack.c.h.b16 %v425
        %v629 = vunpack.c.l.b16 %v426
        %v630 = vunpack.c.h.b16 %v426
        %v631 = vunpack.c.l.b16 %v427
        %v632 = vunpack.c.h.b16 %v427
        %v633 = vunpack.c.l.b16 %v428
        %v634 = vunpack.c.h.b16 %v428
        %v635 = vunpack.c.l.b16 %v429
        %v636 = vunpack.c.h.b16 %v429
        %v637 = vunpack.c.l.b16 %v430
        %v638 = vunpack.c.h.b16 %v430
        %v639 = vunpack.c.l.b16 %v431
        %v640 = vunpack.c.h.b16 %v431
        %v641 = vunpack.c.l.b16 %v432
        %v642 = vunpack.c.h.b16 %v432
        %v643 = vunpack.c.l.b16 %v433
        %v644 = vunpack.c.h.b16 %v433
        %v645 = vunpack.c.l.b16 %v434
        %v646 = vunpack.c.h.b16 %v434
        %v647 = vunpack.c.l.b16 %v435
        %v648 = vunpack.c.h.b16 %v435
        %v649 = vunpack.c.l.b16 %v436
        %v650 = vunpack.c.h.b16 %v436
        %v651 = vunpack.c.l.b16 %v437
        %v652 = vunpack.c.h.b16 %v437
        %v653 = vunpack.c.l.b16 %v438
        %v654 = vunpack.c.h.b16 %v438
        %v655 = vpack.c.b16 %v617, %v615
        %v656 = vpack.c.b16 %v618, %v616
        %v657 = vpack.c.b16 %v621, %v619
        %v658 = vpack.c.b16 %v622, %v620
        %v659 = vpack.c.b16 %v625, %v623
        %v660 = vpack.c.b16 %v626, %v624
        %v661 = vpack.c.b16 %v629, %v627
        %v662 = vpack.c.b16 %v630, %v628
        %v663 = vpack.c.b16 %v633, %v631
        %v664 = vpack.c.b16 %v634, %v632
        %v665 = vpack.c.b16 %v637, %v635
        %v666 = vpack.c.b16 %v638, %v636
        %v667 = vpack.c.b16 %v641, %v639
        %v668 = vpack.c.b16 %v642, %v640
        %v669 = vpack.c.b16 %v645, %v643
        %v670 = vpack.c.b16 %v646, %v644
        %v671 = vpack.c.b16 %v649, %v647
        %v672 = vpack.c.b16 %v650, %v648
        %v673 = vpack.c.b16 %v653, %v651
        %v674 = vpack.c.b16 %v654, %v652
        %vm695 = vcmask 261120
        %v697 = vsel %vm695, %v548, 0
        %v700 = vsel %vm695, %v550, 0
        %v703 = vsel %vm695, %v552, 0
        %v706 = vsel %vm695, %v554, 0
        %v709 = vsel %vm695, %v556, 0
        %v712 = vsel %vm695, %v558, 0
        %v715 = vsel %vm695, %v560, 0
        %v718 = vsel %vm695, %v562, 0
        %v721 = vsel %vm695, %v564, 0
        %v724 = vsel %vm695, %v566, 0
        %v727 = vsel %vm695, %v568, 0
        %v730 = vsel %vm695, %v570, 0
        %v733 = vsel %vm695, %v572, 0
        %v736 = vsel %vm695, %v574, 0
        %v739 = vsel %vm695, %v576, 0
        %v742 = vsel %vm695, %v578, 0
        %744 = vmatprep.subr.bf16.mxu0 %v656
        %745 = vmatpush1.bf16.msra.mxu0 %v655
        %746 = vmatprep.subr.bf16.mxu0 %v658
        %747 = vmatpush1.bf16.msra.mxu0 %v657
        %748 = vmatprep.subr.bf16.mxu0 %v660
        %749 = vmatpush1.bf16.msra.mxu0 %v659
        %750 = vmatprep.subr.bf16.mxu0 %v662
        %751 = vmatpush1.bf16.msra.mxu0 %v661
        %752 = vmatprep.subr.bf16.mxu0 %v664
        %753 = vmatpush1.bf16.msra.mxu0 %v663
        %754 = vmatprep.subr.bf16.mxu0 %v666
        %755 = vmatpush1.bf16.msra.mxu0 %v665
        %756 = vmatprep.subr.bf16.mxu0 %v668
        %757 = vmatpush1.bf16.msra.mxu0 %v667
        %758 = vmatprep.subr.bf16.mxu0 %v670
        %759 = vmatpush1.bf16.msra.mxu0 %v669
        %760 = vmatprep.subr.bf16.mxu0 %v672
        %761 = vmatpush1.bf16.msra.mxu0 %v671
        %762 = vmatprep.subr.bf16.mxu0 %v674
        %763 = vmatpush1.bf16.msra.mxu0 %v673
        %764 = vmatprep.subr.bf16.mxu0 0
        %765 = vmatpush1.bf16.msra.mxu0 0
        %766 = vmatprep.subr.bf16.mxu0 0
        %767 = vmatpush1.bf16.msra.mxu0 0
        %768 = vmatprep.subr.bf16.mxu0 0
        %769 = vmatpush1.bf16.msra.mxu0 0
        %770 = vmatprep.subr.bf16.mxu0 0
        %771 = vmatpush1.bf16.msra.mxu0 0
        %772 = vmatprep.subr.bf16.mxu0 0
        %773 = vmatpush1.bf16.msra.mxu0 0
        %774 = vmatprep.subr.bf16.mxu0 0
        %775 = vmatpush1.bf16.msra.mxu0 0
        %776 = vmatprep.mubr.bf16.mxu0 %v697
        %777 = vmatmul.mubr.bf16.gmra.mrb[0].mxu0 %v547
        %v778 = vpop.f32.mrb[0].mxu0
        %v779 = vadd.f32 %v444, %v778
        %v780 = vpop.f32.mrb[0].mxu0
        %v781 = vadd.f32 %v448, %v780
        %v782 = vpop.f32.mrb[0].mxu0
        %v783 = vadd.f32 %v444, %v782
        %v784 = vpop.f32.mrb[0].mxu0
        %v785 = vadd.f32 %v448, %v784
        %786 = vmatprep.mubr.bf16.mxu0 %v700
        %787 = vmatmul.mubr.bf16.gmra.mrb[0].mxu0 %v549
        %v788 = vpop.f32.mrb[0].mxu0
        %v789 = vadd.f32 %v444, %v788
        %v790 = vpop.f32.mrb[0].mxu0
        %v791 = vadd.f32 %v448, %v790
        %v792 = vpop.f32.mrb[0].mxu0
        %v793 = vadd.f32 %v444, %v792
        %v794 = vpop.f32.mrb[0].mxu0
        %v795 = vadd.f32 %v448, %v794
        %796 = vmatprep.mubr.bf16.mxu0 %v703
        %797 = vmatmul.mubr.bf16.gmra.mrb[0].mxu0 %v551
        %v798 = vpop.f32.mrb[0].mxu0
        %v799 = vadd.f32 %v444, %v798
        %v800 = vpop.f32.mrb[0].mxu0
        %v801 = vadd.f32 %v448, %v800
        %v802 = vpop.f32.mrb[0].mxu0
        %v803 = vadd.f32 %v444, %v802
        %v804 = vpop.f32.mrb[0].mxu0
        %v805 = vadd.f32 %v448, %v804
        %806 = vmatprep.mubr.bf16.mxu0 %v706
        %807 = vmatmul.mubr.bf16.gmra.mrb[0].mxu0 %v553
        %v808 = vpop.f32.mrb[0].mxu0
        %v809 = vadd.f32 %v444, %v808
        %v810 = vpop.f32.mrb[0].mxu0
        %v811 = vadd.f32 %v448, %v810
        %v812 = vpop.f32.mrb[0].mxu0
        %v813 = vadd.f32 %v444, %v812
        %v814 = vpop.f32.mrb[0].mxu0
        %v815 = vadd.f32 %v448, %v814
        %816 = vmatprep.mubr.bf16.mxu0 %v709
        %817 = vmatmul.mubr.bf16.gmra.mrb[0].mxu0 %v555
        %v818 = vpop.f32.mrb[0].mxu0
        %v819 = vadd.f32 %v444, %v818
        %v820 = vpop.f32.mrb[0].mxu0
        %v821 = vadd.f32 %v448, %v820
        %v822 = vpop.f32.mrb[0].mxu0
        %v823 = vadd.f32 %v444, %v822
        %v824 = vpop.f32.mrb[0].mxu0
        %v825 = vadd.f32 %v448, %v824
        %826 = vmatprep.mubr.bf16.mxu0 %v712
        %827 = vmatmul.mubr.bf16.gmra.mrb[0].mxu0 %v557
        %v828 = vpop.f32.mrb[0].mxu0
        %v829 = vadd.f32 %v444, %v828
        %v830 = vpop.f32.mrb[0].mxu0
        %v831 = vadd.f32 %v448, %v830
        %v832 = vpop.f32.mrb[0].mxu0
        %v833 = vadd.f32 %v444, %v832
        %v834 = vpop.f32.mrb[0].mxu0
        %v835 = vadd.f32 %v448, %v834
        %836 = vmatprep.mubr.bf16.mxu0 %v715
        %837 = vmatmul.mubr.bf16.gmra.mrb[0].mxu0 %v559
        %v838 = vpop.f32.mrb[0].mxu0
        %v839 = vadd.f32 %v444, %v838
        %v840 = vpop.f32.mrb[0].mxu0
        %v841 = vadd.f32 %v448, %v840
        %v842 = vpop.f32.mrb[0].mxu0
        %v843 = vadd.f32 %v444, %v842
        %v844 = vpop.f32.mrb[0].mxu0
        %v845 = vadd.f32 %v448, %v844
        %846 = vmatprep.mubr.bf16.mxu0 %v718
        %847 = vmatmul.mubr.bf16.gmra.mrb[0].mxu0 %v561
        %v848 = vpop.f32.mrb[0].mxu0
        %v849 = vadd.f32 %v444, %v848
        %v850 = vpop.f32.mrb[0].mxu0
        %v851 = vadd.f32 %v448, %v850
        %v852 = vpop.f32.mrb[0].mxu0
        %v853 = vadd.f32 %v444, %v852
        %v854 = vpop.f32.mrb[0].mxu0
        %v855 = vadd.f32 %v448, %v854
        %856 = vmatprep.mubr.bf16.mxu0 %v721
        %857 = vmatmul.mubr.bf16.gmra.mrb[0].mxu0 %v563
        %v858 = vpop.f32.mrb[0].mxu0
        %v859 = vadd.f32 %v444, %v858
        %v860 = vpop.f32.mrb[0].mxu0
        %v861 = vadd.f32 %v448, %v860
        %v862 = vpop.f32.mrb[0].mxu0
        %v863 = vadd.f32 %v444, %v862
        %v864 = vpop.f32.mrb[0].mxu0
        %v865 = vadd.f32 %v448, %v864
        %866 = vmatprep.mubr.bf16.mxu0 %v724
        %867 = vmatmul.mubr.bf16.gmra.mrb[0].mxu0 %v565
        %v868 = vpop.f32.mrb[0].mxu0
        %v869 = vadd.f32 %v444, %v868
        %v870 = vpop.f32.mrb[0].mxu0
        %v871 = vadd.f32 %v448, %v870
        %v872 = vpop.f32.mrb[0].mxu0
        %v873 = vadd.f32 %v444, %v872
        %v874 = vpop.f32.mrb[0].mxu0
        %v875 = vadd.f32 %v448, %v874
        %876 = vmatprep.mubr.bf16.mxu0 %v727
        %877 = vmatmul.mubr.bf16.gmra.mrb[0].mxu0 %v567
        %v878 = vpop.f32.mrb[0].mxu0
        %v879 = vadd.f32 %v444, %v878
        %v880 = vpop.f32.mrb[0].mxu0
        %v881 = vadd.f32 %v448, %v880
        %v882 = vpop.f32.mrb[0].mxu0
        %v883 = vadd.f32 %v444, %v882
        %v884 = vpop.f32.mrb[0].mxu0
        %v885 = vadd.f32 %v448, %v884
        %886 = vmatprep.mubr.bf16.mxu0 %v730
        %887 = vmatmul.mubr.bf16.gmra.mrb[0].mxu0 %v569
        %v888 = vpop.f32.mrb[0].mxu0
        %v889 = vadd.f32 %v444, %v888
        %v890 = vpop.f32.mrb[0].mxu0
        %v891 = vadd.f32 %v448, %v890
        %v892 = vpop.f32.mrb[0].mxu0
        %v893 = vadd.f32 %v444, %v892
        %v894 = vpop.f32.mrb[0].mxu0
        %v895 = vadd.f32 %v448, %v894
        %896 = vmatprep.mubr.bf16.mxu0 %v733
        %897 = vmatmul.mubr.bf16.gmra.mrb[0].mxu0 %v571
        %v898 = vpop.f32.mrb[0].mxu0
        %v899 = vadd.f32 %v444, %v898
        %v900 = vpop.f32.mrb[0].mxu0
        %v901 = vadd.f32 %v448, %v900
        %v902 = vpop.f32.mrb[0].mxu0
        %v903 = vadd.f32 %v444, %v902
        %v904 = vpop.f32.mrb[0].mxu0
        %v905 = vadd.f32 %v448, %v904
        %906 = vmatprep.mubr.bf16.mxu0 %v736
        %907 = vmatmul.mubr.bf16.gmra.mrb[0].mxu0 %v573
        %v908 = vpop.f32.mrb[0].mxu0
        %v909 = vadd.f32 %v444, %v908
        %v910 = vpop.f32.mrb[0].mxu0
        %v911 = vadd.f32 %v448, %v910
        %v912 = vpop.f32.mrb[0].mxu0
        %v913 = vadd.f32 %v444, %v912
        %v914 = vpop.f32.mrb[0].mxu0
        %v915 = vadd.f32 %v448, %v914
        %916 = vmatprep.mubr.bf16.mxu0 %v739
        %917 = vmatmul.mubr.bf16.gmra.mrb[0].mxu0 %v575
        %v918 = vpop.f32.mrb[0].mxu0
        %v919 = vadd.f32 %v444, %v918
        %v920 = vpop.f32.mrb[0].mxu0
        %v921 = vadd.f32 %v448, %v920
        %v922 = vpop.f32.mrb[0].mxu0
        %v923 = vadd.f32 %v444, %v922
        %v924 = vpop.f32.mrb[0].mxu0
        %v925 = vadd.f32 %v448, %v924
        %926 = vmatprep.mubr.bf16.mxu0 %v742
        %927 = vmatmul.mubr.bf16.gmra.mrb[0].mxu0 %v577
        %v928 = vpop.f32.mrb[0].mxu0
        %v929 = vadd.f32 %v444, %v928
        %v930 = vpop.f32.mrb[0].mxu0
        %v931 = vadd.f32 %v448, %v930
        %v932 = vpop.f32.mrb[0].mxu0
        %v933 = vadd.f32 %v444, %v932
        %v934 = vpop.f32.mrb[0].mxu0
        %v935 = vadd.f32 %v448, %v934
        %936 = vdwg.mxu0
        %v937 = vmax.f32 %v779, 0.0
        %v938 = vmax.f32 %v781, 0.0
        %v939 = vmax.f32 %v783, 0.0
        %v940 = vmax.f32 %v785, 0.0
        %v941 = vmax.f32 %v789, 0.0
        %v942 = vmax.f32 %v791, 0.0
        %v943 = vmax.f32 %v793, 0.0
        %v944 = vmax.f32 %v795, 0.0
        %v945 = vmax.f32 %v799, 0.0
        %v946 = vmax.f32 %v801, 0.0
        %v947 = vmax.f32 %v803, 0.0
        %v948 = vmax.f32 %v805, 0.0
        %v949 = vmax.f32 %v809, 0.0
        %v950 = vmax.f32 %v811, 0.0
        %v951 = vmax.f32 %v813, 0.0
        %v952 = vmax.f32 %v815, 0.0
        %v953 = vmax.f32 %v819, 0.0
        %v954 = vmax.f32 %v821, 0.0
        %v955 = vmax.f32 %v823, 0.0
        %v956 = vmax.f32 %v825, 0.0
        %v957 = vmax.f32 %v829, 0.0
        %v958 = vmax.f32 %v831, 0.0
        %v959 = vmax.f32 %v833, 0.0
        %v960 = vmax.f32 %v835, 0.0
        %v961 = vmax.f32 %v839, 0.0
        %v962 = vmax.f32 %v841, 0.0
        %v963 = vmax.f32 %v843, 0.0
        %v964 = vmax.f32 %v845, 0.0
        %v965 = vmax.f32 %v849, 0.0
        %v966 = vmax.f32 %v851, 0.0
        %v967 = vmax.f32 %v853, 0.0
        %v968 = vmax.f32 %v855, 0.0
        %v969 = vmax.f32 %v859, 0.0
        %v970 = vmax.f32 %v861, 0.0
        %v971 = vmax.f32 %v863, 0.0
        %v972 = vmax.f32 %v865, 0.0
        %v973 = vmax.f32 %v869, 0.0
        %v974 = vmax.f32 %v871, 0.0
        %v975 = vmax.f32 %v873, 0.0
        %v976 = vmax.f32 %v875, 0.0
        %v977 = vmax.f32 %v879, 0.0
        %v978 = vmax.f32 %v881, 0.0
        %v979 = vmax.f32 %v883, 0.0
        %v980 = vmax.f32 %v885, 0.0
        %v981 = vmax.f32 %v889, 0.0
        %v982 = vmax.f32 %v891, 0.0
        %v983 = vmax.f32 %v893, 0.0
        %v984 = vmax.f32 %v895, 0.0
        %v985 = vmax.f32 %v899, 0.0
        %v986 = vmax.f32 %v901, 0.0
        %v987 = vmax.f32 %v903, 0.0
        %v988 = vmax.f32 %v905, 0.0
        %v989 = vmax.f32 %v909, 0.0
        %v990 = vmax.f32 %v911, 0.0
        %v991 = vmax.f32 %v913, 0.0
        %v992 = vmax.f32 %v915, 0.0
        %v993 = vmax.f32 %v919, 0.0
        %v994 = vmax.f32 %v921, 0.0
        %v995 = vmax.f32 %v923, 0.0
        %v996 = vmax.f32 %v925, 0.0
        %v997 = vmax.f32 %v929, 0.0
        %v998 = vmax.f32 %v931, 0.0
        %v999 = vmax.f32 %v933, 0.0
        %v1000 = vmax.f32 %v935, 0.0
        %v1001 = vpack.c.bf16 %v939, %v937
        %v1002 = vpack.c.bf16 %v940, %v938
        %v1003 = vpack.c.bf16 %v943, %v941
        %v1004 = vpack.c.bf16 %v944, %v942
        %v1005 = vpack.c.bf16 %v947, %v945
        %v1006 = vpack.c.bf16 %v948, %v946
        %v1007 = vpack.c.bf16 %v951, %v949
        %v1008 = vpack.c.bf16 %v952, %v950
        %v1009 = vpack.c.bf16 %v955, %v953
        %v1010 = vpack.c.bf16 %v956, %v954
        %v1011 = vpack.c.bf16 %v959, %v957
        %v1012 = vpack.c.bf16 %v960, %v958
        %v1013 = vpack.c.bf16 %v963, %v961
        %v1014 = vpack.c.bf16 %v964, %v962
        %v1015 = vpack.c.bf16 %v967, %v965
        %v1016 = vpack.c.bf16 %v968, %v966
        %v1017 = vpack.c.bf16 %v971, %v969
        %v1018 = vpack.c.bf16 %v972, %v970
        %v1019 = vpack.c.bf16 %v975, %v973
        %v1020 = vpack.c.bf16 %v976, %v974
        %v1021 = vpack.c.bf16 %v979, %v977
        %v1022 = vpack.c.bf16 %v980, %v978
        %v1023 = vpack.c.bf16 %v983, %v981
        %v1024 = vpack.c.bf16 %v984, %v982
        %v1025 = vpack.c.bf16 %v987, %v985
        %v1026 = vpack.c.bf16 %v988, %v986
        %v1027 = vpack.c.bf16 %v991, %v989
        %v1028 = vpack.c.bf16 %v992, %v990
        %v1029 = vpack.c.bf16 %v995, %v993
        %v1030 = vpack.c.bf16 %v996, %v994
        %v1031 = vpack.c.bf16 %v999, %v997
        %v1032 = vpack.c.bf16 %v1000, %v998
        %v1033 = vld [vmem:[%s3] sm:$0xf]
        %v1034 = vld [vmem:[%s3 + $0x4] sm:$0xf]
        %v1035 = vld [vmem:[%s3 + $0x8] sm:$0xf]
        %v1036 = vld [vmem:[%s3 + $0xc] sm:$0xf]
        %v1037 = vld [vmem:[%s3 + $0x10] sm:$0xf]
        %v1038 = vld [vmem:[%s3 + $0x14] sm:$0xf]
        %v1039 = vld [vmem:[%s3 + $0x18] sm:$0xf]
        %v1040 = vld [vmem:[%s3 + $0x1c] sm:$0xf]
        %v1041 = vld [vmem:[%s3 + $0x20] sm:$0xf]
        %v1042 = vld [vmem:[%s3 + $0x24] sm:$0xf]
        %v1043 = vld [vmem:[%s3 + $0x28] sm:$0xf]
        %v1044 = vld [vmem:[%s3 + $0x2c] sm:$0xf]
        %v1045 = vld [vmem:[%s3 + $0x30] sm:$0xf]
        %v1046 = vld [vmem:[%s3 + $0x34] sm:$0xf]
        %v1047 = vld [vmem:[%s3 + $0x38] sm:$0xf]
        %v1048 = vld [vmem:[%s3 + $0x3c] sm:$0xf]
        %v1049 = vld [vmem:[%s3 + $0x40] sm:$0xf]
        %v1050 = vld [vmem:[%s3 + $0x44] sm:$0xf]
        %v1051 = vld [vmem:[%s3 + $0x48] sm:$0xf]
        %v1052 = vld [vmem:[%s3 + $0x4c] sm:$0xf]
        %v1053 = vld [vmem:[%s4] sm:$0x1]
        %v1055 = vlaneseq
        %v1056 = vshrl.u32 %v1055, 7
        %v1057 = vsub.s32 0, %v1056
        %v1058 = vrot.slane %v1053, %v1057
        %v1080 = vunpack.c.l.b16 %v1033
        %v1081 = vunpack.c.l.b16 %v1034
        %v1082 = vunpack.c.l.b16 %v1035
        %v1083 = vunpack.c.l.b16 %v1036
        %v1084 = vunpack.c.l.b16 %v1037
        %v1085 = vunpack.c.l.b16 %v1038
        %v1086 = vunpack.c.l.b16 %v1039
        %v1087 = vunpack.c.l.b16 %v1040
        %v1088 = vunpack.c.l.b16 %v1041
        %v1089 = vunpack.c.l.b16 %v1042
        %v1090 = vunpack.c.l.b16 %v1043
        %v1091 = vunpack.c.l.b16 %v1044
        %v1092 = vunpack.c.l.b16 %v1045
        %v1093 = vunpack.c.l.b16 %v1046
        %v1094 = vunpack.c.l.b16 %v1047
        %v1095 = vunpack.c.l.b16 %v1048
        %v1096 = vunpack.c.l.b16 %v1049
        %v1097 = vunpack.c.l.b16 %v1050
        %v1098 = vunpack.c.l.b16 %v1051
        %v1099 = vunpack.c.l.b16 %v1052
        %v1100 = vpack.c.b16 %v1081, %v1080
        %v1101 = vpack.c.b16 %v1083, %v1082
        %v1102 = vpack.c.b16 %v1085, %v1084
        %v1103 = vpack.c.b16 %v1087, %v1086
        %v1104 = vpack.c.b16 %v1089, %v1088
        %v1105 = vpack.c.b16 %v1091, %v1090
        %v1106 = vpack.c.b16 %v1093, %v1092
        %v1107 = vpack.c.b16 %v1095, %v1094
        %v1108 = vpack.c.b16 %v1097, %v1096
        %v1109 = vpack.c.b16 %v1099, %v1098
        %v1121 = vsel %vm695, %v1002, 0
        %v1124 = vsel %vm695, %v1004, 0
        %v1127 = vsel %vm695, %v1006, 0
        %v1130 = vsel %vm695, %v1008, 0
        %v1133 = vsel %vm695, %v1010, 0
        %v1136 = vsel %vm695, %v1012, 0
        %v1139 = vsel %vm695, %v1014, 0
        %v1142 = vsel %vm695, %v1016, 0
        %v1145 = vsel %vm695, %v1018, 0
        %v1148 = vsel %vm695, %v1020, 0
        %v1151 = vsel %vm695, %v1022, 0
        %v1154 = vsel %vm695, %v1024, 0
        %v1157 = vsel %vm695, %v1026, 0
        %v1160 = vsel %vm695, %v1028, 0
        %v1163 = vsel %vm695, %v1030, 0
        %v1166 = vsel %vm695, %v1032, 0
        %1168 = vmatprep.subr.bf16.mxu0 0
        %1169 = vmatpush1.bf16.msra.mxu0 %v1100
        %1170 = vmatprep.subr.bf16.mxu0 0
        %1171 = vmatpush1.bf16.msra.mxu0 %v1101
        %1172 = vmatprep.subr.bf16.mxu0 0
        %1173 = vmatpush1.bf16.msra.mxu0 %v1102
        %1174 = vmatprep.subr.bf16.mxu0 0
        %1175 = vmatpush1.bf16.msra.mxu0 %v1103
        %1176 = vmatprep.subr.bf16.mxu0 0
        %1177 = vmatpush1.bf16.msra.mxu0 %v1104
        %1178 = vmatprep.subr.bf16.mxu0 0
        %1179 = vmatpush1.bf16.msra.mxu0 %v1105
        %1180 = vmatprep.subr.bf16.mxu0 0
        %1181 = vmatpush1.bf16.msra.mxu0 %v1106
        %1182 = vmatprep.subr.bf16.mxu0 0
        %1183 = vmatpush1.bf16.msra.mxu0 %v1107
        %1184 = vmatprep.subr.bf16.mxu0 0
        %1185 = vmatpush1.bf16.msra.mxu0 %v1108
        %1186 = vmatprep.subr.bf16.mxu0 0
        %1187 = vmatpush1.bf16.msra.mxu0 %v1109
        %1188 = vmatprep.subr.bf16.mxu0 0
        %1189 = vmatpush1.bf16.msra.mxu0 0
        %1190 = vmatprep.subr.bf16.mxu0 0
        %1191 = vmatpush1.bf16.msra.mxu0 0
        %1192 = vmatprep.subr.bf16.mxu0 0
        %1193 = vmatpush1.bf16.msra.mxu0 0
        %1194 = vmatprep.subr.bf16.mxu0 0
        %1195 = vmatpush1.bf16.msra.mxu0 0
        %1196 = vmatprep.subr.bf16.mxu0 0
        %1197 = vmatpush1.bf16.msra.mxu0 0
        %1198 = vmatprep.subr.bf16.mxu0 0
        %1199 = vmatpush1.bf16.msra.mxu0 0
        %1200 = vmatprep.mubr.bf16.mxu0 %v1121
        %1201 = vmatmul.mubr.bf16.gmra.mrb[0].mxu0 %v1001
        %v1202 = vpop.f32.mrb[0].mxu0
        %v1203 = vadd.f32 %v1058, %v1202
        %v1204 = vpop.f32.mrb[0].mxu0
        %v1205 = vpop.f32.mrb[0].mxu0
        %v1206 = vadd.f32 %v1058, %v1205
        %v1207 = vpop.f32.mrb[0].mxu0
        %1208 = vmatprep.mubr.bf16.mxu0 %v1124
        %1209 = vmatmul.mubr.bf16.gmra.mrb[0].mxu0 %v1003
        %v1210 = vpop.f32.mrb[0].mxu0
        %v1211 = vadd.f32 %v1058, %v1210
        %v1212 = vpop.f32.mrb[0].mxu0
        %v1213 = vpop.f32.mrb[0].mxu0
        %v1214 = vadd.f32 %v1058, %v1213
        %v1215 = vpop.f32.mrb[0].mxu0
        %1216 = vmatprep.mubr.bf16.mxu0 %v1127
        %1217 = vmatmul.mubr.bf16.gmra.mrb[0].mxu0 %v1005
        %v1218 = vpop.f32.mrb[0].mxu0
        %v1219 = vadd.f32 %v1058, %v1218
        %v1220 = vpop.f32.mrb[0].mxu0
        %v1221 = vpop.f32.mrb[0].mxu0
        %v1222 = vadd.f32 %v1058, %v1221
        %v1223 = vpop.f32.mrb[0].mxu0
        %1224 = vmatprep.mubr.bf16.mxu0 %v1130
        %1225 = vmatmul.mubr.bf16.gmra.mrb[0].mxu0 %v1007
        %v1226 = vpop.f32.mrb[0].mxu0
        %v1227 = vadd.f32 %v1058, %v1226
        %v1228 = vpop.f32.mrb[0].mxu0
        %v1229 = vpop.f32.mrb[0].mxu0
        %v1230 = vadd.f32 %v1058, %v1229
        %v1231 = vpop.f32.mrb[0].mxu0
        %1232 = vmatprep.mubr.bf16.mxu0 %v1133
        %1233 = vmatmul.mubr.bf16.gmra.mrb[0].mxu0 %v1009
        %v1234 = vpop.f32.mrb[0].mxu0
        %v1235 = vadd.f32 %v1058, %v1234
        %v1236 = vpop.f32.mrb[0].mxu0
        %v1237 = vpop.f32.mrb[0].mxu0
        %v1238 = vadd.f32 %v1058, %v1237
        %v1239 = vpop.f32.mrb[0].mxu0
        %1240 = vmatprep.mubr.bf16.mxu0 %v1136
        %1241 = vmatmul.mubr.bf16.gmra.mrb[0].mxu0 %v1011
        %v1242 = vpop.f32.mrb[0].mxu0
        %v1243 = vadd.f32 %v1058, %v1242
        %v1244 = vpop.f32.mrb[0].mxu0
        %v1245 = vpop.f32.mrb[0].mxu0
        %v1246 = vadd.f32 %v1058, %v1245
        %v1247 = vpop.f32.mrb[0].mxu0
        %1248 = vmatprep.mubr.bf16.mxu0 %v1139
        %1249 = vmatmul.mubr.bf16.gmra.mrb[0].mxu0 %v1013
        %v1250 = vpop.f32.mrb[0].mxu0
        %v1251 = vadd.f32 %v1058, %v1250
        %v1252 = vpop.f32.mrb[0].mxu0
        %v1253 = vpop.f32.mrb[0].mxu0
        %v1254 = vadd.f32 %v1058, %v1253
        %v1255 = vpop.f32.mrb[0].mxu0
        %1256 = vmatprep.mubr.bf16.mxu0 %v1142
        %1257 = vmatmul.mubr.bf16.gmra.mrb[0].mxu0 %v1015
        %v1258 = vpop.f32.mrb[0].mxu0
        %v1259 = vadd.f32 %v1058, %v1258
        %v1260 = vpop.f32.mrb[0].mxu0
        %v1261 = vpop.f32.mrb[0].mxu0
        %v1262 = vadd.f32 %v1058, %v1261
        %v1263 = vpop.f32.mrb[0].mxu0
        %1264 = vmatprep.mubr.bf16.mxu0 %v1145
        %1265 = vmatmul.mubr.bf16.gmra.mrb[0].mxu0 %v1017
        %v1266 = vpop.f32.mrb[0].mxu0
        %v1267 = vadd.f32 %v1058, %v1266
        %v1268 = vpop.f32.mrb[0].mxu0
        %v1269 = vpop.f32.mrb[0].mxu0
        %v1270 = vadd.f32 %v1058, %v1269
        %v1271 = vpop.f32.mrb[0].mxu0
        %1272 = vmatprep.mubr.bf16.mxu0 %v1148
        %1273 = vmatmul.mubr.bf16.gmra.mrb[0].mxu0 %v1019
        %v1274 = vpop.f32.mrb[0].mxu0
        %v1275 = vadd.f32 %v1058, %v1274
        %v1276 = vpop.f32.mrb[0].mxu0
        %v1277 = vpop.f32.mrb[0].mxu0
        %v1278 = vadd.f32 %v1058, %v1277
        %v1279 = vpop.f32.mrb[0].mxu0
        %1280 = vmatprep.mubr.bf16.mxu0 %v1151
        %1281 = vmatmul.mubr.bf16.gmra.mrb[0].mxu0 %v1021
        %v1282 = vpop.f32.mrb[0].mxu0
        %v1283 = vadd.f32 %v1058, %v1282
        %v1284 = vpop.f32.mrb[0].mxu0
        %v1285 = vpop.f32.mrb[0].mxu0
        %v1286 = vadd.f32 %v1058, %v1285
        %v1287 = vpop.f32.mrb[0].mxu0
        %1288 = vmatprep.mubr.bf16.mxu0 %v1154
        %1289 = vmatmul.mubr.bf16.gmra.mrb[0].mxu0 %v1023
        %v1290 = vpop.f32.mrb[0].mxu0
        %v1291 = vadd.f32 %v1058, %v1290
        %v1292 = vpop.f32.mrb[0].mxu0
        %v1293 = vpop.f32.mrb[0].mxu0
        %v1294 = vadd.f32 %v1058, %v1293
        %v1295 = vpop.f32.mrb[0].mxu0
        %1296 = vmatprep.mubr.bf16.mxu0 %v1157
        %1297 = vmatmul.mubr.bf16.gmra.mrb[0].mxu0 %v1025
        %v1298 = vpop.f32.mrb[0].mxu0
        %v1299 = vadd.f32 %v1058, %v1298
        %v1300 = vpop.f32.mrb[0].mxu0
        %v1301 = vpop.f32.mrb[0].mxu0
        %v1302 = vadd.f32 %v1058, %v1301
        %v1303 = vpop.f32.mrb[0].mxu0
        %1304 = vmatprep.mubr.bf16.mxu0 %v1160
        %1305 = vmatmul.mubr.bf16.gmra.mrb[0].mxu0 %v1027
        %v1306 = vpop.f32.mrb[0].mxu0
        %v1307 = vadd.f32 %v1058, %v1306
        %v1308 = vpop.f32.mrb[0].mxu0
        %v1309 = vpop.f32.mrb[0].mxu0
        %v1310 = vadd.f32 %v1058, %v1309
        %v1311 = vpop.f32.mrb[0].mxu0
        %1312 = vmatprep.mubr.bf16.mxu0 %v1163
        %1313 = vmatmul.mubr.bf16.gmra.mrb[0].mxu0 %v1029
        %v1314 = vpop.f32.mrb[0].mxu0
        %v1315 = vadd.f32 %v1058, %v1314
        %v1316 = vpop.f32.mrb[0].mxu0
        %v1317 = vpop.f32.mrb[0].mxu0
        %v1318 = vadd.f32 %v1058, %v1317
        %v1319 = vpop.f32.mrb[0].mxu0
        %1320 = vmatprep.mubr.bf16.mxu0 %v1166
        %1321 = vmatmul.mubr.bf16.gmra.mrb[0].mxu0 %v1031
        %v1322 = vpop.f32.mrb[0].mxu0
        %v1323 = vadd.f32 %v1058, %v1322
        %v1324 = vpop.f32.mrb[0].mxu0
        %v1325 = vpop.f32.mrb[0].mxu0
        %v1326 = vadd.f32 %v1058, %v1325
        %v1327 = vpop.f32.mrb[0].mxu0
        %1328 = vdwg.mxu0
        %v1329 = vld [vmem:[%s5] sm:$0xff]
        %v1330 = vld [vmem:[%s5 + $0x8] sm:$0xff]
        %v1331 = vld [vmem:[%s5 + $0x10] sm:$0xff]
        %v1332 = vld [vmem:[%s5 + $0x18] sm:$0xf]
        %v1333 = vld [vmem:[%s5 + $0x1c] sm:$0xff]
        %v1334 = vld [vmem:[%s5 + $0x24] sm:$0xff]
        %v1335 = vld [vmem:[%s5 + $0x2c] sm:$0xff]
        %v1336 = vld [vmem:[%s5 + $0x34] sm:$0xf]
        %v1337 = vld [vmem:[%s5 + $0x38] sm:$0xff]
        %v1338 = vld [vmem:[%s5 + $0x40] sm:$0xff]
        %v1339 = vld [vmem:[%s5 + $0x48] sm:$0xff]
        %v1340 = vld [vmem:[%s5 + $0x50] sm:$0xf]
        %v1341 = vld [vmem:[%s5 + $0x54] sm:$0xff]
        %v1342 = vld [vmem:[%s5 + $0x5c] sm:$0xff]
        %v1343 = vld [vmem:[%s5 + $0x64] sm:$0xff]
        %v1344 = vld [vmem:[%s5 + $0x6c] sm:$0xf]
        %v1345 = vld [vmem:[%s5 + $0x70] sm:$0xff]
        %v1346 = vld [vmem:[%s5 + $0x78] sm:$0xff]
        %v1347 = vld [vmem:[%s5 + $0x80] sm:$0xff]
        %v1348 = vld [vmem:[%s5 + $0x88] sm:$0xf]
        %v1349 = vld [vmem:[%s5 + $0x8c] sm:$0xff]
        %v1350 = vld [vmem:[%s5 + $0x94] sm:$0xff]
        %v1351 = vld [vmem:[%s5 + $0x9c] sm:$0xff]
        %v1352 = vld [vmem:[%s5 + $0xa4] sm:$0xf]
        %v1353 = vld [vmem:[%s5 + $0xa8] sm:$0xff]
        %v1354 = vld [vmem:[%s5 + $0xb0] sm:$0xff]
        %v1355 = vld [vmem:[%s5 + $0xb8] sm:$0xff]
        %v1356 = vld [vmem:[%s5 + $0xc0] sm:$0xf]
        %v1357 = vld [vmem:[%s5 + $0xc4] sm:$0xff]
        %v1358 = vld [vmem:[%s5 + $0xcc] sm:$0xff]
        %v1359 = vld [vmem:[%s5 + $0xd4] sm:$0xff]
        %v1360 = vld [vmem:[%s5 + $0xdc] sm:$0xf]
        %v1361 = vld [vmem:[%s5 + $0xe0] sm:$0xff]
        %v1362 = vld [vmem:[%s5 + $0xe8] sm:$0xff]
        %v1363 = vld [vmem:[%s5 + $0xf0] sm:$0xff]
        %v1364 = vld [vmem:[%s5 + $0xf8] sm:$0xf]
        %v1365 = vld [vmem:[%s5 + $0xfc] sm:$0xff]
        %v1366 = vld [vmem:[%s5 + $0x104] sm:$0xff]
        %v1367 = vld [vmem:[%s5 + $0x10c] sm:$0xff]
        %v1368 = vld [vmem:[%s5 + $0x114] sm:$0xf]
        %v1369 = vld [vmem:[%s5 + $0x118] sm:$0xff]
        %v1370 = vld [vmem:[%s5 + $0x120] sm:$0xff]
        %v1371 = vld [vmem:[%s5 + $0x128] sm:$0xff]
        %v1372 = vld [vmem:[%s5 + $0x130] sm:$0xf]
        %v1373 = vld [vmem:[%s5 + $0x134] sm:$0xff]
        %v1374 = vld [vmem:[%s5 + $0x13c] sm:$0xff]
        %v1375 = vld [vmem:[%s5 + $0x144] sm:$0xff]
        %v1376 = vld [vmem:[%s5 + $0x14c] sm:$0xf]
        %v1377 = vld [vmem:[%s5 + $0x150] sm:$0xff]
        %v1378 = vld [vmem:[%s5 + $0x158] sm:$0xff]
        %v1379 = vld [vmem:[%s5 + $0x160] sm:$0xff]
        %v1380 = vld [vmem:[%s5 + $0x168] sm:$0xf]
        %v1381 = vld [vmem:[%s5 + $0x16c] sm:$0xff]
        %v1382 = vld [vmem:[%s5 + $0x174] sm:$0xff]
        %v1383 = vld [vmem:[%s5 + $0x17c] sm:$0xff]
        %v1384 = vld [vmem:[%s5 + $0x184] sm:$0xf]
        %v1385 = vld [vmem:[%s5 + $0x188] sm:$0xff]
        %v1386 = vld [vmem:[%s5 + $0x190] sm:$0xff]
        %v1387 = vld [vmem:[%s5 + $0x198] sm:$0xff]
        %v1388 = vld [vmem:[%s5 + $0x1a0] sm:$0xf]
        %v1389 = vld [vmem:[%s5 + $0x1a4] sm:$0xff]
        %v1390 = vld [vmem:[%s5 + $0x1ac] sm:$0xff]
        %v1391 = vld [vmem:[%s5 + $0x1b4] sm:$0xff]
        %v1392 = vld [vmem:[%s5 + $0x1bc] sm:$0xf]
        %v1393 = vld [vmem:[%s5 + $0x1c0] sm:$0xff]
        %v1394 = vld [vmem:[%s5 + $0x1c8] sm:$0xff]
        %v1395 = vld [vmem:[%s5 + $0x1d0] sm:$0xff]
        %v1396 = vld [vmem:[%s5 + $0x1d8] sm:$0xf]
        %v1397 = vld [vmem:[%s5 + $0x1dc] sm:$0xff]
        %v1398 = vld [vmem:[%s5 + $0x1e4] sm:$0xff]
        %v1399 = vld [vmem:[%s5 + $0x1ec] sm:$0xff]
        %v1400 = vld [vmem:[%s5 + $0x1f4] sm:$0xf]
        %v1401 = vld [vmem:[%s5 + $0x1f8] sm:$0xff]
        %v1402 = vld [vmem:[%s5 + $0x200] sm:$0xff]
        %v1403 = vld [vmem:[%s5 + $0x208] sm:$0xff]
        %v1404 = vld [vmem:[%s5 + $0x210] sm:$0xf]
        %v1405 = vld [vmem:[%s5 + $0x214] sm:$0xff]
        %v1406 = vld [vmem:[%s5 + $0x21c] sm:$0xff]
        %v1407 = vld [vmem:[%s5 + $0x224] sm:$0xff]
        %v1408 = vld [vmem:[%s5 + $0x22c] sm:$0xf]
        %v1489 = vunpack.c.l.b16 %v1329
        %v1490 = vunpack.c.h.b16 %v1329
        %v1491 = vunpack.c.l.b16 %v1330
        %v1492 = vunpack.c.h.b16 %v1330
        %v1493 = vunpack.c.l.b16 %v1331
        %v1494 = vunpack.c.h.b16 %v1331
        %v1495 = vunpack.c.l.b16 %v1332
        %v1496 = vunpack.c.l.b16 %v1333
        %v1497 = vunpack.c.h.b16 %v1333
        %v1498 = vunpack.c.l.b16 %v1334
        %v1499 = vunpack.c.h.b16 %v1334
        %v1500 = vunpack.c.l.b16 %v1335
        %v1501 = vunpack.c.h.b16 %v1335
        %v1502 = vunpack.c.l.b16 %v1336
        %v1503 = vunpack.c.l.b16 %v1337
        %v1504 = vunpack.c.h.b16 %v1337
        %v1505 = vunpack.c.l.b16 %v1338
        %v1506 = vunpack.c.h.b16 %v1338
        %v1507 = vunpack.c.l.b16 %v1339
        %v1508 = vunpack.c.h.b16 %v1339
        %v1509 = vunpack.c.l.b16 %v1340
        %v1510 = vunpack.c.l.b16 %v1341
        %v1511 = vunpack.c.h.b16 %v1341
        %v1512 = vunpack.c.l.b16 %v1342
        %v1513 = vunpack.c.h.b16 %v1342
        %v1514 = vunpack.c.l.b16 %v1343
        %v1515 = vunpack.c.h.b16 %v1343
        %v1516 = vunpack.c.l.b16 %v1344
        %v1517 = vunpack.c.l.b16 %v1345
        %v1518 = vunpack.c.h.b16 %v1345
        %v1519 = vunpack.c.l.b16 %v1346
        %v1520 = vunpack.c.h.b16 %v1346
        %v1521 = vunpack.c.l.b16 %v1347
        %v1522 = vunpack.c.h.b16 %v1347
        %v1523 = vunpack.c.l.b16 %v1348
        %v1524 = vunpack.c.l.b16 %v1349
        %v1525 = vunpack.c.h.b16 %v1349
        %v1526 = vunpack.c.l.b16 %v1350
        %v1527 = vunpack.c.h.b16 %v1350
        %v1528 = vunpack.c.l.b16 %v1351
        %v1529 = vunpack.c.h.b16 %v1351
        %v1530 = vunpack.c.l.b16 %v1352
        %v1531 = vunpack.c.l.b16 %v1353
        %v1532 = vunpack.c.h.b16 %v1353
        %v1533 = vunpack.c.l.b16 %v1354
        %v1534 = vunpack.c.h.b16 %v1354
        %v1535 = vunpack.c.l.b16 %v1355
        %v1536 = vunpack.c.h.b16 %v1355
        %v1537 = vunpack.c.l.b16 %v1356
        %v1538 = vunpack.c.l.b16 %v1357
        %v1539 = vunpack.c.h.b16 %v1357
        %v1540 = vunpack.c.l.b16 %v1358
        %v1541 = vunpack.c.h.b16 %v1358
        %v1542 = vunpack.c.l.b16 %v1359
        %v1543 = vunpack.c.h.b16 %v1359
        %v1544 = vunpack.c.l.b16 %v1360
        %v1545 = vunpack.c.l.b16 %v1361
        %v1546 = vunpack.c.h.b16 %v1361
        %v1547 = vunpack.c.l.b16 %v1362
        %v1548 = vunpack.c.h.b16 %v1362
        %v1549 = vunpack.c.l.b16 %v1363
        %v1550 = vunpack.c.h.b16 %v1363
        %v1551 = vunpack.c.l.b16 %v1364
        %v1552 = vunpack.c.l.b16 %v1365
        %v1553 = vunpack.c.h.b16 %v1365
        %v1554 = vunpack.c.l.b16 %v1366
        %v1555 = vunpack.c.h.b16 %v1366
        %v1556 = vunpack.c.l.b16 %v1367
        %v1557 = vunpack.c.h.b16 %v1367
        %v1558 = vunpack.c.l.b16 %v1368
        %v1559 = vunpack.c.l.b16 %v1369
        %v1560 = vunpack.c.h.b16 %v1369
        %v1561 = vunpack.c.l.b16 %v1370
        %v1562 = vunpack.c.h.b16 %v1370
        %v1563 = vunpack.c.l.b16 %v1371
        %v1564 = vunpack.c.h.b16 %v1371
        %v1565 = vunpack.c.l.b16 %v1372
        %v1566 = vunpack.c.l.b16 %v1373
        %v1567 = vunpack.c.h.b16 %v1373
        %v1568 = vunpack.c.l.b16 %v1374
        %v1569 = vunpack.c.h.b16 %v1374
        %v1570 = vunpack.c.l.b16 %v1375
        %v1571 = vunpack.c.h.b16 %v1375
        %v1572 = vunpack.c.l.b16 %v1376
        %v1573 = vunpack.c.l.b16 %v1377
        %v1574 = vunpack.c.h.b16 %v1377
        %v1575 = vunpack.c.l.b16 %v1378
        %v1576 = vunpack.c.h.b16 %v1378
        %v1577 = vunpack.c.l.b16 %v1379
        %v1578 = vunpack.c.h.b16 %v1379
        %v1579 = vunpack.c.l.b16 %v1380
        %v1580 = vunpack.c.l.b16 %v1381
        %v1581 = vunpack.c.h.b16 %v1381
        %v1582 = vunpack.c.l.b16 %v1382
        %v1583 = vunpack.c.h.b16 %v1382
        %v1584 = vunpack.c.l.b16 %v1383
        %v1585 = vunpack.c.h.b16 %v1383
        %v1586 = vunpack.c.l.b16 %v1384
        %v1587 = vunpack.c.l.b16 %v1385
        %v1588 = vunpack.c.h.b16 %v1385
        %v1589 = vunpack.c.l.b16 %v1386
        %v1590 = vunpack.c.h.b16 %v1386
        %v1591 = vunpack.c.l.b16 %v1387
        %v1592 = vunpack.c.h.b16 %v1387
        %v1593 = vunpack.c.l.b16 %v1388
        %v1594 = vunpack.c.l.b16 %v1389
        %v1595 = vunpack.c.h.b16 %v1389
        %v1596 = vunpack.c.l.b16 %v1390
        %v1597 = vunpack.c.h.b16 %v1390
        %v1598 = vunpack.c.l.b16 %v1391
        %v1599 = vunpack.c.h.b16 %v1391
        %v1600 = vunpack.c.l.b16 %v1392
        %v1601 = vunpack.c.l.b16 %v1393
        %v1602 = vunpack.c.h.b16 %v1393
        %v1603 = vunpack.c.l.b16 %v1394
        %v1604 = vunpack.c.h.b16 %v1394
        %v1605 = vunpack.c.l.b16 %v1395
        %v1606 = vunpack.c.h.b16 %v1395
        %v1607 = vunpack.c.l.b16 %v1396
        %v1608 = vunpack.c.l.b16 %v1397
        %v1609 = vunpack.c.h.b16 %v1397
        %v1610 = vunpack.c.l.b16 %v1398
        %v1611 = vunpack.c.h.b16 %v1398
        %v1612 = vunpack.c.l.b16 %v1399
        %v1613 = vunpack.c.h.b16 %v1399
        %v1614 = vunpack.c.l.b16 %v1400
        %v1615 = vunpack.c.l.b16 %v1401
        %v1616 = vunpack.c.h.b16 %v1401
        %v1617 = vunpack.c.l.b16 %v1402
        %v1618 = vunpack.c.h.b16 %v1402
        %v1619 = vunpack.c.l.b16 %v1403
        %v1620 = vunpack.c.h.b16 %v1403
        %v1621 = vunpack.c.l.b16 %v1404
        %v1622 = vunpack.c.l.b16 %v1405
        %v1623 = vunpack.c.h.b16 %v1405
        %v1624 = vunpack.c.l.b16 %v1406
        %v1625 = vunpack.c.h.b16 %v1406
        %v1626 = vunpack.c.l.b16 %v1407
        %v1627 = vunpack.c.h.b16 %v1407
        %v1628 = vunpack.c.l.b16 %v1408
        %v1629 = vpack.c.b16 %v1496, %v1489
        %v1630 = vpack.c.b16 %v1497, %v1490
        %v1631 = vpack.c.b16 %v1498, %v1491
        %v1632 = vpack.c.b16 %v1499, %v1492
        %v1633 = vpack.c.b16 %v1500, %v1493
        %v1634 = vpack.c.b16 %v1501, %v1494
        %v1635 = vpack.c.b16 %v1502, %v1495
        %v1636 = vpack.c.b16 %v1510, %v1503
        %v1637 = vpack.c.b16 %v1511, %v1504
        %v1638 = vpack.c.b16 %v1512, %v1505
        %v1639 = vpack.c.b16 %v1513, %v1506
        %v1640 = vpack.c.b16 %v1514, %v1507
        %v1641 = vpack.c.b16 %v1515, %v1508
        %v1642 = vpack.c.b16 %v1516, %v1509
        %v1643 = vpack.c.b16 %v1524, %v1517
        %v1644 = vpack.c.b16 %v1525, %v1518
        %v1645 = vpack.c.b16 %v1526, %v1519
        %v1646 = vpack.c.b16 %v1527, %v1520
        %v1647 = vpack.c.b16 %v1528, %v1521
        %v1648 = vpack.c.b16 %v1529, %v1522
        %v1649 = vpack.c.b16 %v1530, %v1523
        %v1650 = vpack.c.b16 %v1538, %v1531
        %v1651 = vpack.c.b16 %v1539, %v1532
        %v1652 = vpack.c.b16 %v1540, %v1533
        %v1653 = vpack.c.b16 %v1541, %v1534
        %v1654 = vpack.c.b16 %v1542, %v1535
        %v1655 = vpack.c.b16 %v1543, %v1536
        %v1656 = vpack.c.b16 %v1544, %v1537
        %v1657 = vpack.c.b16 %v1552, %v1545
        %v1658 = vpack.c.b16 %v1553, %v1546
        %v1659 = vpack.c.b16 %v1554, %v1547
        %v1660 = vpack.c.b16 %v1555, %v1548
        %v1661 = vpack.c.b16 %v1556, %v1549
        %v1662 = vpack.c.b16 %v1557, %v1550
        %v1663 = vpack.c.b16 %v1558, %v1551
        %v1664 = vpack.c.b16 %v1566, %v1559
        %v1665 = vpack.c.b16 %v1567, %v1560
        %v1666 = vpack.c.b16 %v1568, %v1561
        %v1667 = vpack.c.b16 %v1569, %v1562
        %v1668 = vpack.c.b16 %v1570, %v1563
        %v1669 = vpack.c.b16 %v1571, %v1564
        %v1670 = vpack.c.b16 %v1572, %v1565
        %v1671 = vpack.c.b16 %v1580, %v1573
        %v1672 = vpack.c.b16 %v1581, %v1574
        %v1673 = vpack.c.b16 %v1582, %v1575
        %v1674 = vpack.c.b16 %v1583, %v1576
        %v1675 = vpack.c.b16 %v1584, %v1577
        %v1676 = vpack.c.b16 %v1585, %v1578
        %v1677 = vpack.c.b16 %v1586, %v1579
        %v1678 = vpack.c.b16 %v1594, %v1587
        %v1679 = vpack.c.b16 %v1595, %v1588
        %v1680 = vpack.c.b16 %v1596, %v1589
        %v1681 = vpack.c.b16 %v1597, %v1590
        %v1682 = vpack.c.b16 %v1598, %v1591
        %v1683 = vpack.c.b16 %v1599, %v1592
        %v1684 = vpack.c.b16 %v1600, %v1593
        %v1685 = vpack.c.b16 %v1608, %v1601
        %v1686 = vpack.c.b16 %v1609, %v1602
        %v1687 = vpack.c.b16 %v1610, %v1603
        %v1688 = vpack.c.b16 %v1611, %v1604
        %v1689 = vpack.c.b16 %v1612, %v1605
        %v1690 = vpack.c.b16 %v1613, %v1606
        %v1691 = vpack.c.b16 %v1614, %v1607
        %v1692 = vpack.c.b16 %v1622, %v1615
        %v1693 = vpack.c.b16 %v1623, %v1616
        %v1694 = vpack.c.b16 %v1624, %v1617
        %v1695 = vpack.c.b16 %v1625, %v1618
        %v1696 = vpack.c.b16 %v1626, %v1619
        %v1697 = vpack.c.b16 %v1627, %v1620
        %v1698 = vpack.c.b16 %v1628, %v1621
        %1769 = vmatprep.subr.bf16.mxu0 %v1630
        %1770 = vmatpush1.bf16.msra.mxu0 %v1629
        %1771 = vmatprep.subr.bf16.mxu0 %v1637
        %1772 = vmatpush1.bf16.msra.mxu0 %v1636
        %1773 = vmatprep.subr.bf16.mxu0 %v1644
        %1774 = vmatpush1.bf16.msra.mxu0 %v1643
        %1775 = vmatprep.subr.bf16.mxu0 %v1651
        %1776 = vmatpush1.bf16.msra.mxu0 %v1650
        %1777 = vmatprep.subr.bf16.mxu0 %v1658
        %1778 = vmatpush1.bf16.msra.mxu0 %v1657
        %1779 = vmatprep.subr.bf16.mxu0 %v1665
        %1780 = vmatpush1.bf16.msra.mxu0 %v1664
        %1781 = vmatprep.subr.bf16.mxu0 %v1672
        %1782 = vmatpush1.bf16.msra.mxu0 %v1671
        %1783 = vmatprep.subr.bf16.mxu0 %v1679
        %1784 = vmatpush1.bf16.msra.mxu0 %v1678
        %1785 = vmatprep.subr.bf16.mxu0 %v1686
        %1786 = vmatpush1.bf16.msra.mxu0 %v1685
        %1787 = vmatprep.subr.bf16.mxu0 %v1693
        %1788 = vmatpush1.bf16.msra.mxu0 %v1692
        %1789 = vmatprep.subr.bf16.mxu0 0
        %1790 = vmatpush1.bf16.msra.mxu0 0
        %1791 = vmatprep.subr.bf16.mxu0 0
        %1792 = vmatpush1.bf16.msra.mxu0 0
        %1793 = vmatprep.subr.bf16.mxu0 0
        %1794 = vmatpush1.bf16.msra.mxu0 0
        %1795 = vmatprep.subr.bf16.mxu0 0
        %1796 = vmatpush1.bf16.msra.mxu0 0
        %1797 = vmatprep.subr.bf16.mxu0 0
        %1798 = vmatpush1.bf16.msra.mxu0 0
        %1799 = vmatprep.subr.bf16.mxu0 0
        %1800 = vmatpush1.bf16.msra.mxu0 0
        %1801 = vmatprep.mubr.bf16.mxu0 %v697
        %1802 = vmatmul.mubr.bf16.gmra.mrb[0].mxu0 %v547
        %v1803 = vpop.f32.mrb[0].mxu0
        %v1804 = vadd.f32 0.0, %v1803
        %v1805 = vpop.f32.mrb[0].mxu0
        %v1806 = vadd.f32 0.0, %v1805
        %v1807 = vpop.f32.mrb[0].mxu0
        %v1808 = vadd.f32 0.0, %v1807
        %v1809 = vpop.f32.mrb[0].mxu0
        %v1810 = vadd.f32 0.0, %v1809
        %1811 = vmatprep.mubr.bf16.mxu0 %v700
        %1812 = vmatmul.mubr.bf16.gmra.mrb[0].mxu0 %v549
        %v1813 = vpop.f32.mrb[0].mxu0
        %v1814 = vadd.f32 0.0, %v1813
        %v1815 = vpop.f32.mrb[0].mxu0
        %v1816 = vadd.f32 0.0, %v1815
        %v1817 = vpop.f32.mrb[0].mxu0
        %v1818 = vadd.f32 0.0, %v1817
        %v1819 = vpop.f32.mrb[0].mxu0
        %v1820 = vadd.f32 0.0, %v1819
        %1821 = vmatprep.mubr.bf16.mxu0 %v703
        %1822 = vmatmul.mubr.bf16.gmra.mrb[0].mxu0 %v551
        %v1823 = vpop.f32.mrb[0].mxu0
        %v1824 = vadd.f32 0.0, %v1823
        %v1825 = vpop.f32.mrb[0].mxu0
        %v1826 = vadd.f32 0.0, %v1825
        %v1827 = vpop.f32.mrb[0].mxu0
        %v1828 = vadd.f32 0.0, %v1827
        %v1829 = vpop.f32.mrb[0].mxu0
        %v1830 = vadd.f32 0.0, %v1829
        %1831 = vmatprep.mubr.bf16.mxu0 %v706
        %1832 = vmatmul.mubr.bf16.gmra.mrb[0].mxu0 %v553
        %v1833 = vpop.f32.mrb[0].mxu0
        %v1834 = vadd.f32 0.0, %v1833
        %v1835 = vpop.f32.mrb[0].mxu0
        %v1836 = vadd.f32 0.0, %v1835
        %v1837 = vpop.f32.mrb[0].mxu0
        %v1838 = vadd.f32 0.0, %v1837
        %v1839 = vpop.f32.mrb[0].mxu0
        %v1840 = vadd.f32 0.0, %v1839
        %1841 = vmatprep.mubr.bf16.mxu0 %v709
        %1842 = vmatmul.mubr.bf16.gmra.mrb[0].mxu0 %v555
        %v1843 = vpop.f32.mrb[0].mxu0
        %v1844 = vadd.f32 0.0, %v1843
        %v1845 = vpop.f32.mrb[0].mxu0
        %v1846 = vadd.f32 0.0, %v1845
        %v1847 = vpop.f32.mrb[0].mxu0
        %v1848 = vadd.f32 0.0, %v1847
        %v1849 = vpop.f32.mrb[0].mxu0
        %v1850 = vadd.f32 0.0, %v1849
        %1851 = vmatprep.mubr.bf16.mxu0 %v712
        %1852 = vmatmul.mubr.bf16.gmra.mrb[0].mxu0 %v557
        %v1853 = vpop.f32.mrb[0].mxu0
        %v1854 = vadd.f32 0.0, %v1853
        %v1855 = vpop.f32.mrb[0].mxu0
        %v1856 = vadd.f32 0.0, %v1855
        %v1857 = vpop.f32.mrb[0].mxu0
        %v1858 = vadd.f32 0.0, %v1857
        %v1859 = vpop.f32.mrb[0].mxu0
        %v1860 = vadd.f32 0.0, %v1859
        %1861 = vmatprep.mubr.bf16.mxu0 %v715
        %1862 = vmatmul.mubr.bf16.gmra.mrb[0].mxu0 %v559
        %v1863 = vpop.f32.mrb[0].mxu0
        %v1864 = vadd.f32 0.0, %v1863
        %v1865 = vpop.f32.mrb[0].mxu0
        %v1866 = vadd.f32 0.0, %v1865
        %v1867 = vpop.f32.mrb[0].mxu0
        %v1868 = vadd.f32 0.0, %v1867
        %v1869 = vpop.f32.mrb[0].mxu0
        %v1870 = vadd.f32 0.0, %v1869
        %1871 = vmatprep.mubr.bf16.mxu0 %v718
        %1872 = vmatmul.mubr.bf16.gmra.mrb[0].mxu0 %v561
        %v1873 = vpop.f32.mrb[0].mxu0
        %v1874 = vadd.f32 0.0, %v1873
        %v1875 = vpop.f32.mrb[0].mxu0
        %v1876 = vadd.f32 0.0, %v1875
        %v1877 = vpop.f32.mrb[0].mxu0
        %v1878 = vadd.f32 0.0, %v1877
        %v1879 = vpop.f32.mrb[0].mxu0
        %v1880 = vadd.f32 0.0, %v1879
        %1881 = vmatprep.mubr.bf16.mxu0 %v721
        %1882 = vmatmul.mubr.bf16.gmra.mrb[0].mxu0 %v563
        %v1883 = vpop.f32.mrb[0].mxu0
        %v1884 = vadd.f32 0.0, %v1883
        %v1885 = vpop.f32.mrb[0].mxu0
        %v1886 = vadd.f32 0.0, %v1885
        %v1887 = vpop.f32.mrb[0].mxu0
        %v1888 = vadd.f32 0.0, %v1887
        %v1889 = vpop.f32.mrb[0].mxu0
        %v1890 = vadd.f32 0.0, %v1889
        %1891 = vmatprep.mubr.bf16.mxu0 %v724
        %1892 = vmatmul.mubr.bf16.gmra.mrb[0].mxu0 %v565
        %v1893 = vpop.f32.mrb[0].mxu0
        %v1894 = vadd.f32 0.0, %v1893
        %v1895 = vpop.f32.mrb[0].mxu0
        %v1896 = vadd.f32 0.0, %v1895
        %v1897 = vpop.f32.mrb[0].mxu0
        %v1898 = vadd.f32 0.0, %v1897
        %v1899 = vpop.f32.mrb[0].mxu0
        %v1900 = vadd.f32 0.0, %v1899
        %1901 = vmatprep.mubr.bf16.mxu0 %v727
        %1902 = vmatmul.mubr.bf16.gmra.mrb[0].mxu0 %v567
        %v1903 = vpop.f32.mrb[0].mxu0
        %v1904 = vadd.f32 0.0, %v1903
        %v1905 = vpop.f32.mrb[0].mxu0
        %v1906 = vadd.f32 0.0, %v1905
        %v1907 = vpop.f32.mrb[0].mxu0
        %v1908 = vadd.f32 0.0, %v1907
        %v1909 = vpop.f32.mrb[0].mxu0
        %v1910 = vadd.f32 0.0, %v1909
        %1911 = vmatprep.mubr.bf16.mxu0 %v730
        %1912 = vmatmul.mubr.bf16.gmra.mrb[0].mxu0 %v569
        %v1913 = vpop.f32.mrb[0].mxu0
        %v1914 = vadd.f32 0.0, %v1913
        %v1915 = vpop.f32.mrb[0].mxu0
        %v1916 = vadd.f32 0.0, %v1915
        %v1917 = vpop.f32.mrb[0].mxu0
        %v1918 = vadd.f32 0.0, %v1917
        %v1919 = vpop.f32.mrb[0].mxu0
        %v1920 = vadd.f32 0.0, %v1919
        %1921 = vmatprep.mubr.bf16.mxu0 %v733
        %1922 = vmatmul.mubr.bf16.gmra.mrb[0].mxu0 %v571
        %v1923 = vpop.f32.mrb[0].mxu0
        %v1924 = vadd.f32 0.0, %v1923
        %v1925 = vpop.f32.mrb[0].mxu0
        %v1926 = vadd.f32 0.0, %v1925
        %v1927 = vpop.f32.mrb[0].mxu0
        %v1928 = vadd.f32 0.0, %v1927
        %v1929 = vpop.f32.mrb[0].mxu0
        %v1930 = vadd.f32 0.0, %v1929
        %1931 = vmatprep.mubr.bf16.mxu0 %v736
        %1932 = vmatmul.mubr.bf16.gmra.mrb[0].mxu0 %v573
        %v1933 = vpop.f32.mrb[0].mxu0
        %v1934 = vadd.f32 0.0, %v1933
        %v1935 = vpop.f32.mrb[0].mxu0
        %v1936 = vadd.f32 0.0, %v1935
        %v1937 = vpop.f32.mrb[0].mxu0
        %v1938 = vadd.f32 0.0, %v1937
        %v1939 = vpop.f32.mrb[0].mxu0
        %v1940 = vadd.f32 0.0, %v1939
        %1941 = vmatprep.mubr.bf16.mxu0 %v739
        %1942 = vmatmul.mubr.bf16.gmra.mrb[0].mxu0 %v575
        %v1943 = vpop.f32.mrb[0].mxu0
        %v1944 = vadd.f32 0.0, %v1943
        %v1945 = vpop.f32.mrb[0].mxu0
        %v1946 = vadd.f32 0.0, %v1945
        %v1947 = vpop.f32.mrb[0].mxu0
        %v1948 = vadd.f32 0.0, %v1947
        %v1949 = vpop.f32.mrb[0].mxu0
        %v1950 = vadd.f32 0.0, %v1949
        %1951 = vmatprep.mubr.bf16.mxu0 %v742
        %1952 = vmatmul.mubr.bf16.gmra.mrb[0].mxu0 %v577
        %v1953 = vpop.f32.mrb[0].mxu0
        %v1954 = vadd.f32 0.0, %v1953
        %v1955 = vpop.f32.mrb[0].mxu0
        %v1956 = vadd.f32 0.0, %v1955
        %v1957 = vpop.f32.mrb[0].mxu0
        %v1958 = vadd.f32 0.0, %v1957
        %v1959 = vpop.f32.mrb[0].mxu0
        %v1960 = vadd.f32 0.0, %v1959
        %1961 = vdwg.mxu0
        %1962 = vmatprep.subr.bf16.mxu0 %v1632
        %1963 = vmatpush1.bf16.msra.mxu0 %v1631
        %1964 = vmatprep.subr.bf16.mxu0 %v1639
        %1965 = vmatpush1.bf16.msra.mxu0 %v1638
        %1966 = vmatprep.subr.bf16.mxu0 %v1646
        %1967 = vmatpush1.bf16.msra.mxu0 %v1645
        %1968 = vmatprep.subr.bf16.mxu0 %v1653
        %1969 = vmatpush1.bf16.msra.mxu0 %v1652
        %1970 = vmatprep.subr.bf16.mxu0 %v1660
        %1971 = vmatpush1.bf16.msra.mxu0 %v1659
        %1972 = vmatprep.subr.bf16.mxu0 %v1667
        %1973 = vmatpush1.bf16.msra.mxu0 %v1666
        %1974 = vmatprep.subr.bf16.mxu0 %v1674
        %1975 = vmatpush1.bf16.msra.mxu0 %v1673
        %1976 = vmatprep.subr.bf16.mxu0 %v1681
        %1977 = vmatpush1.bf16.msra.mxu0 %v1680
        %1978 = vmatprep.subr.bf16.mxu0 %v1688
        %1979 = vmatpush1.bf16.msra.mxu0 %v1687
        %1980 = vmatprep.subr.bf16.mxu0 %v1695
        %1981 = vmatpush1.bf16.msra.mxu0 %v1694
        %1982 = vmatprep.subr.bf16.mxu0 0
        %1983 = vmatpush1.bf16.msra.mxu0 0
        %1984 = vmatprep.subr.bf16.mxu0 0
        %1985 = vmatpush1.bf16.msra.mxu0 0
        %1986 = vmatprep.subr.bf16.mxu0 0
        %1987 = vmatpush1.bf16.msra.mxu0 0
        %1988 = vmatprep.subr.bf16.mxu0 0
        %1989 = vmatpush1.bf16.msra.mxu0 0
        %1990 = vmatprep.subr.bf16.mxu0 0
        %1991 = vmatpush1.bf16.msra.mxu0 0
        %1992 = vmatprep.subr.bf16.mxu0 0
        %1993 = vmatpush1.bf16.msra.mxu0 0
        %1994 = vmatprep.mubr.bf16.mxu0 %v697
        %1995 = vmatmul.mubr.bf16.gmra.mrb[0].mxu0 %v547
        %v1996 = vpop.f32.mrb[0].mxu0
        %v1997 = vadd.f32 0.0, %v1996
        %v1998 = vpop.f32.mrb[0].mxu0
        %v1999 = vadd.f32 0.0, %v1998
        %v2000 = vpop.f32.mrb[0].mxu0
        %v2001 = vadd.f32 0.0, %v2000
        %v2002 = vpop.f32.mrb[0].mxu0
        %v2003 = vadd.f32 0.0, %v2002
        %2004 = vmatprep.mubr.bf16.mxu0 %v700
        %2005 = vmatmul.mubr.bf16.gmra.mrb[0].mxu0 %v549
        %v2006 = vpop.f32.mrb[0].mxu0
        %v2007 = vadd.f32 0.0, %v2006
        %v2008 = vpop.f32.mrb[0].mxu0
        %v2009 = vadd.f32 0.0, %v2008
        %v2010 = vpop.f32.mrb[0].mxu0
        %v2011 = vadd.f32 0.0, %v2010
        %v2012 = vpop.f32.mrb[0].mxu0
        %v2013 = vadd.f32 0.0, %v2012
        %2014 = vmatprep.mubr.bf16.mxu0 %v703
        %2015 = vmatmul.mubr.bf16.gmra.mrb[0].mxu0 %v551
        %v2016 = vpop.f32.mrb[0].mxu0
        %v2017 = vadd.f32 0.0, %v2016
        %v2018 = vpop.f32.mrb[0].mxu0
        %v2019 = vadd.f32 0.0, %v2018
        %v2020 = vpop.f32.mrb[0].mxu0
        %v2021 = vadd.f32 0.0, %v2020
        %v2022 = vpop.f32.mrb[0].mxu0
        %v2023 = vadd.f32 0.0, %v2022
        %2024 = vmatprep.mubr.bf16.mxu0 %v706
        %2025 = vmatmul.mubr.bf16.gmra.mrb[0].mxu0 %v553
        %v2026 = vpop.f32.mrb[0].mxu0
        %v2027 = vadd.f32 0.0, %v2026
        %v2028 = vpop.f32.mrb[0].mxu0
        %v2029 = vadd.f32 0.0, %v2028
        %v2030 = vpop.f32.mrb[0].mxu0
        %v2031 = vadd.f32 0.0, %v2030
        %v2032 = vpop.f32.mrb[0].mxu0
        %v2033 = vadd.f32 0.0, %v2032
        %2034 = vmatprep.mubr.bf16.mxu0 %v709
        %2035 = vmatmul.mubr.bf16.gmra.mrb[0].mxu0 %v555
        %v2036 = vpop.f32.mrb[0].mxu0
        %v2037 = vadd.f32 0.0, %v2036
        %v2038 = vpop.f32.mrb[0].mxu0
        %v2039 = vadd.f32 0.0, %v2038
        %v2040 = vpop.f32.mrb[0].mxu0
        %v2041 = vadd.f32 0.0, %v2040
        %v2042 = vpop.f32.mrb[0].mxu0
        %v2043 = vadd.f32 0.0, %v2042
        %2044 = vmatprep.mubr.bf16.mxu0 %v712
        %2045 = vmatmul.mubr.bf16.gmra.mrb[0].mxu0 %v557
        %v2046 = vpop.f32.mrb[0].mxu0
        %v2047 = vadd.f32 0.0, %v2046
        %v2048 = vpop.f32.mrb[0].mxu0
        %v2049 = vadd.f32 0.0, %v2048
        %v2050 = vpop.f32.mrb[0].mxu0
        %v2051 = vadd.f32 0.0, %v2050
        %v2052 = vpop.f32.mrb[0].mxu0
        %v2053 = vadd.f32 0.0, %v2052
        %2054 = vmatprep.mubr.bf16.mxu0 %v715
        %2055 = vmatmul.mubr.bf16.gmra.mrb[0].mxu0 %v559
        %v2056 = vpop.f32.mrb[0].mxu0
        %v2057 = vadd.f32 0.0, %v2056
        %v2058 = vpop.f32.mrb[0].mxu0
        %v2059 = vadd.f32 0.0, %v2058
        %v2060 = vpop.f32.mrb[0].mxu0
        %v2061 = vadd.f32 0.0, %v2060
        %v2062 = vpop.f32.mrb[0].mxu0
        %v2063 = vadd.f32 0.0, %v2062
        %2064 = vmatprep.mubr.bf16.mxu0 %v718
        %2065 = vmatmul.mubr.bf16.gmra.mrb[0].mxu0 %v561
        %v2066 = vpop.f32.mrb[0].mxu0
        %v2067 = vadd.f32 0.0, %v2066
        %v2068 = vpop.f32.mrb[0].mxu0
        %v2069 = vadd.f32 0.0, %v2068
        %v2070 = vpop.f32.mrb[0].mxu0
        %v2071 = vadd.f32 0.0, %v2070
        %v2072 = vpop.f32.mrb[0].mxu0
        %v2073 = vadd.f32 0.0, %v2072
        %2074 = vmatprep.mubr.bf16.mxu0 %v721
        %2075 = vmatmul.mubr.bf16.gmra.mrb[0].mxu0 %v563
        %v2076 = vpop.f32.mrb[0].mxu0
        %v2077 = vadd.f32 0.0, %v2076
        %v2078 = vpop.f32.mrb[0].mxu0
        %v2079 = vadd.f32 0.0, %v2078
        %v2080 = vpop.f32.mrb[0].mxu0
        %v2081 = vadd.f32 0.0, %v2080
        %v2082 = vpop.f32.mrb[0].mxu0
        %v2083 = vadd.f32 0.0, %v2082
        %2084 = vmatprep.mubr.bf16.mxu0 %v724
        %2085 = vmatmul.mubr.bf16.gmra.mrb[0].mxu0 %v565
        %v2086 = vpop.f32.mrb[0].mxu0
        %v2087 = vadd.f32 0.0, %v2086
        %v2088 = vpop.f32.mrb[0].mxu0
        %v2089 = vadd.f32 0.0, %v2088
        %v2090 = vpop.f32.mrb[0].mxu0
        %v2091 = vadd.f32 0.0, %v2090
        %v2092 = vpop.f32.mrb[0].mxu0
        %v2093 = vadd.f32 0.0, %v2092
        %2094 = vmatprep.mubr.bf16.mxu0 %v727
        %2095 = vmatmul.mubr.bf16.gmra.mrb[0].mxu0 %v567
        %v2096 = vpop.f32.mrb[0].mxu0
        %v2097 = vadd.f32 0.0, %v2096
        %v2098 = vpop.f32.mrb[0].mxu0
        %v2099 = vadd.f32 0.0, %v2098
        %v2100 = vpop.f32.mrb[0].mxu0
        %v2101 = vadd.f32 0.0, %v2100
        %v2102 = vpop.f32.mrb[0].mxu0
        %v2103 = vadd.f32 0.0, %v2102
        %2104 = vmatprep.mubr.bf16.mxu0 %v730
        %2105 = vmatmul.mubr.bf16.gmra.mrb[0].mxu0 %v569
        %v2106 = vpop.f32.mrb[0].mxu0
        %v2107 = vadd.f32 0.0, %v2106
        %v2108 = vpop.f32.mrb[0].mxu0
        %v2109 = vadd.f32 0.0, %v2108
        %v2110 = vpop.f32.mrb[0].mxu0
        %v2111 = vadd.f32 0.0, %v2110
        %v2112 = vpop.f32.mrb[0].mxu0
        %v2113 = vadd.f32 0.0, %v2112
        %2114 = vmatprep.mubr.bf16.mxu0 %v733
        %2115 = vmatmul.mubr.bf16.gmra.mrb[0].mxu0 %v571
        %v2116 = vpop.f32.mrb[0].mxu0
        %v2117 = vadd.f32 0.0, %v2116
        %v2118 = vpop.f32.mrb[0].mxu0
        %v2119 = vadd.f32 0.0, %v2118
        %v2120 = vpop.f32.mrb[0].mxu0
        %v2121 = vadd.f32 0.0, %v2120
        %v2122 = vpop.f32.mrb[0].mxu0
        %v2123 = vadd.f32 0.0, %v2122
        %2124 = vmatprep.mubr.bf16.mxu0 %v736
        %2125 = vmatmul.mubr.bf16.gmra.mrb[0].mxu0 %v573
        %v2126 = vpop.f32.mrb[0].mxu0
        %v2127 = vadd.f32 0.0, %v2126
        %v2128 = vpop.f32.mrb[0].mxu0
        %v2129 = vadd.f32 0.0, %v2128
        %v2130 = vpop.f32.mrb[0].mxu0
        %v2131 = vadd.f32 0.0, %v2130
        %v2132 = vpop.f32.mrb[0].mxu0
        %v2133 = vadd.f32 0.0, %v2132
        %2134 = vmatprep.mubr.bf16.mxu0 %v739
        %2135 = vmatmul.mubr.bf16.gmra.mrb[0].mxu0 %v575
        %v2136 = vpop.f32.mrb[0].mxu0
        %v2137 = vadd.f32 0.0, %v2136
        %v2138 = vpop.f32.mrb[0].mxu0
        %v2139 = vadd.f32 0.0, %v2138
        %v2140 = vpop.f32.mrb[0].mxu0
        %v2141 = vadd.f32 0.0, %v2140
        %v2142 = vpop.f32.mrb[0].mxu0
        %v2143 = vadd.f32 0.0, %v2142
        %2144 = vmatprep.mubr.bf16.mxu0 %v742
        %2145 = vmatmul.mubr.bf16.gmra.mrb[0].mxu0 %v577
        %v2146 = vpop.f32.mrb[0].mxu0
        %v2147 = vadd.f32 0.0, %v2146
        %v2148 = vpop.f32.mrb[0].mxu0
        %v2149 = vadd.f32 0.0, %v2148
        %v2150 = vpop.f32.mrb[0].mxu0
        %v2151 = vadd.f32 0.0, %v2150
        %v2152 = vpop.f32.mrb[0].mxu0
        %v2153 = vadd.f32 0.0, %v2152
        %2154 = vdwg.mxu0
        %2155 = vmatprep.subr.bf16.mxu0 %v1634
        %2156 = vmatpush1.bf16.msra.mxu0 %v1633
        %2157 = vmatprep.subr.bf16.mxu0 %v1641
        %2158 = vmatpush1.bf16.msra.mxu0 %v1640
        %2159 = vmatprep.subr.bf16.mxu0 %v1648
        %2160 = vmatpush1.bf16.msra.mxu0 %v1647
        %2161 = vmatprep.subr.bf16.mxu0 %v1655
        %2162 = vmatpush1.bf16.msra.mxu0 %v1654
        %2163 = vmatprep.subr.bf16.mxu0 %v1662
        %2164 = vmatpush1.bf16.msra.mxu0 %v1661
        %2165 = vmatprep.subr.bf16.mxu0 %v1669
        %2166 = vmatpush1.bf16.msra.mxu0 %v1668
        %2167 = vmatprep.subr.bf16.mxu0 %v1676
        %2168 = vmatpush1.bf16.msra.mxu0 %v1675
        %2169 = vmatprep.subr.bf16.mxu0 %v1683
        %2170 = vmatpush1.bf16.msra.mxu0 %v1682
        %2171 = vmatprep.subr.bf16.mxu0 %v1690
        %2172 = vmatpush1.bf16.msra.mxu0 %v1689
        %2173 = vmatprep.subr.bf16.mxu0 %v1697
        %2174 = vmatpush1.bf16.msra.mxu0 %v1696
        %2175 = vmatprep.subr.bf16.mxu0 0
        %2176 = vmatpush1.bf16.msra.mxu0 0
        %2177 = vmatprep.subr.bf16.mxu0 0
        %2178 = vmatpush1.bf16.msra.mxu0 0
        %2179 = vmatprep.subr.bf16.mxu0 0
        %2180 = vmatpush1.bf16.msra.mxu0 0
        %2181 = vmatprep.subr.bf16.mxu0 0
        %2182 = vmatpush1.bf16.msra.mxu0 0
        %2183 = vmatprep.subr.bf16.mxu0 0
        %2184 = vmatpush1.bf16.msra.mxu0 0
        %2185 = vmatprep.subr.bf16.mxu0 0
        %2186 = vmatpush1.bf16.msra.mxu0 0
        %2187 = vmatprep.mubr.bf16.mxu0 %v697
        %2188 = vmatmul.mubr.bf16.gmra.mrb[0].mxu0 %v547
        %v2189 = vpop.f32.mrb[0].mxu0
        %v2190 = vadd.f32 0.0, %v2189
        %v2191 = vpop.f32.mrb[0].mxu0
        %v2192 = vadd.f32 0.0, %v2191
        %v2193 = vpop.f32.mrb[0].mxu0
        %v2194 = vadd.f32 0.0, %v2193
        %v2195 = vpop.f32.mrb[0].mxu0
        %v2196 = vadd.f32 0.0, %v2195
        %2197 = vmatprep.mubr.bf16.mxu0 %v700
        %2198 = vmatmul.mubr.bf16.gmra.mrb[0].mxu0 %v549
        %v2199 = vpop.f32.mrb[0].mxu0
        %v2200 = vadd.f32 0.0, %v2199
        %v2201 = vpop.f32.mrb[0].mxu0
        %v2202 = vadd.f32 0.0, %v2201
        %v2203 = vpop.f32.mrb[0].mxu0
        %v2204 = vadd.f32 0.0, %v2203
        %v2205 = vpop.f32.mrb[0].mxu0
        %v2206 = vadd.f32 0.0, %v2205
        %2207 = vmatprep.mubr.bf16.mxu0 %v703
        %2208 = vmatmul.mubr.bf16.gmra.mrb[0].mxu0 %v551
        %v2209 = vpop.f32.mrb[0].mxu0
        %v2210 = vadd.f32 0.0, %v2209
        %v2211 = vpop.f32.mrb[0].mxu0
        %v2212 = vadd.f32 0.0, %v2211
        %v2213 = vpop.f32.mrb[0].mxu0
        %v2214 = vadd.f32 0.0, %v2213
        %v2215 = vpop.f32.mrb[0].mxu0
        %v2216 = vadd.f32 0.0, %v2215
        %2217 = vmatprep.mubr.bf16.mxu0 %v706
        %2218 = vmatmul.mubr.bf16.gmra.mrb[0].mxu0 %v553
        %v2219 = vpop.f32.mrb[0].mxu0
        %v2220 = vadd.f32 0.0, %v2219
        %v2221 = vpop.f32.mrb[0].mxu0
        %v2222 = vadd.f32 0.0, %v2221
        %v2223 = vpop.f32.mrb[0].mxu0
        %v2224 = vadd.f32 0.0, %v2223
        %v2225 = vpop.f32.mrb[0].mxu0
        %v2226 = vadd.f32 0.0, %v2225
        %2227 = vmatprep.mubr.bf16.mxu0 %v709
        %2228 = vmatmul.mubr.bf16.gmra.mrb[0].mxu0 %v555
        %v2229 = vpop.f32.mrb[0].mxu0
        %v2230 = vadd.f32 0.0, %v2229
        %v2231 = vpop.f32.mrb[0].mxu0
        %v2232 = vadd.f32 0.0, %v2231
        %v2233 = vpop.f32.mrb[0].mxu0
        %v2234 = vadd.f32 0.0, %v2233
        %v2235 = vpop.f32.mrb[0].mxu0
        %v2236 = vadd.f32 0.0, %v2235
        %2237 = vmatprep.mubr.bf16.mxu0 %v712
        %2238 = vmatmul.mubr.bf16.gmra.mrb[0].mxu0 %v557
        %v2239 = vpop.f32.mrb[0].mxu0
        %v2240 = vadd.f32 0.0, %v2239
        %v2241 = vpop.f32.mrb[0].mxu0
        %v2242 = vadd.f32 0.0, %v2241
        %v2243 = vpop.f32.mrb[0].mxu0
        %v2244 = vadd.f32 0.0, %v2243
        %v2245 = vpop.f32.mrb[0].mxu0
        %v2246 = vadd.f32 0.0, %v2245
        %2247 = vmatprep.mubr.bf16.mxu0 %v715
        %2248 = vmatmul.mubr.bf16.gmra.mrb[0].mxu0 %v559
        %v2249 = vpop.f32.mrb[0].mxu0
        %v2250 = vadd.f32 0.0, %v2249
        %v2251 = vpop.f32.mrb[0].mxu0
        %v2252 = vadd.f32 0.0, %v2251
        %v2253 = vpop.f32.mrb[0].mxu0
        %v2254 = vadd.f32 0.0, %v2253
        %v2255 = vpop.f32.mrb[0].mxu0
        %v2256 = vadd.f32 0.0, %v2255
        %2257 = vmatprep.mubr.bf16.mxu0 %v718
        %2258 = vmatmul.mubr.bf16.gmra.mrb[0].mxu0 %v561
        %v2259 = vpop.f32.mrb[0].mxu0
        %v2260 = vadd.f32 0.0, %v2259
        %v2261 = vpop.f32.mrb[0].mxu0
        %v2262 = vadd.f32 0.0, %v2261
        %v2263 = vpop.f32.mrb[0].mxu0
        %v2264 = vadd.f32 0.0, %v2263
        %v2265 = vpop.f32.mrb[0].mxu0
        %v2266 = vadd.f32 0.0, %v2265
        %2267 = vmatprep.mubr.bf16.mxu0 %v721
        %2268 = vmatmul.mubr.bf16.gmra.mrb[0].mxu0 %v563
        %v2269 = vpop.f32.mrb[0].mxu0
        %v2270 = vadd.f32 0.0, %v2269
        %v2271 = vpop.f32.mrb[0].mxu0
        %v2272 = vadd.f32 0.0, %v2271
        %v2273 = vpop.f32.mrb[0].mxu0
        %v2274 = vadd.f32 0.0, %v2273
        %v2275 = vpop.f32.mrb[0].mxu0
        %v2276 = vadd.f32 0.0, %v2275
        %2277 = vmatprep.mubr.bf16.mxu0 %v724
        %2278 = vmatmul.mubr.bf16.gmra.mrb[0].mxu0 %v565
        %v2279 = vpop.f32.mrb[0].mxu0
        %v2280 = vadd.f32 0.0, %v2279
        %v2281 = vpop.f32.mrb[0].mxu0
        %v2282 = vadd.f32 0.0, %v2281
        %v2283 = vpop.f32.mrb[0].mxu0
        %v2284 = vadd.f32 0.0, %v2283
        %v2285 = vpop.f32.mrb[0].mxu0
        %v2286 = vadd.f32 0.0, %v2285
        %2287 = vmatprep.mubr.bf16.mxu0 %v727
        %2288 = vmatmul.mubr.bf16.gmra.mrb[0].mxu0 %v567
        %v2289 = vpop.f32.mrb[0].mxu0
        %v2290 = vadd.f32 0.0, %v2289
        %v2291 = vpop.f32.mrb[0].mxu0
        %v2292 = vadd.f32 0.0, %v2291
        %v2293 = vpop.f32.mrb[0].mxu0
        %v2294 = vadd.f32 0.0, %v2293
        %v2295 = vpop.f32.mrb[0].mxu0
        %v2296 = vadd.f32 0.0, %v2295
        %2297 = vmatprep.mubr.bf16.mxu0 %v730
        %2298 = vmatmul.mubr.bf16.gmra.mrb[0].mxu0 %v569
        %v2299 = vpop.f32.mrb[0].mxu0
        %v2300 = vadd.f32 0.0, %v2299
        %v2301 = vpop.f32.mrb[0].mxu0
        %v2302 = vadd.f32 0.0, %v2301
        %v2303 = vpop.f32.mrb[0].mxu0
        %v2304 = vadd.f32 0.0, %v2303
        %v2305 = vpop.f32.mrb[0].mxu0
        %v2306 = vadd.f32 0.0, %v2305
        %2307 = vmatprep.mubr.bf16.mxu0 %v733
        %2308 = vmatmul.mubr.bf16.gmra.mrb[0].mxu0 %v571
        %v2309 = vpop.f32.mrb[0].mxu0
        %v2310 = vadd.f32 0.0, %v2309
        %v2311 = vpop.f32.mrb[0].mxu0
        %v2312 = vadd.f32 0.0, %v2311
        %v2313 = vpop.f32.mrb[0].mxu0
        %v2314 = vadd.f32 0.0, %v2313
        %v2315 = vpop.f32.mrb[0].mxu0
        %v2316 = vadd.f32 0.0, %v2315
        %2317 = vmatprep.mubr.bf16.mxu0 %v736
        %2318 = vmatmul.mubr.bf16.gmra.mrb[0].mxu0 %v573
        %v2319 = vpop.f32.mrb[0].mxu0
        %v2320 = vadd.f32 0.0, %v2319
        %v2321 = vpop.f32.mrb[0].mxu0
        %v2322 = vadd.f32 0.0, %v2321
        %v2323 = vpop.f32.mrb[0].mxu0
        %v2324 = vadd.f32 0.0, %v2323
        %v2325 = vpop.f32.mrb[0].mxu0
        %v2326 = vadd.f32 0.0, %v2325
        %2327 = vmatprep.mubr.bf16.mxu0 %v739
        %2328 = vmatmul.mubr.bf16.gmra.mrb[0].mxu0 %v575
        %v2329 = vpop.f32.mrb[0].mxu0
        %v2330 = vadd.f32 0.0, %v2329
        %v2331 = vpop.f32.mrb[0].mxu0
        %v2332 = vadd.f32 0.0, %v2331
        %v2333 = vpop.f32.mrb[0].mxu0
        %v2334 = vadd.f32 0.0, %v2333
        %v2335 = vpop.f32.mrb[0].mxu0
        %v2336 = vadd.f32 0.0, %v2335
        %2337 = vmatprep.mubr.bf16.mxu0 %v742
        %2338 = vmatmul.mubr.bf16.gmra.mrb[0].mxu0 %v577
        %v2339 = vpop.f32.mrb[0].mxu0
        %v2340 = vadd.f32 0.0, %v2339
        %v2341 = vpop.f32.mrb[0].mxu0
        %v2342 = vadd.f32 0.0, %v2341
        %v2343 = vpop.f32.mrb[0].mxu0
        %v2344 = vadd.f32 0.0, %v2343
        %v2345 = vpop.f32.mrb[0].mxu0
        %v2346 = vadd.f32 0.0, %v2345
        %2347 = vdwg.mxu0
        %2348 = vmatprep.subr.bf16.mxu0 0
        %2349 = vmatpush1.bf16.msra.mxu0 %v1635
        %2350 = vmatprep.subr.bf16.mxu0 0
        %2351 = vmatpush1.bf16.msra.mxu0 %v1642
        %2352 = vmatprep.subr.bf16.mxu0 0
        %2353 = vmatpush1.bf16.msra.mxu0 %v1649
        %2354 = vmatprep.subr.bf16.mxu0 0
        %2355 = vmatpush1.bf16.msra.mxu0 %v1656
        %2356 = vmatprep.subr.bf16.mxu0 0
        %2357 = vmatpush1.bf16.msra.mxu0 %v1663
        %2358 = vmatprep.subr.bf16.mxu0 0
        %2359 = vmatpush1.bf16.msra.mxu0 %v1670
        %2360 = vmatprep.subr.bf16.mxu0 0
        %2361 = vmatpush1.bf16.msra.mxu0 %v1677
        %2362 = vmatprep.subr.bf16.mxu0 0
        %2363 = vmatpush1.bf16.msra.mxu0 %v1684
        %2364 = vmatprep.subr.bf16.mxu0 0
        %2365 = vmatpush1.bf16.msra.mxu0 %v1691
        %2366 = vmatprep.subr.bf16.mxu0 0
        %2367 = vmatpush1.bf16.msra.mxu0 %v1698
        %2368 = vmatprep.subr.bf16.mxu0 0
        %2369 = vmatpush1.bf16.msra.mxu0 0
        %2370 = vmatprep.subr.bf16.mxu0 0
        %2371 = vmatpush1.bf16.msra.mxu0 0
        %2372 = vmatprep.subr.bf16.mxu0 0
        %2373 = vmatpush1.bf16.msra.mxu0 0
        %2374 = vmatprep.subr.bf16.mxu0 0
        %2375 = vmatpush1.bf16.msra.mxu0 0
        %2376 = vmatprep.subr.bf16.mxu0 0
        %2377 = vmatpush1.bf16.msra.mxu0 0
        %2378 = vmatprep.subr.bf16.mxu0 0
        %2379 = vmatpush1.bf16.msra.mxu0 0
        %2380 = vmatprep.mubr.bf16.mxu0 %v697
        %2381 = vmatmul.mubr.bf16.gmra.mrb[0].mxu0 %v547
        %v2382 = vpop.f32.mrb[0].mxu0
        %v2383 = vadd.f32 0.0, %v2382
        %v2384 = vpop.f32.mrb[0].mxu0
        %v2385 = vpop.f32.mrb[0].mxu0
        %v2386 = vadd.f32 0.0, %v2385
        %v2387 = vpop.f32.mrb[0].mxu0
        %2388 = vmatprep.mubr.bf16.mxu0 %v700
        %2389 = vmatmul.mubr.bf16.gmra.mrb[0].mxu0 %v549
        %v2390 = vpop.f32.mrb[0].mxu0
        %v2391 = vadd.f32 0.0, %v2390
        %v2392 = vpop.f32.mrb[0].mxu0
        %v2393 = vpop.f32.mrb[0].mxu0
        %v2394 = vadd.f32 0.0, %v2393
        %v2395 = vpop.f32.mrb[0].mxu0
        %2396 = vmatprep.mubr.bf16.mxu0 %v703
        %2397 = vmatmul.mubr.bf16.gmra.mrb[0].mxu0 %v551
        %v2398 = vpop.f32.mrb[0].mxu0
        %v2399 = vadd.f32 0.0, %v2398
        %v2400 = vpop.f32.mrb[0].mxu0
        %v2401 = vpop.f32.mrb[0].mxu0
        %v2402 = vadd.f32 0.0, %v2401
        %v2403 = vpop.f32.mrb[0].mxu0
        %2404 = vmatprep.mubr.bf16.mxu0 %v706
        %2405 = vmatmul.mubr.bf16.gmra.mrb[0].mxu0 %v553
        %v2406 = vpop.f32.mrb[0].mxu0
        %v2407 = vadd.f32 0.0, %v2406
        %v2408 = vpop.f32.mrb[0].mxu0
        %v2409 = vpop.f32.mrb[0].mxu0
        %v2410 = vadd.f32 0.0, %v2409
        %v2411 = vpop.f32.mrb[0].mxu0
        %2412 = vmatprep.mubr.bf16.mxu0 %v709
        %2413 = vmatmul.mubr.bf16.gmra.mrb[0].mxu0 %v555
        %v2414 = vpop.f32.mrb[0].mxu0
        %v2415 = vadd.f32 0.0, %v2414
        %v2416 = vpop.f32.mrb[0].mxu0
        %v2417 = vpop.f32.mrb[0].mxu0
        %v2418 = vadd.f32 0.0, %v2417
        %v2419 = vpop.f32.mrb[0].mxu0
        %2420 = vmatprep.mubr.bf16.mxu0 %v712
        %2421 = vmatmul.mubr.bf16.gmra.mrb[0].mxu0 %v557
        %v2422 = vpop.f32.mrb[0].mxu0
        %v2423 = vadd.f32 0.0, %v2422
        %v2424 = vpop.f32.mrb[0].mxu0
        %v2425 = vpop.f32.mrb[0].mxu0
        %v2426 = vadd.f32 0.0, %v2425
        %v2427 = vpop.f32.mrb[0].mxu0
        %2428 = vmatprep.mubr.bf16.mxu0 %v715
        %2429 = vmatmul.mubr.bf16.gmra.mrb[0].mxu0 %v559
        %v2430 = vpop.f32.mrb[0].mxu0
        %v2431 = vadd.f32 0.0, %v2430
        %v2432 = vpop.f32.mrb[0].mxu0
        %v2433 = vpop.f32.mrb[0].mxu0
        %v2434 = vadd.f32 0.0, %v2433
        %v2435 = vpop.f32.mrb[0].mxu0
        %2436 = vmatprep.mubr.bf16.mxu0 %v718
        %2437 = vmatmul.mubr.bf16.gmra.mrb[0].mxu0 %v561
        %v2438 = vpop.f32.mrb[0].mxu0
        %v2439 = vadd.f32 0.0, %v2438
        %v2440 = vpop.f32.mrb[0].mxu0
        %v2441 = vpop.f32.mrb[0].mxu0
        %v2442 = vadd.f32 0.0, %v2441
        %v2443 = vpop.f32.mrb[0].mxu0
        %2444 = vmatprep.mubr.bf16.mxu0 %v721
        %2445 = vmatmul.mubr.bf16.gmra.mrb[0].mxu0 %v563
        %v2446 = vpop.f32.mrb[0].mxu0
        %v2447 = vadd.f32 0.0, %v2446
        %v2448 = vpop.f32.mrb[0].mxu0
        %v2449 = vpop.f32.mrb[0].mxu0
        %v2450 = vadd.f32 0.0, %v2449
        %v2451 = vpop.f32.mrb[0].mxu0
        %2452 = vmatprep.mubr.bf16.mxu0 %v724
        %2453 = vmatmul.mubr.bf16.gmra.mrb[0].mxu0 %v565
        %v2454 = vpop.f32.mrb[0].mxu0
        %v2455 = vadd.f32 0.0, %v2454
        %v2456 = vpop.f32.mrb[0].mxu0
        %v2457 = vpop.f32.mrb[0].mxu0
        %v2458 = vadd.f32 0.0, %v2457
        %v2459 = vpop.f32.mrb[0].mxu0
        %2460 = vmatprep.mubr.bf16.mxu0 %v727
        %2461 = vmatmul.mubr.bf16.gmra.mrb[0].mxu0 %v567
        %v2462 = vpop.f32.mrb[0].mxu0
        %v2463 = vadd.f32 0.0, %v2462
        %v2464 = vpop.f32.mrb[0].mxu0
        %v2465 = vpop.f32.mrb[0].mxu0
        %v2466 = vadd.f32 0.0, %v2465
        %v2467 = vpop.f32.mrb[0].mxu0
        %2468 = vmatprep.mubr.bf16.mxu0 %v730
        %2469 = vmatmul.mubr.bf16.gmra.mrb[0].mxu0 %v569
        %v2470 = vpop.f32.mrb[0].mxu0
        %v2471 = vadd.f32 0.0, %v2470
        %v2472 = vpop.f32.mrb[0].mxu0
        %v2473 = vpop.f32.mrb[0].mxu0
        %v2474 = vadd.f32 0.0, %v2473
        %v2475 = vpop.f32.mrb[0].mxu0
        %2476 = vmatprep.mubr.bf16.mxu0 %v733
        %2477 = vmatmul.mubr.bf16.gmra.mrb[0].mxu0 %v571
        %v2478 = vpop.f32.mrb[0].mxu0
        %v2479 = vadd.f32 0.0, %v2478
        %v2480 = vpop.f32.mrb[0].mxu0
        %v2481 = vpop.f32.mrb[0].mxu0
        %v2482 = vadd.f32 0.0, %v2481
        %v2483 = vpop.f32.mrb[0].mxu0
        %2484 = vmatprep.mubr.bf16.mxu0 %v736
        %2485 = vmatmul.mubr.bf16.gmra.mrb[0].mxu0 %v573
        %v2486 = vpop.f32.mrb[0].mxu0
        %v2487 = vadd.f32 0.0, %v2486
        %v2488 = vpop.f32.mrb[0].mxu0
        %v2489 = vpop.f32.mrb[0].mxu0
        %v2490 = vadd.f32 0.0, %v2489
        %v2491 = vpop.f32.mrb[0].mxu0
        %2492 = vmatprep.mubr.bf16.mxu0 %v739
        %2493 = vmatmul.mubr.bf16.gmra.mrb[0].mxu0 %v575
        %v2494 = vpop.f32.mrb[0].mxu0
        %v2495 = vadd.f32 0.0, %v2494
        %v2496 = vpop.f32.mrb[0].mxu0
        %v2497 = vpop.f32.mrb[0].mxu0
        %v2498 = vadd.f32 0.0, %v2497
        %v2499 = vpop.f32.mrb[0].mxu0
        %2500 = vmatprep.mubr.bf16.mxu0 %v742
        %2501 = vmatmul.mubr.bf16.gmra.mrb[0].mxu0 %v577
        %v2502 = vpop.f32.mrb[0].mxu0
        %v2503 = vadd.f32 0.0, %v2502
        %v2504 = vpop.f32.mrb[0].mxu0
        %v2505 = vpop.f32.mrb[0].mxu0
        %v2506 = vadd.f32 0.0, %v2505
        %v2507 = vpop.f32.mrb[0].mxu0
        %2508 = vdwg.mxu0
        %v2509 = vld [vmem:[%s6] sm:$0x1f]
        %v2510 = vld [vmem:[%s6 + $0x8] sm:$0x1f]
        %2512 = vset.pattern.permute.xlu0 0
        %2513 = vperm.xlu0 %2512, %v1203
        %v2514 = vpop.permute.xlu0 %2513
        %2517 = vset.pattern.permute.xlu0 0
        %2518 = vperm.xlu0 %2517, %v1206
        %v2519 = vpop.permute.xlu0 %2518
        %2522 = vset.pattern.permute.xlu0 0
        %2523 = vperm.xlu0 %2522, %v1211
        %v2524 = vpop.permute.xlu0 %2523
        %2527 = vset.pattern.permute.xlu0 0
        %2528 = vperm.xlu0 %2527, %v1214
        %v2529 = vpop.permute.xlu0 %2528
        %2532 = vset.pattern.permute.xlu0 0
        %2533 = vperm.xlu0 %2532, %v1219
        %v2534 = vpop.permute.xlu0 %2533
        %2537 = vset.pattern.permute.xlu0 0
        %2538 = vperm.xlu0 %2537, %v1222
        %v2539 = vpop.permute.xlu0 %2538
        %2542 = vset.pattern.permute.xlu0 0
        %2543 = vperm.xlu0 %2542, %v1227
        %v2544 = vpop.permute.xlu0 %2543
        %2547 = vset.pattern.permute.xlu0 0
        %2548 = vperm.xlu0 %2547, %v1230
        %v2549 = vpop.permute.xlu0 %2548
        %2552 = vset.pattern.permute.xlu0 0
        %2553 = vperm.xlu0 %2552, %v1235
        %v2554 = vpop.permute.xlu0 %2553
        %2557 = vset.pattern.permute.xlu0 0
        %2558 = vperm.xlu0 %2557, %v1238
        %v2559 = vpop.permute.xlu0 %2558
        %2562 = vset.pattern.permute.xlu0 0
        %2563 = vperm.xlu0 %2562, %v1243
        %v2564 = vpop.permute.xlu0 %2563
        %2567 = vset.pattern.permute.xlu0 0
        %2568 = vperm.xlu0 %2567, %v1246
        %v2569 = vpop.permute.xlu0 %2568
        %2572 = vset.pattern.permute.xlu0 0
        %2573 = vperm.xlu0 %2572, %v1251
        %v2574 = vpop.permute.xlu0 %2573
        %2577 = vset.pattern.permute.xlu0 0
        %2578 = vperm.xlu0 %2577, %v1254
        %v2579 = vpop.permute.xlu0 %2578
        %2582 = vset.pattern.permute.xlu0 0
        %2583 = vperm.xlu0 %2582, %v1259
        %v2584 = vpop.permute.xlu0 %2583
        %2587 = vset.pattern.permute.xlu0 0
        %2588 = vperm.xlu0 %2587, %v1262
        %v2589 = vpop.permute.xlu0 %2588
        %2592 = vset.pattern.permute.xlu0 0
        %2593 = vperm.xlu0 %2592, %v1267
        %v2594 = vpop.permute.xlu0 %2593
        %2597 = vset.pattern.permute.xlu0 0
        %2598 = vperm.xlu0 %2597, %v1270
        %v2599 = vpop.permute.xlu0 %2598
        %2602 = vset.pattern.permute.xlu0 0
        %2603 = vperm.xlu0 %2602, %v1275
        %v2604 = vpop.permute.xlu0 %2603
        %2607 = vset.pattern.permute.xlu0 0
        %2608 = vperm.xlu0 %2607, %v1278
        %v2609 = vpop.permute.xlu0 %2608
        %2612 = vset.pattern.permute.xlu0 0
        %2613 = vperm.xlu0 %2612, %v1283
        %v2614 = vpop.permute.xlu0 %2613
        %2617 = vset.pattern.permute.xlu0 0
        %2618 = vperm.xlu0 %2617, %v1286
        %v2619 = vpop.permute.xlu0 %2618
        %2622 = vset.pattern.permute.xlu0 0
        %2623 = vperm.xlu0 %2622, %v1291
        %v2624 = vpop.permute.xlu0 %2623
        %2627 = vset.pattern.permute.xlu0 0
        %2628 = vperm.xlu0 %2627, %v1294
        %v2629 = vpop.permute.xlu0 %2628
        %2632 = vset.pattern.permute.xlu0 0
        %2633 = vperm.xlu0 %2632, %v1299
        %v2634 = vpop.permute.xlu0 %2633
        %2637 = vset.pattern.permute.xlu0 0
        %2638 = vperm.xlu0 %2637, %v1302
        %v2639 = vpop.permute.xlu0 %2638
        %2642 = vset.pattern.permute.xlu0 0
        %2643 = vperm.xlu0 %2642, %v1307
        %v2644 = vpop.permute.xlu0 %2643
        %2647 = vset.pattern.permute.xlu0 0
        %2648 = vperm.xlu0 %2647, %v1310
        %v2649 = vpop.permute.xlu0 %2648
        %2652 = vset.pattern.permute.xlu0 0
        %2653 = vperm.xlu0 %2652, %v1315
        %v2654 = vpop.permute.xlu0 %2653
        %2657 = vset.pattern.permute.xlu0 0
        %2658 = vperm.xlu0 %2657, %v1318
        %v2659 = vpop.permute.xlu0 %2658
        %2662 = vset.pattern.permute.xlu0 0
        %2663 = vperm.xlu0 %2662, %v1323
        %v2664 = vpop.permute.xlu0 %2663
        %2667 = vset.pattern.permute.xlu0 0
        %2668 = vperm.xlu0 %2667, %v1326
        %v2669 = vpop.permute.xlu0 %2668
        %v2671 = vmul.f32 %v2514, %v1804
        %v2672 = vmul.f32 %v2514, %v1806
        %v2673 = vmul.f32 %v2519, %v1808
        %v2674 = vmul.f32 %v2519, %v1810
        %v2675 = vmul.f32 %v2524, %v1814
        %v2676 = vmul.f32 %v2524, %v1816
        %v2677 = vmul.f32 %v2529, %v1818
        %v2678 = vmul.f32 %v2529, %v1820
        %v2679 = vmul.f32 %v2534, %v1824
        %v2680 = vmul.f32 %v2534, %v1826
        %v2681 = vmul.f32 %v2539, %v1828
        %v2682 = vmul.f32 %v2539, %v1830
        %v2683 = vmul.f32 %v2544, %v1834
        %v2684 = vmul.f32 %v2544, %v1836
        %v2685 = vmul.f32 %v2549, %v1838
        %v2686 = vmul.f32 %v2549, %v1840
        %v2687 = vmul.f32 %v2554, %v1844
        %v2688 = vmul.f32 %v2554, %v1846
        %v2689 = vmul.f32 %v2559, %v1848
        %v2690 = vmul.f32 %v2559, %v1850
        %v2691 = vmul.f32 %v2564, %v1854
        %v2692 = vmul.f32 %v2564, %v1856
        %v2693 = vmul.f32 %v2569, %v1858
        %v2694 = vmul.f32 %v2569, %v1860
        %v2695 = vmul.f32 %v2574, %v1864
        %v2696 = vmul.f32 %v2574, %v1866
        %v2697 = vmul.f32 %v2579, %v1868
        %v2698 = vmul.f32 %v2579, %v1870
        %v2699 = vmul.f32 %v2584, %v1874
        %v2700 = vmul.f32 %v2584, %v1876
        %v2701 = vmul.f32 %v2589, %v1878
        %v2702 = vmul.f32 %v2589, %v1880
        %v2703 = vmul.f32 %v2594, %v1884
        %v2704 = vmul.f32 %v2594, %v1886
        %v2705 = vmul.f32 %v2599, %v1888
        %v2706 = vmul.f32 %v2599, %v1890
        %v2707 = vmul.f32 %v2604, %v1894
        %v2708 = vmul.f32 %v2604, %v1896
        %v2709 = vmul.f32 %v2609, %v1898
        %v2710 = vmul.f32 %v2609, %v1900
        %v2711 = vmul.f32 %v2614, %v1904
        %v2712 = vmul.f32 %v2614, %v1906
        %v2713 = vmul.f32 %v2619, %v1908
        %v2714 = vmul.f32 %v2619, %v1910
        %v2715 = vmul.f32 %v2624, %v1914
        %v2716 = vmul.f32 %v2624, %v1916
        %v2717 = vmul.f32 %v2629, %v1918
        %v2718 = vmul.f32 %v2629, %v1920
        %v2719 = vmul.f32 %v2634, %v1924
        %v2720 = vmul.f32 %v2634, %v1926
        %v2721 = vmul.f32 %v2639, %v1928
        %v2722 = vmul.f32 %v2639, %v1930
        %v2723 = vmul.f32 %v2644, %v1934
        %v2724 = vmul.f32 %v2644, %v1936
        %v2725 = vmul.f32 %v2649, %v1938
        %v2726 = vmul.f32 %v2649, %v1940
        %v2727 = vmul.f32 %v2654, %v1944
        %v2728 = vmul.f32 %v2654, %v1946
        %v2729 = vmul.f32 %v2659, %v1948
        %v2730 = vmul.f32 %v2659, %v1950
        %v2731 = vmul.f32 %v2664, %v1954
        %v2732 = vmul.f32 %v2664, %v1956
        %v2733 = vmul.f32 %v2669, %v1958
        %v2734 = vmul.f32 %v2669, %v1960
        %vm2735 = vcmask 39936
        %v2736 = vsel %vm2735, %v1203, 0
        %v2738 = vsel %vm2735, %v1206, 0
        %v2740 = vsel %vm2735, %v1211, 0
        %v2742 = vsel %vm2735, %v1214, 0
        %v2744 = vsel %vm2735, %v1219, 0
        %v2746 = vsel %vm2735, %v1222, 0
        %v2748 = vsel %vm2735, %v1227, 0
        %v2750 = vsel %vm2735, %v1230, 0
        %v2752 = vsel %vm2735, %v1235, 0
        %v2754 = vsel %vm2735, %v1238, 0
        %v2756 = vsel %vm2735, %v1243, 0
        %v2758 = vsel %vm2735, %v1246, 0
        %v2760 = vsel %vm2735, %v1251, 0
        %v2762 = vsel %vm2735, %v1254, 0
        %v2764 = vsel %vm2735, %v1259, 0
        %v2766 = vsel %vm2735, %v1262, 0
        %v2768 = vsel %vm2735, %v1267, 0
        %v2770 = vsel %vm2735, %v1270, 0
        %v2772 = vsel %vm2735, %v1275, 0
        %v2774 = vsel %vm2735, %v1278, 0
        %v2776 = vsel %vm2735, %v1283, 0
        %v2778 = vsel %vm2735, %v1286, 0
        %v2780 = vsel %vm2735, %v1291, 0
        %v2782 = vsel %vm2735, %v1294, 0
        %v2784 = vsel %vm2735, %v1299, 0
        %v2786 = vsel %vm2735, %v1302, 0
        %v2788 = vsel %vm2735, %v1307, 0
        %v2790 = vsel %vm2735, %v1310, 0
        %v2792 = vsel %vm2735, %v1315, 0
        %v2794 = vsel %vm2735, %v1318, 0
        %v2796 = vsel %vm2735, %v1323, 0
        %v2798 = vsel %vm2735, %v1326, 0
        %vm2800 = vcmask 1044480
        %v2802 = vsel %vm2800, %v2509, 0
        %v2805 = vsel %vm2800, %v2510, 0
        %2807 = vmatprep.subr.mxu0 %v2805
        %2808 = vmatpush1.msra.mxu0 %v2802
        %2809 = vmatprep.subr.mxu0 0.0
        %2810 = vmatpush1.msra.mxu0 0.0
        %2811 = vmatprep.subr.mxu0 0.0
        %2812 = vmatpush1.msra.mxu0 0.0
        %2813 = vmatprep.subr.mxu0 0.0
        %2814 = vmatpush1.msra.mxu0 0.0
        %2815 = vmatprep.subr.mxu0 0.0
        %2816 = vmatpush1.msra.mxu0 0.0
        %2817 = vmatprep.subr.mxu0 0.0
        %2818 = vmatpush1.msra.mxu0 0.0
        %2819 = vmatprep.subr.mxu0 0.0
        %2820 = vmatpush1.msra.mxu0 0.0
        %2821 = vmatprep.subr.mxu0 0.0
        %2822 = vmatpush1.msra.mxu0 0.0
        %2823 = vmatprep.subr.mxu0 0.0
        %2824 = vmatpush1.msra.mxu0 0.0
        %2825 = vmatprep.subr.mxu0 0.0
        %2826 = vmatpush1.msra.mxu0 0.0
        %2827 = vmatprep.subr.mxu0 0.0
        %2828 = vmatpush1.msra.mxu0 0.0
        %2829 = vmatprep.subr.mxu0 0.0
        %2830 = vmatpush1.msra.mxu0 0.0
        %2831 = vmatprep.subr.mxu0 0.0
        %2832 = vmatpush1.msra.mxu0 0.0
        %2833 = vmatprep.subr.mxu0 0.0
        %2834 = vmatpush1.msra.mxu0 0.0
        %2835 = vmatprep.subr.mxu0 0.0
        %2836 = vmatpush1.msra.mxu0 0.0
        %2837 = vmatprep.subr.mxu0 0.0
        %2838 = vmatpush1.msra.mxu0 0.0
        %2839 = vmatprep.subr.mxu0 0.0
        %2840 = vmatpush1.msra.mxu0 0.0
        %2841 = vmatprep.subr.mxu0 0.0
        %2842 = vmatpush1.msra.mxu0 0.0
        %2843 = vmatprep.subr.mxu0 0.0
        %2844 = vmatpush1.msra.mxu0 0.0
        %2845 = vmatprep.subr.mxu0 0.0
        %2846 = vmatpush1.msra.mxu0 0.0
        %2847 = vmatprep.subr.mxu0 0.0
        %2848 = vmatpush1.msra.mxu0 0.0
        %2849 = vmatprep.subr.mxu0 0.0
        %2850 = vmatpush1.msra.mxu0 0.0
        %2851 = vmatprep.subr.mxu0 0.0
        %2852 = vmatpush1.msra.mxu0 0.0
        %2853 = vmatprep.subr.mxu0 0.0
        %2854 = vmatpush1.msra.mxu0 0.0
        %2855 = vmatprep.subr.mxu0 0.0
        %2856 = vmatpush1.msra.mxu0 0.0
        %2857 = vmatprep.subr.mxu0 0.0
        %2858 = vmatpush1.msra.mxu0 0.0
        %2859 = vmatprep.subr.mxu0 0.0
        %2860 = vmatpush1.msra.mxu0 0.0
        %2861 = vmatprep.subr.mxu0 0.0
        %2862 = vmatpush1.msra.mxu0 0.0
        %2863 = vmatprep.subr.mxu0 0.0
        %2864 = vmatpush1.msra.mxu0 0.0
        %2865 = vmatprep.subr.mxu0 0.0
        %2866 = vmatpush1.msra.mxu0 0.0
        %2867 = vmatprep.subr.mxu0 0.0
        %2868 = vmatpush1.msra.mxu0 0.0
        %2869 = vmatprep.subr.mxu0 0.0
        %2870 = vmatpush1.msra.mxu0 0.0
        %2871 = vmatprep.mubr.f32.mxu0 0.0
        %2872 = vmatmul.mubr.f32.gmra.mrb[0].mxu0 %v2736
        %v2873 = vpop.f32.mrb[0].mxu0
        %v2874 = vadd.f32 %v2671, %v2873
        %v2875 = vpop.f32.mrb[0].mxu0
        %v2876 = vadd.f32 %v2672, %v2875
        %2877 = vmatprep.mubr.f32.mxu0 0.0
        %2878 = vmatmul.mubr.f32.gmra.mrb[0].mxu0 %v2738
        %v2879 = vpop.f32.mrb[0].mxu0
        %v2880 = vadd.f32 %v2673, %v2879
        %v2881 = vpop.f32.mrb[0].mxu0
        %v2882 = vadd.f32 %v2674, %v2881
        %2883 = vmatprep.mubr.f32.mxu0 0.0
        %2884 = vmatmul.mubr.f32.gmra.mrb[0].mxu0 %v2740
        %v2885 = vpop.f32.mrb[0].mxu0
        %v2886 = vadd.f32 %v2675, %v2885
        %v2887 = vpop.f32.mrb[0].mxu0
        %v2888 = vadd.f32 %v2676, %v2887
        %2889 = vmatprep.mubr.f32.mxu0 0.0
        %2890 = vmatmul.mubr.f32.gmra.mrb[0].mxu0 %v2742
        %v2891 = vpop.f32.mrb[0].mxu0
        %v2892 = vadd.f32 %v2677, %v2891
        %v2893 = vpop.f32.mrb[0].mxu0
        %v2894 = vadd.f32 %v2678, %v2893
        %2895 = vmatprep.mubr.f32.mxu0 0.0
        %2896 = vmatmul.mubr.f32.gmra.mrb[0].mxu0 %v2744
        %v2897 = vpop.f32.mrb[0].mxu0
        %v2898 = vadd.f32 %v2679, %v2897
        %v2899 = vpop.f32.mrb[0].mxu0
        %v2900 = vadd.f32 %v2680, %v2899
        %2901 = vmatprep.mubr.f32.mxu0 0.0
        %2902 = vmatmul.mubr.f32.gmra.mrb[0].mxu0 %v2746
        %v2903 = vpop.f32.mrb[0].mxu0
        %v2904 = vadd.f32 %v2681, %v2903
        %v2905 = vpop.f32.mrb[0].mxu0
        %v2906 = vadd.f32 %v2682, %v2905
        %2907 = vmatprep.mubr.f32.mxu0 0.0
        %2908 = vmatmul.mubr.f32.gmra.mrb[0].mxu0 %v2748
        %v2909 = vpop.f32.mrb[0].mxu0
        %v2910 = vadd.f32 %v2683, %v2909
        %v2911 = vpop.f32.mrb[0].mxu0
        %v2912 = vadd.f32 %v2684, %v2911
        %2913 = vmatprep.mubr.f32.mxu0 0.0
        %2914 = vmatmul.mubr.f32.gmra.mrb[0].mxu0 %v2750
        %v2915 = vpop.f32.mrb[0].mxu0
        %v2916 = vadd.f32 %v2685, %v2915
        %v2917 = vpop.f32.mrb[0].mxu0
        %v2918 = vadd.f32 %v2686, %v2917
        %2919 = vmatprep.mubr.f32.mxu0 0.0
        %2920 = vmatmul.mubr.f32.gmra.mrb[0].mxu0 %v2752
        %v2921 = vpop.f32.mrb[0].mxu0
        %v2922 = vadd.f32 %v2687, %v2921
        %v2923 = vpop.f32.mrb[0].mxu0
        %v2924 = vadd.f32 %v2688, %v2923
        %2925 = vmatprep.mubr.f32.mxu0 0.0
        %2926 = vmatmul.mubr.f32.gmra.mrb[0].mxu0 %v2754
        %v2927 = vpop.f32.mrb[0].mxu0
        %v2928 = vadd.f32 %v2689, %v2927
        %v2929 = vpop.f32.mrb[0].mxu0
        %v2930 = vadd.f32 %v2690, %v2929
        %2931 = vmatprep.mubr.f32.mxu0 0.0
        %2932 = vmatmul.mubr.f32.gmra.mrb[0].mxu0 %v2756
        %v2933 = vpop.f32.mrb[0].mxu0
        %v2934 = vadd.f32 %v2691, %v2933
        %v2935 = vpop.f32.mrb[0].mxu0
        %v2936 = vadd.f32 %v2692, %v2935
        %2937 = vmatprep.mubr.f32.mxu0 0.0
        %2938 = vmatmul.mubr.f32.gmra.mrb[0].mxu0 %v2758
        %v2939 = vpop.f32.mrb[0].mxu0
        %v2940 = vadd.f32 %v2693, %v2939
        %v2941 = vpop.f32.mrb[0].mxu0
        %v2942 = vadd.f32 %v2694, %v2941
        %2943 = vmatprep.mubr.f32.mxu0 0.0
        %2944 = vmatmul.mubr.f32.gmra.mrb[0].mxu0 %v2760
        %v2945 = vpop.f32.mrb[0].mxu0
        %v2946 = vadd.f32 %v2695, %v2945
        %v2947 = vpop.f32.mrb[0].mxu0
        %v2948 = vadd.f32 %v2696, %v2947
        %2949 = vmatprep.mubr.f32.mxu0 0.0
        %2950 = vmatmul.mubr.f32.gmra.mrb[0].mxu0 %v2762
        %v2951 = vpop.f32.mrb[0].mxu0
        %v2952 = vadd.f32 %v2697, %v2951
        %v2953 = vpop.f32.mrb[0].mxu0
        %v2954 = vadd.f32 %v2698, %v2953
        %2955 = vmatprep.mubr.f32.mxu0 0.0
        %2956 = vmatmul.mubr.f32.gmra.mrb[0].mxu0 %v2764
        %v2957 = vpop.f32.mrb[0].mxu0
        %v2958 = vadd.f32 %v2699, %v2957
        %v2959 = vpop.f32.mrb[0].mxu0
        %v2960 = vadd.f32 %v2700, %v2959
        %2961 = vmatprep.mubr.f32.mxu0 0.0
        %2962 = vmatmul.mubr.f32.gmra.mrb[0].mxu0 %v2766
        %v2963 = vpop.f32.mrb[0].mxu0
        %v2964 = vadd.f32 %v2701, %v2963
        %v2965 = vpop.f32.mrb[0].mxu0
        %v2966 = vadd.f32 %v2702, %v2965
        %2967 = vmatprep.mubr.f32.mxu0 0.0
        %2968 = vmatmul.mubr.f32.gmra.mrb[0].mxu0 %v2768
        %v2969 = vpop.f32.mrb[0].mxu0
        %v2970 = vadd.f32 %v2703, %v2969
        %v2971 = vpop.f32.mrb[0].mxu0
        %v2972 = vadd.f32 %v2704, %v2971
        %2973 = vmatprep.mubr.f32.mxu0 0.0
        %2974 = vmatmul.mubr.f32.gmra.mrb[0].mxu0 %v2770
        %v2975 = vpop.f32.mrb[0].mxu0
        %v2976 = vadd.f32 %v2705, %v2975
        %v2977 = vpop.f32.mrb[0].mxu0
        %v2978 = vadd.f32 %v2706, %v2977
        %2979 = vmatprep.mubr.f32.mxu0 0.0
        %2980 = vmatmul.mubr.f32.gmra.mrb[0].mxu0 %v2772
        %v2981 = vpop.f32.mrb[0].mxu0
        %v2982 = vadd.f32 %v2707, %v2981
        %v2983 = vpop.f32.mrb[0].mxu0
        %v2984 = vadd.f32 %v2708, %v2983
        %2985 = vmatprep.mubr.f32.mxu0 0.0
        %2986 = vmatmul.mubr.f32.gmra.mrb[0].mxu0 %v2774
        %v2987 = vpop.f32.mrb[0].mxu0
        %v2988 = vadd.f32 %v2709, %v2987
        %v2989 = vpop.f32.mrb[0].mxu0
        %v2990 = vadd.f32 %v2710, %v2989
        %2991 = vmatprep.mubr.f32.mxu0 0.0
        %2992 = vmatmul.mubr.f32.gmra.mrb[0].mxu0 %v2776
        %v2993 = vpop.f32.mrb[0].mxu0
        %v2994 = vadd.f32 %v2711, %v2993
        %v2995 = vpop.f32.mrb[0].mxu0
        %v2996 = vadd.f32 %v2712, %v2995
        %2997 = vmatprep.mubr.f32.mxu0 0.0
        %2998 = vmatmul.mubr.f32.gmra.mrb[0].mxu0 %v2778
        %v2999 = vpop.f32.mrb[0].mxu0
        %v3000 = vadd.f32 %v2713, %v2999
        %v3001 = vpop.f32.mrb[0].mxu0
        %v3002 = vadd.f32 %v2714, %v3001
        %3003 = vmatprep.mubr.f32.mxu0 0.0
        %3004 = vmatmul.mubr.f32.gmra.mrb[0].mxu0 %v2780
        %v3005 = vpop.f32.mrb[0].mxu0
        %v3006 = vadd.f32 %v2715, %v3005
        %v3007 = vpop.f32.mrb[0].mxu0
        %v3008 = vadd.f32 %v2716, %v3007
        %3009 = vmatprep.mubr.f32.mxu0 0.0
        %3010 = vmatmul.mubr.f32.gmra.mrb[0].mxu0 %v2782
        %v3011 = vpop.f32.mrb[0].mxu0
        %v3012 = vadd.f32 %v2717, %v3011
        %v3013 = vpop.f32.mrb[0].mxu0
        %v3014 = vadd.f32 %v2718, %v3013
        %3015 = vmatprep.mubr.f32.mxu0 0.0
        %3016 = vmatmul.mubr.f32.gmra.mrb[0].mxu0 %v2784
        %v3017 = vpop.f32.mrb[0].mxu0
        %v3018 = vadd.f32 %v2719, %v3017
        %v3019 = vpop.f32.mrb[0].mxu0
        %v3020 = vadd.f32 %v2720, %v3019
        %3021 = vmatprep.mubr.f32.mxu0 0.0
        %3022 = vmatmul.mubr.f32.gmra.mrb[0].mxu0 %v2786
        %v3023 = vpop.f32.mrb[0].mxu0
        %v3024 = vadd.f32 %v2721, %v3023
        %v3025 = vpop.f32.mrb[0].mxu0
        %v3026 = vadd.f32 %v2722, %v3025
        %3027 = vmatprep.mubr.f32.mxu0 0.0
        %3028 = vmatmul.mubr.f32.gmra.mrb[0].mxu0 %v2788
        %v3029 = vpop.f32.mrb[0].mxu0
        %v3030 = vadd.f32 %v2723, %v3029
        %v3031 = vpop.f32.mrb[0].mxu0
        %v3032 = vadd.f32 %v2724, %v3031
        %3033 = vmatprep.mubr.f32.mxu0 0.0
        %3034 = vmatmul.mubr.f32.gmra.mrb[0].mxu0 %v2790
        %v3035 = vpop.f32.mrb[0].mxu0
        %v3036 = vadd.f32 %v2725, %v3035
        %v3037 = vpop.f32.mrb[0].mxu0
        %v3038 = vadd.f32 %v2726, %v3037
        %3039 = vmatprep.mubr.f32.mxu0 0.0
        %3040 = vmatmul.mubr.f32.gmra.mrb[0].mxu0 %v2792
        %v3041 = vpop.f32.mrb[0].mxu0
        %v3042 = vadd.f32 %v2727, %v3041
        %v3043 = vpop.f32.mrb[0].mxu0
        %v3044 = vadd.f32 %v2728, %v3043
        %3045 = vmatprep.mubr.f32.mxu0 0.0
        %3046 = vmatmul.mubr.f32.gmra.mrb[0].mxu0 %v2794
        %v3047 = vpop.f32.mrb[0].mxu0
        %v3048 = vadd.f32 %v2729, %v3047
        %v3049 = vpop.f32.mrb[0].mxu0
        %v3050 = vadd.f32 %v2730, %v3049
        %3051 = vmatprep.mubr.f32.mxu0 0.0
        %3052 = vmatmul.mubr.f32.gmra.mrb[0].mxu0 %v2796
        %v3053 = vpop.f32.mrb[0].mxu0
        %v3054 = vadd.f32 %v2731, %v3053
        %v3055 = vpop.f32.mrb[0].mxu0
        %v3056 = vadd.f32 %v2732, %v3055
        %3057 = vmatprep.mubr.f32.mxu0 0.0
        %3058 = vmatmul.mubr.f32.gmra.mrb[0].mxu0 %v2798
        %v3059 = vpop.f32.mrb[0].mxu0
        %v3060 = vadd.f32 %v2733, %v3059
        %v3061 = vpop.f32.mrb[0].mxu0
        %v3062 = vadd.f32 %v2734, %v3061
        %3063 = vdwg.mxu0
        %3064 = vset.pattern.permute.xlu0 1
        %3065 = vperm.xlu0 %3064, %v1203
        %v3066 = vpop.permute.xlu0 %3065
        %3068 = vset.pattern.permute.xlu0 1
        %3069 = vperm.xlu0 %3068, %v1206
        %v3070 = vpop.permute.xlu0 %3069
        %3072 = vset.pattern.permute.xlu0 1
        %3073 = vperm.xlu0 %3072, %v1211
        %v3074 = vpop.permute.xlu0 %3073
        %3076 = vset.pattern.permute.xlu0 1
        %3077 = vperm.xlu0 %3076, %v1214
        %v3078 = vpop.permute.xlu0 %3077
        %3080 = vset.pattern.permute.xlu0 1
        %3081 = vperm.xlu0 %3080, %v1219
        %v3082 = vpop.permute.xlu0 %3081
        %3084 = vset.pattern.permute.xlu0 1
        %3085 = vperm.xlu0 %3084, %v1222
        %v3086 = vpop.permute.xlu0 %3085
        %3088 = vset.pattern.permute.xlu0 1
        %3089 = vperm.xlu0 %3088, %v1227
        %v3090 = vpop.permute.xlu0 %3089
        %3092 = vset.pattern.permute.xlu0 1
        %3093 = vperm.xlu0 %3092, %v1230
        %v3094 = vpop.permute.xlu0 %3093
        %3096 = vset.pattern.permute.xlu0 1
        %3097 = vperm.xlu0 %3096, %v1235
        %v3098 = vpop.permute.xlu0 %3097
        %3100 = vset.pattern.permute.xlu0 1
        %3101 = vperm.xlu0 %3100, %v1238
        %v3102 = vpop.permute.xlu0 %3101
        %3104 = vset.pattern.permute.xlu0 1
        %3105 = vperm.xlu0 %3104, %v1243
        %v3106 = vpop.permute.xlu0 %3105
        %3108 = vset.pattern.permute.xlu0 1
        %3109 = vperm.xlu0 %3108, %v1246
        %v3110 = vpop.permute.xlu0 %3109
        %3112 = vset.pattern.permute.xlu0 1
        %3113 = vperm.xlu0 %3112, %v1251
        %v3114 = vpop.permute.xlu0 %3113
        %3116 = vset.pattern.permute.xlu0 1
        %3117 = vperm.xlu0 %3116, %v1254
        %v3118 = vpop.permute.xlu0 %3117
        %3120 = vset.pattern.permute.xlu0 1
        %3121 = vperm.xlu0 %3120, %v1259
        %v3122 = vpop.permute.xlu0 %3121
        %3124 = vset.pattern.permute.xlu0 1
        %3125 = vperm.xlu0 %3124, %v1262
        %v3126 = vpop.permute.xlu0 %3125
        %3128 = vset.pattern.permute.xlu0 1
        %3129 = vperm.xlu0 %3128, %v1267
        %v3130 = vpop.permute.xlu0 %3129
        %3132 = vset.pattern.permute.xlu0 1
        %3133 = vperm.xlu0 %3132, %v1270
        %v3134 = vpop.permute.xlu0 %3133
        %3136 = vset.pattern.permute.xlu0 1
        %3137 = vperm.xlu0 %3136, %v1275
        %v3138 = vpop.permute.xlu0 %3137
        %3140 = vset.pattern.permute.xlu0 1
        %3141 = vperm.xlu0 %3140, %v1278
        %v3142 = vpop.permute.xlu0 %3141
        %3144 = vset.pattern.permute.xlu0 1
        %3145 = vperm.xlu0 %3144, %v1283
        %v3146 = vpop.permute.xlu0 %3145
        %3148 = vset.pattern.permute.xlu0 1
        %3149 = vperm.xlu0 %3148, %v1286
        %v3150 = vpop.permute.xlu0 %3149
        %3152 = vset.pattern.permute.xlu0 1
        %3153 = vperm.xlu0 %3152, %v1291
        %v3154 = vpop.permute.xlu0 %3153
        %3156 = vset.pattern.permute.xlu0 1
        %3157 = vperm.xlu0 %3156, %v1294
        %v3158 = vpop.permute.xlu0 %3157
        %3160 = vset.pattern.permute.xlu0 1
        %3161 = vperm.xlu0 %3160, %v1299
        %v3162 = vpop.permute.xlu0 %3161
        %3164 = vset.pattern.permute.xlu0 1
        %3165 = vperm.xlu0 %3164, %v1302
        %v3166 = vpop.permute.xlu0 %3165
        %3168 = vset.pattern.permute.xlu0 1
        %3169 = vperm.xlu0 %3168, %v1307
        %v3170 = vpop.permute.xlu0 %3169
        %3172 = vset.pattern.permute.xlu0 1
        %3173 = vperm.xlu0 %3172, %v1310
        %v3174 = vpop.permute.xlu0 %3173
        %3176 = vset.pattern.permute.xlu0 1
        %3177 = vperm.xlu0 %3176, %v1315
        %v3178 = vpop.permute.xlu0 %3177
        %3180 = vset.pattern.permute.xlu0 1
        %3181 = vperm.xlu0 %3180, %v1318
        %v3182 = vpop.permute.xlu0 %3181
        %3184 = vset.pattern.permute.xlu0 1
        %3185 = vperm.xlu0 %3184, %v1323
        %v3186 = vpop.permute.xlu0 %3185
        %3188 = vset.pattern.permute.xlu0 1
        %3189 = vperm.xlu0 %3188, %v1326
        %v3190 = vpop.permute.xlu0 %3189
        %v3192 = vmul.f32 %v3066, %v1806
        %v3193 = vmul.f32 %v3066, %v1997
        %v3194 = vmul.f32 %v3070, %v1810
        %v3195 = vmul.f32 %v3070, %v2001
        %v3196 = vmul.f32 %v3074, %v1816
        %v3197 = vmul.f32 %v3074, %v2007
        %v3198 = vmul.f32 %v3078, %v1820
        %v3199 = vmul.f32 %v3078, %v2011
        %v3200 = vmul.f32 %v3082, %v1826
        %v3201 = vmul.f32 %v3082, %v2017
        %v3202 = vmul.f32 %v3086, %v1830
        %v3203 = vmul.f32 %v3086, %v2021
        %v3204 = vmul.f32 %v3090, %v1836
        %v3205 = vmul.f32 %v3090, %v2027
        %v3206 = vmul.f32 %v3094, %v1840
        %v3207 = vmul.f32 %v3094, %v2031
        %v3208 = vmul.f32 %v3098, %v1846
        %v3209 = vmul.f32 %v3098, %v2037
        %v3210 = vmul.f32 %v3102, %v1850
        %v3211 = vmul.f32 %v3102, %v2041
        %v3212 = vmul.f32 %v3106, %v1856
        %v3213 = vmul.f32 %v3106, %v2047
        %v3214 = vmul.f32 %v3110, %v1860
        %v3215 = vmul.f32 %v3110, %v2051
        %v3216 = vmul.f32 %v3114, %v1866
        %v3217 = vmul.f32 %v3114, %v2057
        %v3218 = vmul.f32 %v3118, %v1870
        %v3219 = vmul.f32 %v3118, %v2061
        %v3220 = vmul.f32 %v3122, %v1876
        %v3221 = vmul.f32 %v3122, %v2067
        %v3222 = vmul.f32 %v3126, %v1880
        %v3223 = vmul.f32 %v3126, %v2071
        %v3224 = vmul.f32 %v3130, %v1886
        %v3225 = vmul.f32 %v3130, %v2077
        %v3226 = vmul.f32 %v3134, %v1890
        %v3227 = vmul.f32 %v3134, %v2081
        %v3228 = vmul.f32 %v3138, %v1896
        %v3229 = vmul.f32 %v3138, %v2087
        %v3230 = vmul.f32 %v3142, %v1900
        %v3231 = vmul.f32 %v3142, %v2091
        %v3232 = vmul.f32 %v3146, %v1906
        %v3233 = vmul.f32 %v3146, %v2097
        %v3234 = vmul.f32 %v3150, %v1910
        %v3235 = vmul.f32 %v3150, %v2101
        %v3236 = vmul.f32 %v3154, %v1916
        %v3237 = vmul.f32 %v3154, %v2107
        %v3238 = vmul.f32 %v3158, %v1920
        %v3239 = vmul.f32 %v3158, %v2111
        %v3240 = vmul.f32 %v3162, %v1926
        %v3241 = vmul.f32 %v3162, %v2117
        %v3242 = vmul.f32 %v3166, %v1930
        %v3243 = vmul.f32 %v3166, %v2121
        %v3244 = vmul.f32 %v3170, %v1936
        %v3245 = vmul.f32 %v3170, %v2127
        %v3246 = vmul.f32 %v3174, %v1940
        %v3247 = vmul.f32 %v3174, %v2131
        %v3248 = vmul.f32 %v3178, %v1946
        %v3249 = vmul.f32 %v3178, %v2137
        %v3250 = vmul.f32 %v3182, %v1950
        %v3251 = vmul.f32 %v3182, %v2141
        %v3252 = vmul.f32 %v3186, %v1956
        %v3253 = vmul.f32 %v3186, %v2147
        %v3254 = vmul.f32 %v3190, %v1960
        %v3255 = vmul.f32 %v3190, %v2151
        %3320 = vrot.lane.b32.xlu0 %v3192, 96
        %v3321 = vpop.permute.xlu0 %3320
        %3322 = vrot.lane.b32.xlu0 %v3193, 96
        %v3323 = vpop.permute.xlu0 %3322
        %3324 = vrot.lane.b32.xlu0 %v3194, 96
        %v3325 = vpop.permute.xlu0 %3324
        %3326 = vrot.lane.b32.xlu0 %v3195, 96
        %v3327 = vpop.permute.xlu0 %3326
        %3328 = vrot.lane.b32.xlu0 %v3196, 96
        %v3329 = vpop.permute.xlu0 %3328
        %3330 = vrot.lane.b32.xlu0 %v3197, 96
        %v3331 = vpop.permute.xlu0 %3330
        %3332 = vrot.lane.b32.xlu0 %v3198, 96
        %v3333 = vpop.permute.xlu0 %3332
        %3334 = vrot.lane.b32.xlu0 %v3199, 96
        %v3335 = vpop.permute.xlu0 %3334
        %3336 = vrot.lane.b32.xlu0 %v3200, 96
        %v3337 = vpop.permute.xlu0 %3336
        %3338 = vrot.lane.b32.xlu0 %v3201, 96
        %v3339 = vpop.permute.xlu0 %3338
        %3340 = vrot.lane.b32.xlu0 %v3202, 96
        %v3341 = vpop.permute.xlu0 %3340
        %3342 = vrot.lane.b32.xlu0 %v3203, 96
        %v3343 = vpop.permute.xlu0 %3342
        %3344 = vrot.lane.b32.xlu0 %v3204, 96
        %v3345 = vpop.permute.xlu0 %3344
        %3346 = vrot.lane.b32.xlu0 %v3205, 96
        %v3347 = vpop.permute.xlu0 %3346
        %3348 = vrot.lane.b32.xlu0 %v3206, 96
        %v3349 = vpop.permute.xlu0 %3348
        %3350 = vrot.lane.b32.xlu0 %v3207, 96
        %v3351 = vpop.permute.xlu0 %3350
        %3352 = vrot.lane.b32.xlu0 %v3208, 96
        %v3353 = vpop.permute.xlu0 %3352
        %3354 = vrot.lane.b32.xlu0 %v3209, 96
        %v3355 = vpop.permute.xlu0 %3354
        %3356 = vrot.lane.b32.xlu0 %v3210, 96
        %v3357 = vpop.permute.xlu0 %3356
        %3358 = vrot.lane.b32.xlu0 %v3211, 96
        %v3359 = vpop.permute.xlu0 %3358
        %3360 = vrot.lane.b32.xlu0 %v3212, 96
        %v3361 = vpop.permute.xlu0 %3360
        %3362 = vrot.lane.b32.xlu0 %v3213, 96
        %v3363 = vpop.permute.xlu0 %3362
        %3364 = vrot.lane.b32.xlu0 %v3214, 96
        %v3365 = vpop.permute.xlu0 %3364
        %3366 = vrot.lane.b32.xlu0 %v3215, 96
        %v3367 = vpop.permute.xlu0 %3366
        %3368 = vrot.lane.b32.xlu0 %v3216, 96
        %v3369 = vpop.permute.xlu0 %3368
        %3370 = vrot.lane.b32.xlu0 %v3217, 96
        %v3371 = vpop.permute.xlu0 %3370
        %3372 = vrot.lane.b32.xlu0 %v3218, 96
        %v3373 = vpop.permute.xlu0 %3372
        %3374 = vrot.lane.b32.xlu0 %v3219, 96
        %v3375 = vpop.permute.xlu0 %3374
        %3376 = vrot.lane.b32.xlu0 %v3220, 96
        %v3377 = vpop.permute.xlu0 %3376
        %3378 = vrot.lane.b32.xlu0 %v3221, 96
        %v3379 = vpop.permute.xlu0 %3378
        %3380 = vrot.lane.b32.xlu0 %v3222, 96
        %v3381 = vpop.permute.xlu0 %3380
        %3382 = vrot.lane.b32.xlu0 %v3223, 96
        %v3383 = vpop.permute.xlu0 %3382
        %3384 = vrot.lane.b32.xlu0 %v3224, 96
        %v3385 = vpop.permute.xlu0 %3384
        %3386 = vrot.lane.b32.xlu0 %v3225, 96
        %v3387 = vpop.permute.xlu0 %3386
        %3388 = vrot.lane.b32.xlu0 %v3226, 96
        %v3389 = vpop.permute.xlu0 %3388
        %3390 = vrot.lane.b32.xlu0 %v3227, 96
        %v3391 = vpop.permute.xlu0 %3390
        %3392 = vrot.lane.b32.xlu0 %v3228, 96
        %v3393 = vpop.permute.xlu0 %3392
        %3394 = vrot.lane.b32.xlu0 %v3229, 96
        %v3395 = vpop.permute.xlu0 %3394
        %3396 = vrot.lane.b32.xlu0 %v3230, 96
        %v3397 = vpop.permute.xlu0 %3396
        %3398 = vrot.lane.b32.xlu0 %v3231, 96
        %v3399 = vpop.permute.xlu0 %3398
        %3400 = vrot.lane.b32.xlu0 %v3232, 96
        %v3401 = vpop.permute.xlu0 %3400
        %3402 = vrot.lane.b32.xlu0 %v3233, 96
        %v3403 = vpop.permute.xlu0 %3402
        %3404 = vrot.lane.b32.xlu0 %v3234, 96
        %v3405 = vpop.permute.xlu0 %3404
        %3406 = vrot.lane.b32.xlu0 %v3235, 96
        %v3407 = vpop.permute.xlu0 %3406
        %3408 = vrot.lane.b32.xlu0 %v3236, 96
        %v3409 = vpop.permute.xlu0 %3408
        %3410 = vrot.lane.b32.xlu0 %v3237, 96
        %v3411 = vpop.permute.xlu0 %3410
        %3412 = vrot.lane.b32.xlu0 %v3238, 96
        %v3413 = vpop.permute.xlu0 %3412
        %3414 = vrot.lane.b32.xlu0 %v3239, 96
        %v3415 = vpop.permute.xlu0 %3414
        %3416 = vrot.lane.b32.xlu0 %v3240, 96
        %v3417 = vpop.permute.xlu0 %3416
        %3418 = vrot.lane.b32.xlu0 %v3241, 96
        %v3419 = vpop.permute.xlu0 %3418
        %3420 = vrot.lane.b32.xlu0 %v3242, 96
        %v3421 = vpop.permute.xlu0 %3420
        %3422 = vrot.lane.b32.xlu0 %v3243, 96
        %v3423 = vpop.permute.xlu0 %3422
        %3424 = vrot.lane.b32.xlu0 %v3244, 96
        %v3425 = vpop.permute.xlu0 %3424
        %3426 = vrot.lane.b32.xlu0 %v3245, 96
        %v3427 = vpop.permute.xlu0 %3426
        %3428 = vrot.lane.b32.xlu0 %v3246, 96
        %v3429 = vpop.permute.xlu0 %3428
        %3430 = vrot.lane.b32.xlu0 %v3247, 96
        %v3431 = vpop.permute.xlu0 %3430
        %3432 = vrot.lane.b32.xlu0 %v3248, 96
        %v3433 = vpop.permute.xlu0 %3432
        %3434 = vrot.lane.b32.xlu0 %v3249, 96
        %v3435 = vpop.permute.xlu0 %3434
        %3436 = vrot.lane.b32.xlu0 %v3250, 96
        %v3437 = vpop.permute.xlu0 %3436
        %3438 = vrot.lane.b32.xlu0 %v3251, 96
        %v3439 = vpop.permute.xlu0 %3438
        %3440 = vrot.lane.b32.xlu0 %v3252, 96
        %v3441 = vpop.permute.xlu0 %3440
        %3442 = vrot.lane.b32.xlu0 %v3253, 96
        %v3443 = vpop.permute.xlu0 %3442
        %3444 = vrot.lane.b32.xlu0 %v3254, 96
        %v3445 = vpop.permute.xlu0 %3444
        %3446 = vrot.lane.b32.xlu0 %v3255, 96
        %v3447 = vpop.permute.xlu0 %3446
        %vm3448 = vcmask 785408
        %v3449 = vsel %vm3448, %v3321, %v3323
        %v3450 = vsel %vm3448, %v3325, %v3327
        %v3451 = vsel %vm3448, %v3329, %v3331
        %v3452 = vsel %vm3448, %v3333, %v3335
        %v3453 = vsel %vm3448, %v3337, %v3339
        %v3454 = vsel %vm3448, %v3341, %v3343
        %v3455 = vsel %vm3448, %v3345, %v3347
        %v3456 = vsel %vm3448, %v3349, %v3351
        %v3457 = vsel %vm3448, %v3353, %v3355
        %v3458 = vsel %vm3448, %v3357, %v3359
        %v3459 = vsel %vm3448, %v3361, %v3363
        %v3460 = vsel %vm3448, %v3365, %v3367
        %v3461 = vsel %vm3448, %v3369, %v3371
        %v3462 = vsel %vm3448, %v3373, %v3375
        %v3463 = vsel %vm3448, %v3377, %v3379
        %v3464 = vsel %vm3448, %v3381, %v3383
        %v3465 = vsel %vm3448, %v3385, %v3387
        %v3466 = vsel %vm3448, %v3389, %v3391
        %v3467 = vsel %vm3448, %v3393, %v3395
        %v3468 = vsel %vm3448, %v3397, %v3399
        %v3469 = vsel %vm3448, %v3401, %v3403
        %v3470 = vsel %vm3448, %v3405, %v3407
        %v3471 = vsel %vm3448, %v3409, %v3411
        %v3472 = vsel %vm3448, %v3413, %v3415
        %v3473 = vsel %vm3448, %v3417, %v3419
        %v3474 = vsel %vm3448, %v3421, %v3423
        %v3475 = vsel %vm3448, %v3425, %v3427
        %v3476 = vsel %vm3448, %v3429, %v3431
        %v3477 = vsel %vm3448, %v3433, %v3435
        %v3478 = vsel %vm3448, %v3437, %v3439
        %v3479 = vsel %vm3448, %v3441, %v3443
        %v3480 = vsel %vm3448, %v3445, %v3447
        %v3545 = vadd.f32 %v2874, %v3449
        %v3546 = vadd.f32 %v2876, %v3323
        %v3547 = vadd.f32 %v2880, %v3450
        %v3548 = vadd.f32 %v2882, %v3327
        %v3549 = vadd.f32 %v2886, %v3451
        %v3550 = vadd.f32 %v2888, %v3331
        %v3551 = vadd.f32 %v2892, %v3452
        %v3552 = vadd.f32 %v2894, %v3335
        %v3553 = vadd.f32 %v2898, %v3453
        %v3554 = vadd.f32 %v2900, %v3339
        %v3555 = vadd.f32 %v2904, %v3454
        %v3556 = vadd.f32 %v2906, %v3343
        %v3557 = vadd.f32 %v2910, %v3455
        %v3558 = vadd.f32 %v2912, %v3347
        %v3559 = vadd.f32 %v2916, %v3456
        %v3560 = vadd.f32 %v2918, %v3351
        %v3561 = vadd.f32 %v2922, %v3457
        %v3562 = vadd.f32 %v2924, %v3355
        %v3563 = vadd.f32 %v2928, %v3458
        %v3564 = vadd.f32 %v2930, %v3359
        %v3565 = vadd.f32 %v2934, %v3459
        %v3566 = vadd.f32 %v2936, %v3363
        %v3567 = vadd.f32 %v2940, %v3460
        %v3568 = vadd.f32 %v2942, %v3367
        %v3569 = vadd.f32 %v2946, %v3461
        %v3570 = vadd.f32 %v2948, %v3371
        %v3571 = vadd.f32 %v2952, %v3462
        %v3572 = vadd.f32 %v2954, %v3375
        %v3573 = vadd.f32 %v2958, %v3463
        %v3574 = vadd.f32 %v2960, %v3379
        %v3575 = vadd.f32 %v2964, %v3464
        %v3576 = vadd.f32 %v2966, %v3383
        %v3577 = vadd.f32 %v2970, %v3465
        %v3578 = vadd.f32 %v2972, %v3387
        %v3579 = vadd.f32 %v2976, %v3466
        %v3580 = vadd.f32 %v2978, %v3391
        %v3581 = vadd.f32 %v2982, %v3467
        %v3582 = vadd.f32 %v2984, %v3395
        %v3583 = vadd.f32 %v2988, %v3468
        %v3584 = vadd.f32 %v2990, %v3399
        %v3585 = vadd.f32 %v2994, %v3469
        %v3586 = vadd.f32 %v2996, %v3403
        %v3587 = vadd.f32 %v3000, %v3470
        %v3588 = vadd.f32 %v3002, %v3407
        %v3589 = vadd.f32 %v3006, %v3471
        %v3590 = vadd.f32 %v3008, %v3411
        %v3591 = vadd.f32 %v3012, %v3472
        %v3592 = vadd.f32 %v3014, %v3415
        %v3593 = vadd.f32 %v3018, %v3473
        %v3594 = vadd.f32 %v3020, %v3419
        %v3595 = vadd.f32 %v3024, %v3474
        %v3596 = vadd.f32 %v3026, %v3423
        %v3597 = vadd.f32 %v3030, %v3475
        %v3598 = vadd.f32 %v3032, %v3427
        %v3599 = vadd.f32 %v3036, %v3476
        %v3600 = vadd.f32 %v3038, %v3431
        %v3601 = vadd.f32 %v3042, %v3477
        %v3602 = vadd.f32 %v3044, %v3435
        %v3603 = vadd.f32 %v3048, %v3478
        %v3604 = vadd.f32 %v3050, %v3439
        %v3605 = vadd.f32 %v3054, %v3479
        %v3606 = vadd.f32 %v3056, %v3443
        %v3607 = vadd.f32 %v3060, %v3480
        %v3608 = vadd.f32 %v3062, %v3447
        %3609 = vset.pattern.permute.xlu0 2
        %3610 = vperm.xlu0 %3609, %v1203
        %v3611 = vpop.permute.xlu0 %3610
        %3613 = vset.pattern.permute.xlu0 2
        %3614 = vperm.xlu0 %3613, %v1206
        %v3615 = vpop.permute.xlu0 %3614
        %3617 = vset.pattern.permute.xlu0 2
        %3618 = vperm.xlu0 %3617, %v1211
        %v3619 = vpop.permute.xlu0 %3618
        %3621 = vset.pattern.permute.xlu0 2
        %3622 = vperm.xlu0 %3621, %v1214
        %v3623 = vpop.permute.xlu0 %3622
        %3625 = vset.pattern.permute.xlu0 2
        %3626 = vperm.xlu0 %3625, %v1219
        %v3627 = vpop.permute.xlu0 %3626
        %3629 = vset.pattern.permute.xlu0 2
        %3630 = vperm.xlu0 %3629, %v1222
        %v3631 = vpop.permute.xlu0 %3630
        %3633 = vset.pattern.permute.xlu0 2
        %3634 = vperm.xlu0 %3633, %v1227
        %v3635 = vpop.permute.xlu0 %3634
        %3637 = vset.pattern.permute.xlu0 2
        %3638 = vperm.xlu0 %3637, %v1230
        %v3639 = vpop.permute.xlu0 %3638
        %3641 = vset.pattern.permute.xlu0 2
        %3642 = vperm.xlu0 %3641, %v1235
        %v3643 = vpop.permute.xlu0 %3642
        %3645 = vset.pattern.permute.xlu0 2
        %3646 = vperm.xlu0 %3645, %v1238
        %v3647 = vpop.permute.xlu0 %3646
        %3649 = vset.pattern.permute.xlu0 2
        %3650 = vperm.xlu0 %3649, %v1243
        %v3651 = vpop.permute.xlu0 %3650
        %3653 = vset.pattern.permute.xlu0 2
        %3654 = vperm.xlu0 %3653, %v1246
        %v3655 = vpop.permute.xlu0 %3654
        %3657 = vset.pattern.permute.xlu0 2
        %3658 = vperm.xlu0 %3657, %v1251
        %v3659 = vpop.permute.xlu0 %3658
        %3661 = vset.pattern.permute.xlu0 2
        %3662 = vperm.xlu0 %3661, %v1254
        %v3663 = vpop.permute.xlu0 %3662
        %3665 = vset.pattern.permute.xlu0 2
        %3666 = vperm.xlu0 %3665, %v1259
        %v3667 = vpop.permute.xlu0 %3666
        %3669 = vset.pattern.permute.xlu0 2
        %3670 = vperm.xlu0 %3669, %v1262
        %v3671 = vpop.permute.xlu0 %3670
        %3673 = vset.pattern.permute.xlu0 2
        %3674 = vperm.xlu0 %3673, %v1267
        %v3675 = vpop.permute.xlu0 %3674
        %3677 = vset.pattern.permute.xlu0 2
        %3678 = vperm.xlu0 %3677, %v1270
        %v3679 = vpop.permute.xlu0 %3678
        %3681 = vset.pattern.permute.xlu0 2
        %3682 = vperm.xlu0 %3681, %v1275
        %v3683 = vpop.permute.xlu0 %3682
        %3685 = vset.pattern.permute.xlu0 2
        %3686 = vperm.xlu0 %3685, %v1278
        %v3687 = vpop.permute.xlu0 %3686
        %3689 = vset.pattern.permute.xlu0 2
        %3690 = vperm.xlu0 %3689, %v1283
        %v3691 = vpop.permute.xlu0 %3690
        %3693 = vset.pattern.permute.xlu0 2
        %3694 = vperm.xlu0 %3693, %v1286
        %v3695 = vpop.permute.xlu0 %3694
        %3697 = vset.pattern.permute.xlu0 2
        %3698 = vperm.xlu0 %3697, %v1291
        %v3699 = vpop.permute.xlu0 %3698
        %3701 = vset.pattern.permute.xlu0 2
        %3702 = vperm.xlu0 %3701, %v1294
        %v3703 = vpop.permute.xlu0 %3702
        %3705 = vset.pattern.permute.xlu0 2
        %3706 = vperm.xlu0 %3705, %v1299
        %v3707 = vpop.permute.xlu0 %3706
        %3709 = vset.pattern.permute.xlu0 2
        %3710 = vperm.xlu0 %3709, %v1302
        %v3711 = vpop.permute.xlu0 %3710
        %3713 = vset.pattern.permute.xlu0 2
        %3714 = vperm.xlu0 %3713, %v1307
        %v3715 = vpop.permute.xlu0 %3714
        %3717 = vset.pattern.permute.xlu0 2
        %3718 = vperm.xlu0 %3717, %v1310
        %v3719 = vpop.permute.xlu0 %3718
        %3721 = vset.pattern.permute.xlu0 2
        %3722 = vperm.xlu0 %3721, %v1315
        %v3723 = vpop.permute.xlu0 %3722
        %3725 = vset.pattern.permute.xlu0 2
        %3726 = vperm.xlu0 %3725, %v1318
        %v3727 = vpop.permute.xlu0 %3726
        %3729 = vset.pattern.permute.xlu0 2
        %3730 = vperm.xlu0 %3729, %v1323
        %v3731 = vpop.permute.xlu0 %3730
        %3733 = vset.pattern.permute.xlu0 2
        %3734 = vperm.xlu0 %3733, %v1326
        %v3735 = vpop.permute.xlu0 %3734
        %v3737 = vmul.f32 %v3611, %v1997
        %v3738 = vmul.f32 %v3611, %v1999
        %v3739 = vmul.f32 %v3615, %v2001
        %v3740 = vmul.f32 %v3615, %v2003
        %v3741 = vmul.f32 %v3619, %v2007
        %v3742 = vmul.f32 %v3619, %v2009
        %v3743 = vmul.f32 %v3623, %v2011
        %v3744 = vmul.f32 %v3623, %v2013
        %v3745 = vmul.f32 %v3627, %v2017
        %v3746 = vmul.f32 %v3627, %v2019
        %v3747 = vmul.f32 %v3631, %v2021
        %v3748 = vmul.f32 %v3631, %v2023
        %v3749 = vmul.f32 %v3635, %v2027
        %v3750 = vmul.f32 %v3635, %v2029
        %v3751 = vmul.f32 %v3639, %v2031
        %v3752 = vmul.f32 %v3639, %v2033
        %v3753 = vmul.f32 %v3643, %v2037
        %v3754 = vmul.f32 %v3643, %v2039
        %v3755 = vmul.f32 %v3647, %v2041
        %v3756 = vmul.f32 %v3647, %v2043
        %v3757 = vmul.f32 %v3651, %v2047
        %v3758 = vmul.f32 %v3651, %v2049
        %v3759 = vmul.f32 %v3655, %v2051
        %v3760 = vmul.f32 %v3655, %v2053
        %v3761 = vmul.f32 %v3659, %v2057
        %v3762 = vmul.f32 %v3659, %v2059
        %v3763 = vmul.f32 %v3663, %v2061
        %v3764 = vmul.f32 %v3663, %v2063
        %v3765 = vmul.f32 %v3667, %v2067
        %v3766 = vmul.f32 %v3667, %v2069
        %v3767 = vmul.f32 %v3671, %v2071
        %v3768 = vmul.f32 %v3671, %v2073
        %v3769 = vmul.f32 %v3675, %v2077
        %v3770 = vmul.f32 %v3675, %v2079
        %v3771 = vmul.f32 %v3679, %v2081
        %v3772 = vmul.f32 %v3679, %v2083
        %v3773 = vmul.f32 %v3683, %v2087
        %v3774 = vmul.f32 %v3683, %v2089
        %v3775 = vmul.f32 %v3687, %v2091
        %v3776 = vmul.f32 %v3687, %v2093
        %v3777 = vmul.f32 %v3691, %v2097
        %v3778 = vmul.f32 %v3691, %v2099
        %v3779 = vmul.f32 %v3695, %v2101
        %v3780 = vmul.f32 %v3695, %v2103
        %v3781 = vmul.f32 %v3699, %v2107
        %v3782 = vmul.f32 %v3699, %v2109
        %v3783 = vmul.f32 %v3703, %v2111
        %v3784 = vmul.f32 %v3703, %v2113
        %v3785 = vmul.f32 %v3707, %v2117
        %v3786 = vmul.f32 %v3707, %v2119
        %v3787 = vmul.f32 %v3711, %v2121
        %v3788 = vmul.f32 %v3711, %v2123
        %v3789 = vmul.f32 %v3715, %v2127
        %v3790 = vmul.f32 %v3715, %v2129
        %v3791 = vmul.f32 %v3719, %v2131
        %v3792 = vmul.f32 %v3719, %v2133
        %v3793 = vmul.f32 %v3723, %v2137
        %v3794 = vmul.f32 %v3723, %v2139
        %v3795 = vmul.f32 %v3727, %v2141
        %v3796 = vmul.f32 %v3727, %v2143
        %v3797 = vmul.f32 %v3731, %v2147
        %v3798 = vmul.f32 %v3731, %v2149
        %v3799 = vmul.f32 %v3735, %v2151
        %v3800 = vmul.f32 %v3735, %v2153
        %3865 = vrot.lane.b32.xlu0 %v3737, 64
        %v3866 = vpop.permute.xlu0 %3865
        %3867 = vrot.lane.b32.xlu0 %v3738, 64
        %v3868 = vpop.permute.xlu0 %3867
        %3869 = vrot.lane.b32.xlu0 %v3739, 64
        %v3870 = vpop.permute.xlu0 %3869
        %3871 = vrot.lane.b32.xlu0 %v3740, 64
        %v3872 = vpop.permute.xlu0 %3871
        %3873 = vrot.lane.b32.xlu0 %v3741, 64
        %v3874 = vpop.permute.xlu0 %3873
        %3875 = vrot.lane.b32.xlu0 %v3742, 64
        %v3876 = vpop.permute.xlu0 %3875
        %3877 = vrot.lane.b32.xlu0 %v3743, 64
        %v3878 = vpop.permute.xlu0 %3877
        %3879 = vrot.lane.b32.xlu0 %v3744, 64
        %v3880 = vpop.permute.xlu0 %3879
        %3881 = vrot.lane.b32.xlu0 %v3745, 64
        %v3882 = vpop.permute.xlu0 %3881
        %3883 = vrot.lane.b32.xlu0 %v3746, 64
        %v3884 = vpop.permute.xlu0 %3883
        %3885 = vrot.lane.b32.xlu0 %v3747, 64
        %v3886 = vpop.permute.xlu0 %3885
        %3887 = vrot.lane.b32.xlu0 %v3748, 64
        %v3888 = vpop.permute.xlu0 %3887
        %3889 = vrot.lane.b32.xlu0 %v3749, 64
        %v3890 = vpop.permute.xlu0 %3889
        %3891 = vrot.lane.b32.xlu0 %v3750, 64
        %v3892 = vpop.permute.xlu0 %3891
        %3893 = vrot.lane.b32.xlu0 %v3751, 64
        %v3894 = vpop.permute.xlu0 %3893
        %3895 = vrot.lane.b32.xlu0 %v3752, 64
        %v3896 = vpop.permute.xlu0 %3895
        %3897 = vrot.lane.b32.xlu0 %v3753, 64
        %v3898 = vpop.permute.xlu0 %3897
        %3899 = vrot.lane.b32.xlu0 %v3754, 64
        %v3900 = vpop.permute.xlu0 %3899
        %3901 = vrot.lane.b32.xlu0 %v3755, 64
        %v3902 = vpop.permute.xlu0 %3901
        %3903 = vrot.lane.b32.xlu0 %v3756, 64
        %v3904 = vpop.permute.xlu0 %3903
        %3905 = vrot.lane.b32.xlu0 %v3757, 64
        %v3906 = vpop.permute.xlu0 %3905
        %3907 = vrot.lane.b32.xlu0 %v3758, 64
        %v3908 = vpop.permute.xlu0 %3907
        %3909 = vrot.lane.b32.xlu0 %v3759, 64
        %v3910 = vpop.permute.xlu0 %3909
        %3911 = vrot.lane.b32.xlu0 %v3760, 64
        %v3912 = vpop.permute.xlu0 %3911
        %3913 = vrot.lane.b32.xlu0 %v3761, 64
        %v3914 = vpop.permute.xlu0 %3913
        %3915 = vrot.lane.b32.xlu0 %v3762, 64
        %v3916 = vpop.permute.xlu0 %3915
        %3917 = vrot.lane.b32.xlu0 %v3763, 64
        %v3918 = vpop.permute.xlu0 %3917
        %3919 = vrot.lane.b32.xlu0 %v3764, 64
        %v3920 = vpop.permute.xlu0 %3919
        %3921 = vrot.lane.b32.xlu0 %v3765, 64
        %v3922 = vpop.permute.xlu0 %3921
        %3923 = vrot.lane.b32.xlu0 %v3766, 64
        %v3924 = vpop.permute.xlu0 %3923
        %3925 = vrot.lane.b32.xlu0 %v3767, 64
        %v3926 = vpop.permute.xlu0 %3925
        %3927 = vrot.lane.b32.xlu0 %v3768, 64
        %v3928 = vpop.permute.xlu0 %3927
        %3929 = vrot.lane.b32.xlu0 %v3769, 64
        %v3930 = vpop.permute.xlu0 %3929
        %3931 = vrot.lane.b32.xlu0 %v3770, 64
        %v3932 = vpop.permute.xlu0 %3931
        %3933 = vrot.lane.b32.xlu0 %v3771, 64
        %v3934 = vpop.permute.xlu0 %3933
        %3935 = vrot.lane.b32.xlu0 %v3772, 64
        %v3936 = vpop.permute.xlu0 %3935
        %3937 = vrot.lane.b32.xlu0 %v3773, 64
        %v3938 = vpop.permute.xlu0 %3937
        %3939 = vrot.lane.b32.xlu0 %v3774, 64
        %v3940 = vpop.permute.xlu0 %3939
        %3941 = vrot.lane.b32.xlu0 %v3775, 64
        %v3942 = vpop.permute.xlu0 %3941
        %3943 = vrot.lane.b32.xlu0 %v3776, 64
        %v3944 = vpop.permute.xlu0 %3943
        %3945 = vrot.lane.b32.xlu0 %v3777, 64
        %v3946 = vpop.permute.xlu0 %3945
        %3947 = vrot.lane.b32.xlu0 %v3778, 64
        %v3948 = vpop.permute.xlu0 %3947
        %3949 = vrot.lane.b32.xlu0 %v3779, 64
        %v3950 = vpop.permute.xlu0 %3949
        %3951 = vrot.lane.b32.xlu0 %v3780, 64
        %v3952 = vpop.permute.xlu0 %3951
        %3953 = vrot.lane.b32.xlu0 %v3781, 64
        %v3954 = vpop.permute.xlu0 %3953
        %3955 = vrot.lane.b32.xlu0 %v3782, 64
        %v3956 = vpop.permute.xlu0 %3955
        %3957 = vrot.lane.b32.xlu0 %v3783, 64
        %v3958 = vpop.permute.xlu0 %3957
        %3959 = vrot.lane.b32.xlu0 %v3784, 64
        %v3960 = vpop.permute.xlu0 %3959
        %3961 = vrot.lane.b32.xlu0 %v3785, 64
        %v3962 = vpop.permute.xlu0 %3961
        %3963 = vrot.lane.b32.xlu0 %v3786, 64
        %v3964 = vpop.permute.xlu0 %3963
        %3965 = vrot.lane.b32.xlu0 %v3787, 64
        %v3966 = vpop.permute.xlu0 %3965
        %3967 = vrot.lane.b32.xlu0 %v3788, 64
        %v3968 = vpop.permute.xlu0 %3967
        %3969 = vrot.lane.b32.xlu0 %v3789, 64
        %v3970 = vpop.permute.xlu0 %3969
        %3971 = vrot.lane.b32.xlu0 %v3790, 64
        %v3972 = vpop.permute.xlu0 %3971
        %3973 = vrot.lane.b32.xlu0 %v3791, 64
        %v3974 = vpop.permute.xlu0 %3973
        %3975 = vrot.lane.b32.xlu0 %v3792, 64
        %v3976 = vpop.permute.xlu0 %3975
        %3977 = vrot.lane.b32.xlu0 %v3793, 64
        %v3978 = vpop.permute.xlu0 %3977
        %3979 = vrot.lane.b32.xlu0 %v3794, 64
        %v3980 = vpop.permute.xlu0 %3979
        %3981 = vrot.lane.b32.xlu0 %v3795, 64
        %v3982 = vpop.permute.xlu0 %3981
        %3983 = vrot.lane.b32.xlu0 %v3796, 64
        %v3984 = vpop.permute.xlu0 %3983
        %3985 = vrot.lane.b32.xlu0 %v3797, 64
        %v3986 = vpop.permute.xlu0 %3985
        %3987 = vrot.lane.b32.xlu0 %v3798, 64
        %v3988 = vpop.permute.xlu0 %3987
        %3989 = vrot.lane.b32.xlu0 %v3799, 64
        %v3990 = vpop.permute.xlu0 %3989
        %3991 = vrot.lane.b32.xlu0 %v3800, 64
        %v3992 = vpop.permute.xlu0 %3991
        %vm3993 = vcmask 523264
        %v3994 = vsel %vm3993, %v3866, %v3868
        %v3995 = vsel %vm3993, %v3870, %v3872
        %v3996 = vsel %vm3993, %v3874, %v3876
        %v3997 = vsel %vm3993, %v3878, %v3880
        %v3998 = vsel %vm3993, %v3882, %v3884
        %v3999 = vsel %vm3993, %v3886, %v3888
        %v4000 = vsel %vm3993, %v3890, %v3892
        %v4001 = vsel %vm3993, %v3894, %v3896
        %v4002 = vsel %vm3993, %v3898, %v3900
        %v4003 = vsel %vm3993, %v3902, %v3904
        %v4004 = vsel %vm3993, %v3906, %v3908
        %v4005 = vsel %vm3993, %v3910, %v3912
        %v4006 = vsel %vm3993, %v3914, %v3916
        %v4007 = vsel %vm3993, %v3918, %v3920
        %v4008 = vsel %vm3993, %v3922, %v3924
        %v4009 = vsel %vm3993, %v3926, %v3928
        %v4010 = vsel %vm3993, %v3930, %v3932
        %v4011 = vsel %vm3993, %v3934, %v3936
        %v4012 = vsel %vm3993, %v3938, %v3940
        %v4013 = vsel %vm3993, %v3942, %v3944
        %v4014 = vsel %vm3993, %v3946, %v3948
        %v4015 = vsel %vm3993, %v3950, %v3952
        %v4016 = vsel %vm3993, %v3954, %v3956
        %v4017 = vsel %vm3993, %v3958, %v3960
        %v4018 = vsel %vm3993, %v3962, %v3964
        %v4019 = vsel %vm3993, %v3966, %v3968
        %v4020 = vsel %vm3993, %v3970, %v3972
        %v4021 = vsel %vm3993, %v3974, %v3976
        %v4022 = vsel %vm3993, %v3978, %v3980
        %v4023 = vsel %vm3993, %v3982, %v3984
        %v4024 = vsel %vm3993, %v3986, %v3988
        %v4025 = vsel %vm3993, %v3990, %v3992
        %v4090 = vadd.f32 %v3545, %v3994
        %v4091 = vadd.f32 %v3546, %v3868
        %v4092 = vadd.f32 %v3547, %v3995
        %v4093 = vadd.f32 %v3548, %v3872
        %v4094 = vadd.f32 %v3549, %v3996
        %v4095 = vadd.f32 %v3550, %v3876
        %v4096 = vadd.f32 %v3551, %v3997
        %v4097 = vadd.f32 %v3552, %v3880
        %v4098 = vadd.f32 %v3553, %v3998
        %v4099 = vadd.f32 %v3554, %v3884
        %v4100 = vadd.f32 %v3555, %v3999
        %v4101 = vadd.f32 %v3556, %v3888
        %v4102 = vadd.f32 %v3557, %v4000
        %v4103 = vadd.f32 %v3558, %v3892
        %v4104 = vadd.f32 %v3559, %v4001
        %v4105 = vadd.f32 %v3560, %v3896
        %v4106 = vadd.f32 %v3561, %v4002
        %v4107 = vadd.f32 %v3562, %v3900
        %v4108 = vadd.f32 %v3563, %v4003
        %v4109 = vadd.f32 %v3564, %v3904
        %v4110 = vadd.f32 %v3565, %v4004
        %v4111 = vadd.f32 %v3566, %v3908
        %v4112 = vadd.f32 %v3567, %v4005
        %v4113 = vadd.f32 %v3568, %v3912
        %v4114 = vadd.f32 %v3569, %v4006
        %v4115 = vadd.f32 %v3570, %v3916
        %v4116 = vadd.f32 %v3571, %v4007
        %v4117 = vadd.f32 %v3572, %v3920
        %v4118 = vadd.f32 %v3573, %v4008
        %v4119 = vadd.f32 %v3574, %v3924
        %v4120 = vadd.f32 %v3575, %v4009
        %v4121 = vadd.f32 %v3576, %v3928
        %v4122 = vadd.f32 %v3577, %v4010
        %v4123 = vadd.f32 %v3578, %v3932
        %v4124 = vadd.f32 %v3579, %v4011
        %v4125 = vadd.f32 %v3580, %v3936
        %v4126 = vadd.f32 %v3581, %v4012
        %v4127 = vadd.f32 %v3582, %v3940
        %v4128 = vadd.f32 %v3583, %v4013
        %v4129 = vadd.f32 %v3584, %v3944
        %v4130 = vadd.f32 %v3585, %v4014
        %v4131 = vadd.f32 %v3586, %v3948
        %v4132 = vadd.f32 %v3587, %v4015
        %v4133 = vadd.f32 %v3588, %v3952
        %v4134 = vadd.f32 %v3589, %v4016
        %v4135 = vadd.f32 %v3590, %v3956
        %v4136 = vadd.f32 %v3591, %v4017
        %v4137 = vadd.f32 %v3592, %v3960
        %v4138 = vadd.f32 %v3593, %v4018
        %v4139 = vadd.f32 %v3594, %v3964
        %v4140 = vadd.f32 %v3595, %v4019
        %v4141 = vadd.f32 %v3596, %v3968
        %v4142 = vadd.f32 %v3597, %v4020
        %v4143 = vadd.f32 %v3598, %v3972
        %v4144 = vadd.f32 %v3599, %v4021
        %v4145 = vadd.f32 %v3600, %v3976
        %v4146 = vadd.f32 %v3601, %v4022
        %v4147 = vadd.f32 %v3602, %v3980
        %v4148 = vadd.f32 %v3603, %v4023
        %v4149 = vadd.f32 %v3604, %v3984
        %v4150 = vadd.f32 %v3605, %v4024
        %v4151 = vadd.f32 %v3606, %v3988
        %v4152 = vadd.f32 %v3607, %v4025
        %v4153 = vadd.f32 %v3608, %v3992
        %4154 = vset.pattern.permute.xlu0 3
        %4155 = vperm.xlu0 %4154, %v1203
        %v4156 = vpop.permute.xlu0 %4155
        %4158 = vset.pattern.permute.xlu0 3
        %4159 = vperm.xlu0 %4158, %v1206
        %v4160 = vpop.permute.xlu0 %4159
        %4162 = vset.pattern.permute.xlu0 3
        %4163 = vperm.xlu0 %4162, %v1211
        %v4164 = vpop.permute.xlu0 %4163
        %4166 = vset.pattern.permute.xlu0 3
        %4167 = vperm.xlu0 %4166, %v1214
        %v4168 = vpop.permute.xlu0 %4167
        %4170 = vset.pattern.permute.xlu0 3
        %4171 = vperm.xlu0 %4170, %v1219
        %v4172 = vpop.permute.xlu0 %4171
        %4174 = vset.pattern.permute.xlu0 3
        %4175 = vperm.xlu0 %4174, %v1222
        %v4176 = vpop.permute.xlu0 %4175
        %4178 = vset.pattern.permute.xlu0 3
        %4179 = vperm.xlu0 %4178, %v1227
        %v4180 = vpop.permute.xlu0 %4179
        %4182 = vset.pattern.permute.xlu0 3
        %4183 = vperm.xlu0 %4182, %v1230
        %v4184 = vpop.permute.xlu0 %4183
        %4186 = vset.pattern.permute.xlu0 3
        %4187 = vperm.xlu0 %4186, %v1235
        %v4188 = vpop.permute.xlu0 %4187
        %4190 = vset.pattern.permute.xlu0 3
        %4191 = vperm.xlu0 %4190, %v1238
        %v4192 = vpop.permute.xlu0 %4191
        %4194 = vset.pattern.permute.xlu0 3
        %4195 = vperm.xlu0 %4194, %v1243
        %v4196 = vpop.permute.xlu0 %4195
        %4198 = vset.pattern.permute.xlu0 3
        %4199 = vperm.xlu0 %4198, %v1246
        %v4200 = vpop.permute.xlu0 %4199
        %4202 = vset.pattern.permute.xlu0 3
        %4203 = vperm.xlu0 %4202, %v1251
        %v4204 = vpop.permute.xlu0 %4203
        %4206 = vset.pattern.permute.xlu0 3
        %4207 = vperm.xlu0 %4206, %v1254
        %v4208 = vpop.permute.xlu0 %4207
        %4210 = vset.pattern.permute.xlu0 3
        %4211 = vperm.xlu0 %4210, %v1259
        %v4212 = vpop.permute.xlu0 %4211
        %4214 = vset.pattern.permute.xlu0 3
        %4215 = vperm.xlu0 %4214, %v1262
        %v4216 = vpop.permute.xlu0 %4215
        %4218 = vset.pattern.permute.xlu0 3
        %4219 = vperm.xlu0 %4218, %v1267
        %v4220 = vpop.permute.xlu0 %4219
        %4222 = vset.pattern.permute.xlu0 3
        %4223 = vperm.xlu0 %4222, %v1270
        %v4224 = vpop.permute.xlu0 %4223
        %4226 = vset.pattern.permute.xlu0 3
        %4227 = vperm.xlu0 %4226, %v1275
        %v4228 = vpop.permute.xlu0 %4227
        %4230 = vset.pattern.permute.xlu0 3
        %4231 = vperm.xlu0 %4230, %v1278
        %v4232 = vpop.permute.xlu0 %4231
        %4234 = vset.pattern.permute.xlu0 3
        %4235 = vperm.xlu0 %4234, %v1283
        %v4236 = vpop.permute.xlu0 %4235
        %4238 = vset.pattern.permute.xlu0 3
        %4239 = vperm.xlu0 %4238, %v1286
        %v4240 = vpop.permute.xlu0 %4239
        %4242 = vset.pattern.permute.xlu0 3
        %4243 = vperm.xlu0 %4242, %v1291
        %v4244 = vpop.permute.xlu0 %4243
        %4246 = vset.pattern.permute.xlu0 3
        %4247 = vperm.xlu0 %4246, %v1294
        %v4248 = vpop.permute.xlu0 %4247
        %4250 = vset.pattern.permute.xlu0 3
        %4251 = vperm.xlu0 %4250, %v1299
        %v4252 = vpop.permute.xlu0 %4251
        %4254 = vset.pattern.permute.xlu0 3
        %4255 = vperm.xlu0 %4254, %v1302
        %v4256 = vpop.permute.xlu0 %4255
        %4258 = vset.pattern.permute.xlu0 3
        %4259 = vperm.xlu0 %4258, %v1307
        %v4260 = vpop.permute.xlu0 %4259
        %4262 = vset.pattern.permute.xlu0 3
        %4263 = vperm.xlu0 %4262, %v1310
        %v4264 = vpop.permute.xlu0 %4263
        %4266 = vset.pattern.permute.xlu0 3
        %4267 = vperm.xlu0 %4266, %v1315
        %v4268 = vpop.permute.xlu0 %4267
        %4270 = vset.pattern.permute.xlu0 3
        %4271 = vperm.xlu0 %4270, %v1318
        %v4272 = vpop.permute.xlu0 %4271
        %4274 = vset.pattern.permute.xlu0 3
        %4275 = vperm.xlu0 %4274, %v1323
        %v4276 = vpop.permute.xlu0 %4275
        %4278 = vset.pattern.permute.xlu0 3
        %4279 = vperm.xlu0 %4278, %v1326
        %v4280 = vpop.permute.xlu0 %4279
        %v4282 = vmul.f32 %v4156, %v1999
        %v4283 = vmul.f32 %v4156, %v2190
        %v4284 = vmul.f32 %v4160, %v2003
        %v4285 = vmul.f32 %v4160, %v2194
        %v4286 = vmul.f32 %v4164, %v2009
        %v4287 = vmul.f32 %v4164, %v2200
        %v4288 = vmul.f32 %v4168, %v2013
        %v4289 = vmul.f32 %v4168, %v2204
        %v4290 = vmul.f32 %v4172, %v2019
        %v4291 = vmul.f32 %v4172, %v2210
        %v4292 = vmul.f32 %v4176, %v2023
        %v4293 = vmul.f32 %v4176, %v2214
        %v4294 = vmul.f32 %v4180, %v2029
        %v4295 = vmul.f32 %v4180, %v2220
        %v4296 = vmul.f32 %v4184, %v2033
        %v4297 = vmul.f32 %v4184, %v2224
        %v4298 = vmul.f32 %v4188, %v2039
        %v4299 = vmul.f32 %v4188, %v2230
        %v4300 = vmul.f32 %v4192, %v2043
        %v4301 = vmul.f32 %v4192, %v2234
        %v4302 = vmul.f32 %v4196, %v2049
        %v4303 = vmul.f32 %v4196, %v2240
        %v4304 = vmul.f32 %v4200, %v2053
        %v4305 = vmul.f32 %v4200, %v2244
        %v4306 = vmul.f32 %v4204, %v2059
        %v4307 = vmul.f32 %v4204, %v2250
        %v4308 = vmul.f32 %v4208, %v2063
        %v4309 = vmul.f32 %v4208, %v2254
        %v4310 = vmul.f32 %v4212, %v2069
        %v4311 = vmul.f32 %v4212, %v2260
        %v4312 = vmul.f32 %v4216, %v2073
        %v4313 = vmul.f32 %v4216, %v2264
        %v4314 = vmul.f32 %v4220, %v2079
        %v4315 = vmul.f32 %v4220, %v2270
        %v4316 = vmul.f32 %v4224, %v2083
        %v4317 = vmul.f32 %v4224, %v2274
        %v4318 = vmul.f32 %v4228, %v2089
        %v4319 = vmul.f32 %v4228, %v2280
        %v4320 = vmul.f32 %v4232, %v2093
        %v4321 = vmul.f32 %v4232, %v2284
        %v4322 = vmul.f32 %v4236, %v2099
        %v4323 = vmul.f32 %v4236, %v2290
        %v4324 = vmul.f32 %v4240, %v2103
        %v4325 = vmul.f32 %v4240, %v2294
        %v4326 = vmul.f32 %v4244, %v2109
        %v4327 = vmul.f32 %v4244, %v2300
        %v4328 = vmul.f32 %v4248, %v2113
        %v4329 = vmul.f32 %v4248, %v2304
        %v4330 = vmul.f32 %v4252, %v2119
        %v4331 = vmul.f32 %v4252, %v2310
        %v4332 = vmul.f32 %v4256, %v2123
        %v4333 = vmul.f32 %v4256, %v2314
        %v4334 = vmul.f32 %v4260, %v2129
        %v4335 = vmul.f32 %v4260, %v2320
        %v4336 = vmul.f32 %v4264, %v2133
        %v4337 = vmul.f32 %v4264, %v2324
        %v4338 = vmul.f32 %v4268, %v2139
        %v4339 = vmul.f32 %v4268, %v2330
        %v4340 = vmul.f32 %v4272, %v2143
        %v4341 = vmul.f32 %v4272, %v2334
        %v4342 = vmul.f32 %v4276, %v2149
        %v4343 = vmul.f32 %v4276, %v2340
        %v4344 = vmul.f32 %v4280, %v2153
        %v4345 = vmul.f32 %v4280, %v2344
        %4410 = vrot.lane.b32.xlu0 %v4282, 32
        %v4411 = vpop.permute.xlu0 %4410
        %4412 = vrot.lane.b32.xlu0 %v4283, 32
        %v4413 = vpop.permute.xlu0 %4412
        %4414 = vrot.lane.b32.xlu0 %v4284, 32
        %v4415 = vpop.permute.xlu0 %4414
        %4416 = vrot.lane.b32.xlu0 %v4285, 32
        %v4417 = vpop.permute.xlu0 %4416
        %4418 = vrot.lane.b32.xlu0 %v4286, 32
        %v4419 = vpop.permute.xlu0 %4418
        %4420 = vrot.lane.b32.xlu0 %v4287, 32
        %v4421 = vpop.permute.xlu0 %4420
        %4422 = vrot.lane.b32.xlu0 %v4288, 32
        %v4423 = vpop.permute.xlu0 %4422
        %4424 = vrot.lane.b32.xlu0 %v4289, 32
        %v4425 = vpop.permute.xlu0 %4424
        %4426 = vrot.lane.b32.xlu0 %v4290, 32
        %v4427 = vpop.permute.xlu0 %4426
        %4428 = vrot.lane.b32.xlu0 %v4291, 32
        %v4429 = vpop.permute.xlu0 %4428
        %4430 = vrot.lane.b32.xlu0 %v4292, 32
        %v4431 = vpop.permute.xlu0 %4430
        %4432 = vrot.lane.b32.xlu0 %v4293, 32
        %v4433 = vpop.permute.xlu0 %4432
        %4434 = vrot.lane.b32.xlu0 %v4294, 32
        %v4435 = vpop.permute.xlu0 %4434
        %4436 = vrot.lane.b32.xlu0 %v4295, 32
        %v4437 = vpop.permute.xlu0 %4436
        %4438 = vrot.lane.b32.xlu0 %v4296, 32
        %v4439 = vpop.permute.xlu0 %4438
        %4440 = vrot.lane.b32.xlu0 %v4297, 32
        %v4441 = vpop.permute.xlu0 %4440
        %4442 = vrot.lane.b32.xlu0 %v4298, 32
        %v4443 = vpop.permute.xlu0 %4442
        %4444 = vrot.lane.b32.xlu0 %v4299, 32
        %v4445 = vpop.permute.xlu0 %4444
        %4446 = vrot.lane.b32.xlu0 %v4300, 32
        %v4447 = vpop.permute.xlu0 %4446
        %4448 = vrot.lane.b32.xlu0 %v4301, 32
        %v4449 = vpop.permute.xlu0 %4448
        %4450 = vrot.lane.b32.xlu0 %v4302, 32
        %v4451 = vpop.permute.xlu0 %4450
        %4452 = vrot.lane.b32.xlu0 %v4303, 32
        %v4453 = vpop.permute.xlu0 %4452
        %4454 = vrot.lane.b32.xlu0 %v4304, 32
        %v4455 = vpop.permute.xlu0 %4454
        %4456 = vrot.lane.b32.xlu0 %v4305, 32
        %v4457 = vpop.permute.xlu0 %4456
        %4458 = vrot.lane.b32.xlu0 %v4306, 32
        %v4459 = vpop.permute.xlu0 %4458
        %4460 = vrot.lane.b32.xlu0 %v4307, 32
        %v4461 = vpop.permute.xlu0 %4460
        %4462 = vrot.lane.b32.xlu0 %v4308, 32
        %v4463 = vpop.permute.xlu0 %4462
        %4464 = vrot.lane.b32.xlu0 %v4309, 32
        %v4465 = vpop.permute.xlu0 %4464
        %4466 = vrot.lane.b32.xlu0 %v4310, 32
        %v4467 = vpop.permute.xlu0 %4466
        %4468 = vrot.lane.b32.xlu0 %v4311, 32
        %v4469 = vpop.permute.xlu0 %4468
        %4470 = vrot.lane.b32.xlu0 %v4312, 32
        %v4471 = vpop.permute.xlu0 %4470
        %4472 = vrot.lane.b32.xlu0 %v4313, 32
        %v4473 = vpop.permute.xlu0 %4472
        %4474 = vrot.lane.b32.xlu0 %v4314, 32
        %v4475 = vpop.permute.xlu0 %4474
        %4476 = vrot.lane.b32.xlu0 %v4315, 32
        %v4477 = vpop.permute.xlu0 %4476
        %4478 = vrot.lane.b32.xlu0 %v4316, 32
        %v4479 = vpop.permute.xlu0 %4478
        %4480 = vrot.lane.b32.xlu0 %v4317, 32
        %v4481 = vpop.permute.xlu0 %4480
        %4482 = vrot.lane.b32.xlu0 %v4318, 32
        %v4483 = vpop.permute.xlu0 %4482
        %4484 = vrot.lane.b32.xlu0 %v4319, 32
        %v4485 = vpop.permute.xlu0 %4484
        %4486 = vrot.lane.b32.xlu0 %v4320, 32
        %v4487 = vpop.permute.xlu0 %4486
        %4488 = vrot.lane.b32.xlu0 %v4321, 32
        %v4489 = vpop.permute.xlu0 %4488
        %4490 = vrot.lane.b32.xlu0 %v4322, 32
        %v4491 = vpop.permute.xlu0 %4490
        %4492 = vrot.lane.b32.xlu0 %v4323, 32
        %v4493 = vpop.permute.xlu0 %4492
        %4494 = vrot.lane.b32.xlu0 %v4324, 32
        %v4495 = vpop.permute.xlu0 %4494
        %4496 = vrot.lane.b32.xlu0 %v4325, 32
        %v4497 = vpop.permute.xlu0 %4496
        %4498 = vrot.lane.b32.xlu0 %v4326, 32
        %v4499 = vpop.permute.xlu0 %4498
        %4500 = vrot.lane.b32.xlu0 %v4327, 32
        %v4501 = vpop.permute.xlu0 %4500
        %4502 = vrot.lane.b32.xlu0 %v4328, 32
        %v4503 = vpop.permute.xlu0 %4502
        %4504 = vrot.lane.b32.xlu0 %v4329, 32
        %v4505 = vpop.permute.xlu0 %4504
        %4506 = vrot.lane.b32.xlu0 %v4330, 32
        %v4507 = vpop.permute.xlu0 %4506
        %4508 = vrot.lane.b32.xlu0 %v4331, 32
        %v4509 = vpop.permute.xlu0 %4508
        %4510 = vrot.lane.b32.xlu0 %v4332, 32
        %v4511 = vpop.permute.xlu0 %4510
        %4512 = vrot.lane.b32.xlu0 %v4333, 32
        %v4513 = vpop.permute.xlu0 %4512
        %4514 = vrot.lane.b32.xlu0 %v4334, 32
        %v4515 = vpop.permute.xlu0 %4514
        %4516 = vrot.lane.b32.xlu0 %v4335, 32
        %v4517 = vpop.permute.xlu0 %4516
        %4518 = vrot.lane.b32.xlu0 %v4336, 32
        %v4519 = vpop.permute.xlu0 %4518
        %4520 = vrot.lane.b32.xlu0 %v4337, 32
        %v4521 = vpop.permute.xlu0 %4520
        %4522 = vrot.lane.b32.xlu0 %v4338, 32
        %v4523 = vpop.permute.xlu0 %4522
        %4524 = vrot.lane.b32.xlu0 %v4339, 32
        %v4525 = vpop.permute.xlu0 %4524
        %4526 = vrot.lane.b32.xlu0 %v4340, 32
        %v4527 = vpop.permute.xlu0 %4526
        %4528 = vrot.lane.b32.xlu0 %v4341, 32
        %v4529 = vpop.permute.xlu0 %4528
        %4530 = vrot.lane.b32.xlu0 %v4342, 32
        %v4531 = vpop.permute.xlu0 %4530
        %4532 = vrot.lane.b32.xlu0 %v4343, 32
        %v4533 = vpop.permute.xlu0 %4532
        %4534 = vrot.lane.b32.xlu0 %v4344, 32
        %v4535 = vpop.permute.xlu0 %4534
        %4536 = vrot.lane.b32.xlu0 %v4345, 32
        %v4537 = vpop.permute.xlu0 %4536
        %v4538 = vsel %vm695, %v4411, %v4413
        %v4539 = vsel %vm695, %v4415, %v4417
        %v4540 = vsel %vm695, %v4419, %v4421
        %v4541 = vsel %vm695, %v4423, %v4425
        %v4542 = vsel %vm695, %v4427, %v4429
        %v4543 = vsel %vm695, %v4431, %v4433
        %v4544 = vsel %vm695, %v4435, %v4437
        %v4545 = vsel %vm695, %v4439, %v4441
        %v4546 = vsel %vm695, %v4443, %v4445
        %v4547 = vsel %vm695, %v4447, %v4449
        %v4548 = vsel %vm695, %v4451, %v4453
        %v4549 = vsel %vm695, %v4455, %v4457
        %v4550 = vsel %vm695, %v4459, %v4461
        %v4551 = vsel %vm695, %v4463, %v4465
        %v4552 = vsel %vm695, %v4467, %v4469
        %v4553 = vsel %vm695, %v4471, %v4473
        %v4554 = vsel %vm695, %v4475, %v4477
        %v4555 = vsel %vm695, %v4479, %v4481
        %v4556 = vsel %vm695, %v4483, %v4485
        %v4557 = vsel %vm695, %v4487, %v4489
        %v4558 = vsel %vm695, %v4491, %v4493
        %v4559 = vsel %vm695, %v4495, %v4497
        %v4560 = vsel %vm695, %v4499, %v4501
        %v4561 = vsel %vm695, %v4503, %v4505
        %v4562 = vsel %vm695, %v4507, %v4509
        %v4563 = vsel %vm695, %v4511, %v4513
        %v4564 = vsel %vm695, %v4515, %v4517
        %v4565 = vsel %vm695, %v4519, %v4521
        %v4566 = vsel %vm695, %v4523, %v4525
        %v4567 = vsel %vm695, %v4527, %v4529
        %v4568 = vsel %vm695, %v4531, %v4533
        %v4569 = vsel %vm695, %v4535, %v4537
        %v4634 = vadd.f32 %v4090, %v4538
        %v4635 = vadd.f32 %v4091, %v4413
        %v4636 = vadd.f32 %v4092, %v4539
        %v4637 = vadd.f32 %v4093, %v4417
        %v4638 = vadd.f32 %v4094, %v4540
        %v4639 = vadd.f32 %v4095, %v4421
        %v4640 = vadd.f32 %v4096, %v4541
        %v4641 = vadd.f32 %v4097, %v4425
        %v4642 = vadd.f32 %v4098, %v4542
        %v4643 = vadd.f32 %v4099, %v4429
        %v4644 = vadd.f32 %v4100, %v4543
        %v4645 = vadd.f32 %v4101, %v4433
        %v4646 = vadd.f32 %v4102, %v4544
        %v4647 = vadd.f32 %v4103, %v4437
        %v4648 = vadd.f32 %v4104, %v4545
        %v4649 = vadd.f32 %v4105, %v4441
        %v4650 = vadd.f32 %v4106, %v4546
        %v4651 = vadd.f32 %v4107, %v4445
        %v4652 = vadd.f32 %v4108, %v4547
        %v4653 = vadd.f32 %v4109, %v4449
        %v4654 = vadd.f32 %v4110, %v4548
        %v4655 = vadd.f32 %v4111, %v4453
        %v4656 = vadd.f32 %v4112, %v4549
        %v4657 = vadd.f32 %v4113, %v4457
        %v4658 = vadd.f32 %v4114, %v4550
        %v4659 = vadd.f32 %v4115, %v4461
        %v4660 = vadd.f32 %v4116, %v4551
        %v4661 = vadd.f32 %v4117, %v4465
        %v4662 = vadd.f32 %v4118, %v4552
        %v4663 = vadd.f32 %v4119, %v4469
        %v4664 = vadd.f32 %v4120, %v4553
        %v4665 = vadd.f32 %v4121, %v4473
        %v4666 = vadd.f32 %v4122, %v4554
        %v4667 = vadd.f32 %v4123, %v4477
        %v4668 = vadd.f32 %v4124, %v4555
        %v4669 = vadd.f32 %v4125, %v4481
        %v4670 = vadd.f32 %v4126, %v4556
        %v4671 = vadd.f32 %v4127, %v4485
        %v4672 = vadd.f32 %v4128, %v4557
        %v4673 = vadd.f32 %v4129, %v4489
        %v4674 = vadd.f32 %v4130, %v4558
        %v4675 = vadd.f32 %v4131, %v4493
        %v4676 = vadd.f32 %v4132, %v4559
        %v4677 = vadd.f32 %v4133, %v4497
        %v4678 = vadd.f32 %v4134, %v4560
        %v4679 = vadd.f32 %v4135, %v4501
        %v4680 = vadd.f32 %v4136, %v4561
        %v4681 = vadd.f32 %v4137, %v4505
        %v4682 = vadd.f32 %v4138, %v4562
        %v4683 = vadd.f32 %v4139, %v4509
        %v4684 = vadd.f32 %v4140, %v4563
        %v4685 = vadd.f32 %v4141, %v4513
        %v4686 = vadd.f32 %v4142, %v4564
        %v4687 = vadd.f32 %v4143, %v4517
        %v4688 = vadd.f32 %v4144, %v4565
        %v4689 = vadd.f32 %v4145, %v4521
        %v4690 = vadd.f32 %v4146, %v4566
        %v4691 = vadd.f32 %v4147, %v4525
        %v4692 = vadd.f32 %v4148, %v4567
        %v4693 = vadd.f32 %v4149, %v4529
        %v4694 = vadd.f32 %v4150, %v4568
        %v4695 = vadd.f32 %v4151, %v4533
        %v4696 = vadd.f32 %v4152, %v4569
        %v4697 = vadd.f32 %v4153, %v4537
        %4698 = vset.pattern.permute.xlu0 4
        %4699 = vperm.xlu0 %4698, %v1203
        %v4700 = vpop.permute.xlu0 %4699
        %4702 = vset.pattern.permute.xlu0 4
        %4703 = vperm.xlu0 %4702, %v1206
        %v4704 = vpop.permute.xlu0 %4703
        %4706 = vset.pattern.permute.xlu0 4
        %4707 = vperm.xlu0 %4706, %v1211
        %v4708 = vpop.permute.xlu0 %4707
        %4710 = vset.pattern.permute.xlu0 4
        %4711 = vperm.xlu0 %4710, %v1214
        %v4712 = vpop.permute.xlu0 %4711
        %4714 = vset.pattern.permute.xlu0 4
        %4715 = vperm.xlu0 %4714, %v1219
        %v4716 = vpop.permute.xlu0 %4715
        %4718 = vset.pattern.permute.xlu0 4
        %4719 = vperm.xlu0 %4718, %v1222
        %v4720 = vpop.permute.xlu0 %4719
        %4722 = vset.pattern.permute.xlu0 4
        %4723 = vperm.xlu0 %4722, %v1227
        %v4724 = vpop.permute.xlu0 %4723
        %4726 = vset.pattern.permute.xlu0 4
        %4727 = vperm.xlu0 %4726, %v1230
        %v4728 = vpop.permute.xlu0 %4727
        %4730 = vset.pattern.permute.xlu0 4
        %4731 = vperm.xlu0 %4730, %v1235
        %v4732 = vpop.permute.xlu0 %4731
        %4734 = vset.pattern.permute.xlu0 4
        %4735 = vperm.xlu0 %4734, %v1238
        %v4736 = vpop.permute.xlu0 %4735
        %4738 = vset.pattern.permute.xlu0 4
        %4739 = vperm.xlu0 %4738, %v1243
        %v4740 = vpop.permute.xlu0 %4739
        %4742 = vset.pattern.permute.xlu0 4
        %4743 = vperm.xlu0 %4742, %v1246
        %v4744 = vpop.permute.xlu0 %4743
        %4746 = vset.pattern.permute.xlu0 4
        %4747 = vperm.xlu0 %4746, %v1251
        %v4748 = vpop.permute.xlu0 %4747
        %4750 = vset.pattern.permute.xlu0 4
        %4751 = vperm.xlu0 %4750, %v1254
        %v4752 = vpop.permute.xlu0 %4751
        %4754 = vset.pattern.permute.xlu0 4
        %4755 = vperm.xlu0 %4754, %v1259
        %v4756 = vpop.permute.xlu0 %4755
        %4758 = vset.pattern.permute.xlu0 4
        %4759 = vperm.xlu0 %4758, %v1262
        %v4760 = vpop.permute.xlu0 %4759
        %4762 = vset.pattern.permute.xlu0 4
        %4763 = vperm.xlu0 %4762, %v1267
        %v4764 = vpop.permute.xlu0 %4763
        %4766 = vset.pattern.permute.xlu0 4
        %4767 = vperm.xlu0 %4766, %v1270
        %v4768 = vpop.permute.xlu0 %4767
        %4770 = vset.pattern.permute.xlu0 4
        %4771 = vperm.xlu0 %4770, %v1275
        %v4772 = vpop.permute.xlu0 %4771
        %4774 = vset.pattern.permute.xlu0 4
        %4775 = vperm.xlu0 %4774, %v1278
        %v4776 = vpop.permute.xlu0 %4775
        %4778 = vset.pattern.permute.xlu0 4
        %4779 = vperm.xlu0 %4778, %v1283
        %v4780 = vpop.permute.xlu0 %4779
        %4782 = vset.pattern.permute.xlu0 4
        %4783 = vperm.xlu0 %4782, %v1286
        %v4784 = vpop.permute.xlu0 %4783
        %4786 = vset.pattern.permute.xlu0 4
        %4787 = vperm.xlu0 %4786, %v1291
        %v4788 = vpop.permute.xlu0 %4787
        %4790 = vset.pattern.permute.xlu0 4
        %4791 = vperm.xlu0 %4790, %v1294
        %v4792 = vpop.permute.xlu0 %4791
        %4794 = vset.pattern.permute.xlu0 4
        %4795 = vperm.xlu0 %4794, %v1299
        %v4796 = vpop.permute.xlu0 %4795
        %4798 = vset.pattern.permute.xlu0 4
        %4799 = vperm.xlu0 %4798, %v1302
        %v4800 = vpop.permute.xlu0 %4799
        %4802 = vset.pattern.permute.xlu0 4
        %4803 = vperm.xlu0 %4802, %v1307
        %v4804 = vpop.permute.xlu0 %4803
        %4806 = vset.pattern.permute.xlu0 4
        %4807 = vperm.xlu0 %4806, %v1310
        %v4808 = vpop.permute.xlu0 %4807
        %4810 = vset.pattern.permute.xlu0 4
        %4811 = vperm.xlu0 %4810, %v1315
        %v4812 = vpop.permute.xlu0 %4811
        %4814 = vset.pattern.permute.xlu0 4
        %4815 = vperm.xlu0 %4814, %v1318
        %v4816 = vpop.permute.xlu0 %4815
        %4818 = vset.pattern.permute.xlu0 4
        %4819 = vperm.xlu0 %4818, %v1323
        %v4820 = vpop.permute.xlu0 %4819
        %4822 = vset.pattern.permute.xlu0 4
        %4823 = vperm.xlu0 %4822, %v1326
        %v4824 = vpop.permute.xlu0 %4823
        %v4826 = vmul.f32 %v4700, %v2192
        %v4827 = vmul.f32 %v4700, %v2383
        %v4828 = vmul.f32 %v4704, %v2196
        %v4829 = vmul.f32 %v4704, %v2386
        %v4830 = vmul.f32 %v4708, %v2202
        %v4831 = vmul.f32 %v4708, %v2391
        %v4832 = vmul.f32 %v4712, %v2206
        %v4833 = vmul.f32 %v4712, %v2394
        %v4834 = vmul.f32 %v4716, %v2212
        %v4835 = vmul.f32 %v4716, %v2399
        %v4836 = vmul.f32 %v4720, %v2216
        %v4837 = vmul.f32 %v4720, %v2402
        %v4838 = vmul.f32 %v4724, %v2222
        %v4839 = vmul.f32 %v4724, %v2407
        %v4840 = vmul.f32 %v4728, %v2226
        %v4841 = vmul.f32 %v4728, %v2410
        %v4842 = vmul.f32 %v4732, %v2232
        %v4843 = vmul.f32 %v4732, %v2415
        %v4844 = vmul.f32 %v4736, %v2236
        %v4845 = vmul.f32 %v4736, %v2418
        %v4846 = vmul.f32 %v4740, %v2242
        %v4847 = vmul.f32 %v4740, %v2423
        %v4848 = vmul.f32 %v4744, %v2246
        %v4849 = vmul.f32 %v4744, %v2426
        %v4850 = vmul.f32 %v4748, %v2252
        %v4851 = vmul.f32 %v4748, %v2431
        %v4852 = vmul.f32 %v4752, %v2256
        %v4853 = vmul.f32 %v4752, %v2434
        %v4854 = vmul.f32 %v4756, %v2262
        %v4855 = vmul.f32 %v4756, %v2439
        %v4856 = vmul.f32 %v4760, %v2266
        %v4857 = vmul.f32 %v4760, %v2442
        %v4858 = vmul.f32 %v4764, %v2272
        %v4859 = vmul.f32 %v4764, %v2447
        %v4860 = vmul.f32 %v4768, %v2276
        %v4861 = vmul.f32 %v4768, %v2450
        %v4862 = vmul.f32 %v4772, %v2282
        %v4863 = vmul.f32 %v4772, %v2455
        %v4864 = vmul.f32 %v4776, %v2286
        %v4865 = vmul.f32 %v4776, %v2458
        %v4866 = vmul.f32 %v4780, %v2292
        %v4867 = vmul.f32 %v4780, %v2463
        %v4868 = vmul.f32 %v4784, %v2296
        %v4869 = vmul.f32 %v4784, %v2466
        %v4870 = vmul.f32 %v4788, %v2302
        %v4871 = vmul.f32 %v4788, %v2471
        %v4872 = vmul.f32 %v4792, %v2306
        %v4873 = vmul.f32 %v4792, %v2474
        %v4874 = vmul.f32 %v4796, %v2312
        %v4875 = vmul.f32 %v4796, %v2479
        %v4876 = vmul.f32 %v4800, %v2316
        %v4877 = vmul.f32 %v4800, %v2482
        %v4878 = vmul.f32 %v4804, %v2322
        %v4879 = vmul.f32 %v4804, %v2487
        %v4880 = vmul.f32 %v4808, %v2326
        %v4881 = vmul.f32 %v4808, %v2490
        %v4882 = vmul.f32 %v4812, %v2332
        %v4883 = vmul.f32 %v4812, %v2495
        %v4884 = vmul.f32 %v4816, %v2336
        %v4885 = vmul.f32 %v4816, %v2498
        %v4886 = vmul.f32 %v4820, %v2342
        %v4887 = vmul.f32 %v4820, %v2503
        %v4888 = vmul.f32 %v4824, %v2346
        %v4889 = vmul.f32 %v4824, %v2506
        %v4890 = vadd.f32 %v4634, %v4826
        %v4891 = vadd.f32 %v4635, %v4827
        %v4892 = vadd.f32 %v4636, %v4828
        %v4893 = vadd.f32 %v4637, %v4829
        %v4894 = vadd.f32 %v4638, %v4830
        %v4895 = vadd.f32 %v4639, %v4831
        %v4896 = vadd.f32 %v4640, %v4832
        %v4897 = vadd.f32 %v4641, %v4833
        %v4898 = vadd.f32 %v4642, %v4834
        %v4899 = vadd.f32 %v4643, %v4835
        %v4900 = vadd.f32 %v4644, %v4836
        %v4901 = vadd.f32 %v4645, %v4837
        %v4902 = vadd.f32 %v4646, %v4838
        %v4903 = vadd.f32 %v4647, %v4839
        %v4904 = vadd.f32 %v4648, %v4840
        %v4905 = vadd.f32 %v4649, %v4841
        %v4906 = vadd.f32 %v4650, %v4842
        %v4907 = vadd.f32 %v4651, %v4843
        %v4908 = vadd.f32 %v4652, %v4844
        %v4909 = vadd.f32 %v4653, %v4845
        %v4910 = vadd.f32 %v4654, %v4846
        %v4911 = vadd.f32 %v4655, %v4847
        %v4912 = vadd.f32 %v4656, %v4848
        %v4913 = vadd.f32 %v4657, %v4849
        %v4914 = vadd.f32 %v4658, %v4850
        %v4915 = vadd.f32 %v4659, %v4851
        %v4916 = vadd.f32 %v4660, %v4852
        %v4917 = vadd.f32 %v4661, %v4853
        %v4918 = vadd.f32 %v4662, %v4854
        %v4919 = vadd.f32 %v4663, %v4855
        %v4920 = vadd.f32 %v4664, %v4856
        %v4921 = vadd.f32 %v4665, %v4857
        %v4922 = vadd.f32 %v4666, %v4858
        %v4923 = vadd.f32 %v4667, %v4859
        %v4924 = vadd.f32 %v4668, %v4860
        %v4925 = vadd.f32 %v4669, %v4861
        %v4926 = vadd.f32 %v4670, %v4862
        %v4927 = vadd.f32 %v4671, %v4863
        %v4928 = vadd.f32 %v4672, %v4864
        %v4929 = vadd.f32 %v4673, %v4865
        %v4930 = vadd.f32 %v4674, %v4866
        %v4931 = vadd.f32 %v4675, %v4867
        %v4932 = vadd.f32 %v4676, %v4868
        %v4933 = vadd.f32 %v4677, %v4869
        %v4934 = vadd.f32 %v4678, %v4870
        %v4935 = vadd.f32 %v4679, %v4871
        %v4936 = vadd.f32 %v4680, %v4872
        %v4937 = vadd.f32 %v4681, %v4873
        %v4938 = vadd.f32 %v4682, %v4874
        %v4939 = vadd.f32 %v4683, %v4875
        %v4940 = vadd.f32 %v4684, %v4876
        %v4941 = vadd.f32 %v4685, %v4877
        %v4942 = vadd.f32 %v4686, %v4878
        %v4943 = vadd.f32 %v4687, %v4879
        %v4944 = vadd.f32 %v4688, %v4880
        %v4945 = vadd.f32 %v4689, %v4881
        %v4946 = vadd.f32 %v4690, %v4882
        %v4947 = vadd.f32 %v4691, %v4883
        %v4948 = vadd.f32 %v4692, %v4884
        %v4949 = vadd.f32 %v4693, %v4885
        %v4950 = vadd.f32 %v4694, %v4886
        %v4951 = vadd.f32 %v4695, %v4887
        %v4952 = vadd.f32 %v4696, %v4888
        %v4953 = vadd.f32 %v4697, %v4889
        %vm4954 = vcmp.gt.f32.partialorder %v4890, 0.0
        %vm4955 = vcmp.gt.f32.partialorder %v4891, 0.0
        %vm4956 = vcmp.gt.f32.partialorder %v4892, 0.0
        %vm4957 = vcmp.gt.f32.partialorder %v4893, 0.0
        %vm4958 = vcmp.gt.f32.partialorder %v4894, 0.0
        %vm4959 = vcmp.gt.f32.partialorder %v4895, 0.0
        %vm4960 = vcmp.gt.f32.partialorder %v4896, 0.0
        %vm4961 = vcmp.gt.f32.partialorder %v4897, 0.0
        %vm4962 = vcmp.gt.f32.partialorder %v4898, 0.0
        %vm4963 = vcmp.gt.f32.partialorder %v4899, 0.0
        %vm4964 = vcmp.gt.f32.partialorder %v4900, 0.0
        %vm4965 = vcmp.gt.f32.partialorder %v4901, 0.0
        %vm4966 = vcmp.gt.f32.partialorder %v4902, 0.0
        %vm4967 = vcmp.gt.f32.partialorder %v4903, 0.0
        %vm4968 = vcmp.gt.f32.partialorder %v4904, 0.0
        %vm4969 = vcmp.gt.f32.partialorder %v4905, 0.0
        %vm4970 = vcmp.gt.f32.partialorder %v4906, 0.0
        %vm4971 = vcmp.gt.f32.partialorder %v4907, 0.0
        %vm4972 = vcmp.gt.f32.partialorder %v4908, 0.0
        %vm4973 = vcmp.gt.f32.partialorder %v4909, 0.0
        %vm4974 = vcmp.gt.f32.partialorder %v4910, 0.0
        %vm4975 = vcmp.gt.f32.partialorder %v4911, 0.0
        %vm4976 = vcmp.gt.f32.partialorder %v4912, 0.0
        %vm4977 = vcmp.gt.f32.partialorder %v4913, 0.0
        %vm4978 = vcmp.gt.f32.partialorder %v4914, 0.0
        %vm4979 = vcmp.gt.f32.partialorder %v4915, 0.0
        %vm4980 = vcmp.gt.f32.partialorder %v4916, 0.0
        %vm4981 = vcmp.gt.f32.partialorder %v4917, 0.0
        %vm4982 = vcmp.gt.f32.partialorder %v4918, 0.0
        %vm4983 = vcmp.gt.f32.partialorder %v4919, 0.0
        %vm4984 = vcmp.gt.f32.partialorder %v4920, 0.0
        %vm4985 = vcmp.gt.f32.partialorder %v4921, 0.0
        %vm4986 = vcmp.gt.f32.partialorder %v4922, 0.0
        %vm4987 = vcmp.gt.f32.partialorder %v4923, 0.0
        %vm4988 = vcmp.gt.f32.partialorder %v4924, 0.0
        %vm4989 = vcmp.gt.f32.partialorder %v4925, 0.0
        %vm4990 = vcmp.gt.f32.partialorder %v4926, 0.0
        %vm4991 = vcmp.gt.f32.partialorder %v4927, 0.0
        %vm4992 = vcmp.gt.f32.partialorder %v4928, 0.0
        %vm4993 = vcmp.gt.f32.partialorder %v4929, 0.0
        %vm4994 = vcmp.gt.f32.partialorder %v4930, 0.0
        %vm4995 = vcmp.gt.f32.partialorder %v4931, 0.0
        %vm4996 = vcmp.gt.f32.partialorder %v4932, 0.0
        %vm4997 = vcmp.gt.f32.partialorder %v4933, 0.0
        %vm4998 = vcmp.gt.f32.partialorder %v4934, 0.0
        %vm4999 = vcmp.gt.f32.partialorder %v4935, 0.0
        %vm5000 = vcmp.gt.f32.partialorder %v4936, 0.0
        %vm5001 = vcmp.gt.f32.partialorder %v4937, 0.0
        %vm5002 = vcmp.gt.f32.partialorder %v4938, 0.0
        %vm5003 = vcmp.gt.f32.partialorder %v4939, 0.0
        %vm5004 = vcmp.gt.f32.partialorder %v4940, 0.0
        %vm5005 = vcmp.gt.f32.partialorder %v4941, 0.0
        %vm5006 = vcmp.gt.f32.partialorder %v4942, 0.0
        %vm5007 = vcmp.gt.f32.partialorder %v4943, 0.0
        %vm5008 = vcmp.gt.f32.partialorder %v4944, 0.0
        %vm5009 = vcmp.gt.f32.partialorder %v4945, 0.0
        %vm5010 = vcmp.gt.f32.partialorder %v4946, 0.0
        %vm5011 = vcmp.gt.f32.partialorder %v4947, 0.0
        %vm5012 = vcmp.gt.f32.partialorder %v4948, 0.0
        %vm5013 = vcmp.gt.f32.partialorder %v4949, 0.0
        %vm5014 = vcmp.gt.f32.partialorder %v4950, 0.0
        %vm5015 = vcmp.gt.f32.partialorder %v4951, 0.0
        %vm5016 = vcmp.gt.f32.partialorder %v4952, 0.0
        %vm5017 = vcmp.gt.f32.partialorder %v4953, 0.0
        %v5018 = vmul.f32 %v4890, 0.01
        %v5019 = vmul.f32 %v4891, 0.01
        %v5020 = vmul.f32 %v4892, 0.01
        %v5021 = vmul.f32 %v4893, 0.01
        %v5022 = vmul.f32 %v4894, 0.01
        %v5023 = vmul.f32 %v4895, 0.01
        %v5024 = vmul.f32 %v4896, 0.01
        %v5025 = vmul.f32 %v4897, 0.01
        %v5026 = vmul.f32 %v4898, 0.01
        %v5027 = vmul.f32 %v4899, 0.01
        %v5028 = vmul.f32 %v4900, 0.01
        %v5029 = vmul.f32 %v4901, 0.01
        %v5030 = vmul.f32 %v4902, 0.01
        %v5031 = vmul.f32 %v4903, 0.01
        %v5032 = vmul.f32 %v4904, 0.01
        %v5033 = vmul.f32 %v4905, 0.01
        %v5034 = vmul.f32 %v4906, 0.01
        %v5035 = vmul.f32 %v4907, 0.01
        %v5036 = vmul.f32 %v4908, 0.01
        %v5037 = vmul.f32 %v4909, 0.01
        %v5038 = vmul.f32 %v4910, 0.01
        %v5039 = vmul.f32 %v4911, 0.01
        %v5040 = vmul.f32 %v4912, 0.01
        %v5041 = vmul.f32 %v4913, 0.01
        %v5042 = vmul.f32 %v4914, 0.01
        %v5043 = vmul.f32 %v4915, 0.01
        %v5044 = vmul.f32 %v4916, 0.01
        %v5045 = vmul.f32 %v4917, 0.01
        %v5046 = vmul.f32 %v4918, 0.01
        %v5047 = vmul.f32 %v4919, 0.01
        %v5048 = vmul.f32 %v4920, 0.01
        %v5049 = vmul.f32 %v4921, 0.01
        %v5050 = vmul.f32 %v4922, 0.01
        %v5051 = vmul.f32 %v4923, 0.01
        %v5052 = vmul.f32 %v4924, 0.01
        %v5053 = vmul.f32 %v4925, 0.01
        %v5054 = vmul.f32 %v4926, 0.01
        %v5055 = vmul.f32 %v4927, 0.01
        %v5056 = vmul.f32 %v4928, 0.01
        %v5057 = vmul.f32 %v4929, 0.01
        %v5058 = vmul.f32 %v4930, 0.01
        %v5059 = vmul.f32 %v4931, 0.01
        %v5060 = vmul.f32 %v4932, 0.01
        %v5061 = vmul.f32 %v4933, 0.01
        %v5062 = vmul.f32 %v4934, 0.01
        %v5063 = vmul.f32 %v4935, 0.01
        %v5064 = vmul.f32 %v4936, 0.01
        %v5065 = vmul.f32 %v4937, 0.01
        %v5066 = vmul.f32 %v4938, 0.01
        %v5067 = vmul.f32 %v4939, 0.01
        %v5068 = vmul.f32 %v4940, 0.01
        %v5069 = vmul.f32 %v4941, 0.01
        %v5070 = vmul.f32 %v4942, 0.01
        %v5071 = vmul.f32 %v4943, 0.01
        %v5072 = vmul.f32 %v4944, 0.01
        %v5073 = vmul.f32 %v4945, 0.01
        %v5074 = vmul.f32 %v4946, 0.01
        %v5075 = vmul.f32 %v4947, 0.01
        %v5076 = vmul.f32 %v4948, 0.01
        %v5077 = vmul.f32 %v4949, 0.01
        %v5078 = vmul.f32 %v4950, 0.01
        %v5079 = vmul.f32 %v4951, 0.01
        %v5080 = vmul.f32 %v4952, 0.01
        %v5081 = vmul.f32 %v4953, 0.01
        %v5082 = vsel %vm4954, %v4890, %v5018
        %v5083 = vsel %vm4955, %v4891, %v5019
        %v5084 = vsel %vm4956, %v4892, %v5020
        %v5085 = vsel %vm4957, %v4893, %v5021
        %v5086 = vsel %vm4958, %v4894, %v5022
        %v5087 = vsel %vm4959, %v4895, %v5023
        %v5088 = vsel %vm4960, %v4896, %v5024
        %v5089 = vsel %vm4961, %v4897, %v5025
        %v5090 = vsel %vm4962, %v4898, %v5026
        %v5091 = vsel %vm4963, %v4899, %v5027
        %v5092 = vsel %vm4964, %v4900, %v5028
        %v5093 = vsel %vm4965, %v4901, %v5029
        %v5094 = vsel %vm4966, %v4902, %v5030
        %v5095 = vsel %vm4967, %v4903, %v5031
        %v5096 = vsel %vm4968, %v4904, %v5032
        %v5097 = vsel %vm4969, %v4905, %v5033
        %v5098 = vsel %vm4970, %v4906, %v5034
        %v5099 = vsel %vm4971, %v4907, %v5035
        %v5100 = vsel %vm4972, %v4908, %v5036
        %v5101 = vsel %vm4973, %v4909, %v5037
        %v5102 = vsel %vm4974, %v4910, %v5038
        %v5103 = vsel %vm4975, %v4911, %v5039
        %v5104 = vsel %vm4976, %v4912, %v5040
        %v5105 = vsel %vm4977, %v4913, %v5041
        %v5106 = vsel %vm4978, %v4914, %v5042
        %v5107 = vsel %vm4979, %v4915, %v5043
        %v5108 = vsel %vm4980, %v4916, %v5044
        %v5109 = vsel %vm4981, %v4917, %v5045
        %v5110 = vsel %vm4982, %v4918, %v5046
        %v5111 = vsel %vm4983, %v4919, %v5047
        %v5112 = vsel %vm4984, %v4920, %v5048
        %v5113 = vsel %vm4985, %v4921, %v5049
        %v5114 = vsel %vm4986, %v4922, %v5050
        %v5115 = vsel %vm4987, %v4923, %v5051
        %v5116 = vsel %vm4988, %v4924, %v5052
        %v5117 = vsel %vm4989, %v4925, %v5053
        %v5118 = vsel %vm4990, %v4926, %v5054
        %v5119 = vsel %vm4991, %v4927, %v5055
        %v5120 = vsel %vm4992, %v4928, %v5056
        %v5121 = vsel %vm4993, %v4929, %v5057
        %v5122 = vsel %vm4994, %v4930, %v5058
        %v5123 = vsel %vm4995, %v4931, %v5059
        %v5124 = vsel %vm4996, %v4932, %v5060
        %v5125 = vsel %vm4997, %v4933, %v5061
        %v5126 = vsel %vm4998, %v4934, %v5062
        %v5127 = vsel %vm4999, %v4935, %v5063
        %v5128 = vsel %vm5000, %v4936, %v5064
        %v5129 = vsel %vm5001, %v4937, %v5065
        %v5130 = vsel %vm5002, %v4938, %v5066
        %v5131 = vsel %vm5003, %v4939, %v5067
        %v5132 = vsel %vm5004, %v4940, %v5068
        %v5133 = vsel %vm5005, %v4941, %v5069
        %v5134 = vsel %vm5006, %v4942, %v5070
        %v5135 = vsel %vm5007, %v4943, %v5071
        %v5136 = vsel %vm5008, %v4944, %v5072
        %v5137 = vsel %vm5009, %v4945, %v5073
        %v5138 = vsel %vm5010, %v4946, %v5074
        %v5139 = vsel %vm5011, %v4947, %v5075
        %v5140 = vsel %vm5012, %v4948, %v5076
        %v5141 = vsel %vm5013, %v4949, %v5077
        %v5142 = vsel %vm5014, %v4950, %v5078
        %v5143 = vsel %vm5015, %v4951, %v5079
        %v5144 = vsel %vm5016, %v4952, %v5080
        %v5145 = vsel %vm5017, %v4953, %v5081
        %v5146 = vpack.c.bf16 %v5084, %v5082
        %v5147 = vpack.c.bf16 %v5085, %v5083
        %v5148 = vpack.c.bf16 %v5088, %v5086
        %v5149 = vpack.c.bf16 %v5089, %v5087
        %v5150 = vpack.c.bf16 %v5092, %v5090
        %v5151 = vpack.c.bf16 %v5093, %v5091
        %v5152 = vpack.c.bf16 %v5096, %v5094
        %v5153 = vpack.c.bf16 %v5097, %v5095
        %v5154 = vpack.c.bf16 %v5100, %v5098
        %v5155 = vpack.c.bf16 %v5101, %v5099
        %v5156 = vpack.c.bf16 %v5104, %v5102
        %v5157 = vpack.c.bf16 %v5105, %v5103
        %v5158 = vpack.c.bf16 %v5108, %v5106
        %v5159 = vpack.c.bf16 %v5109, %v5107
        %v5160 = vpack.c.bf16 %v5112, %v5110
        %v5161 = vpack.c.bf16 %v5113, %v5111
        %v5162 = vpack.c.bf16 %v5116, %v5114
        %v5163 = vpack.c.bf16 %v5117, %v5115
        %v5164 = vpack.c.bf16 %v5120, %v5118
        %v5165 = vpack.c.bf16 %v5121, %v5119
        %v5166 = vpack.c.bf16 %v5124, %v5122
        %v5167 = vpack.c.bf16 %v5125, %v5123
        %v5168 = vpack.c.bf16 %v5128, %v5126
        %v5169 = vpack.c.bf16 %v5129, %v5127
        %v5170 = vpack.c.bf16 %v5132, %v5130
        %v5171 = vpack.c.bf16 %v5133, %v5131
        %v5172 = vpack.c.bf16 %v5136, %v5134
        %v5173 = vpack.c.bf16 %v5137, %v5135
        %v5174 = vpack.c.bf16 %v5140, %v5138
        %v5175 = vpack.c.bf16 %v5141, %v5139
        %v5176 = vpack.c.bf16 %v5144, %v5142
        %v5177 = vpack.c.bf16 %v5145, %v5143
        %v5178 = vld [vmem:[%s7] sm:$0xff]
        %v5179 = vld [vmem:[%s7 + $0x8] sm:$0xf]
        %v5180 = vld [vmem:[%s7 + $0xc] sm:$0xff]
        %v5181 = vld [vmem:[%s7 + $0x14] sm:$0xf]
        %v5182 = vld [vmem:[%s7 + $0x18] sm:$0xff]
        %v5183 = vld [vmem:[%s7 + $0x20] sm:$0xf]
        %v5184 = vld [vmem:[%s7 + $0x24] sm:$0xff]
        %v5185 = vld [vmem:[%s7 + $0x2c] sm:$0xf]
        %v5186 = vld [vmem:[%s7 + $0x30] sm:$0xff]
        %v5187 = vld [vmem:[%s7 + $0x38] sm:$0xf]
        %v5188 = vld [vmem:[%s7 + $0x3c] sm:$0xff]
        %v5189 = vld [vmem:[%s7 + $0x44] sm:$0xf]
        %v5190 = vld [vmem:[%s7 + $0x48] sm:$0xff]
        %v5191 = vld [vmem:[%s7 + $0x50] sm:$0xf]
        %v5192 = vld [vmem:[%s7 + $0x54] sm:$0xff]
        %v5193 = vld [vmem:[%s7 + $0x5c] sm:$0xf]
        %v5194 = vld [vmem:[%s7 + $0x60] sm:$0xff]
        %v5195 = vld [vmem:[%s7 + $0x68] sm:$0xf]
        %v5196 = vld [vmem:[%s7 + $0x6c] sm:$0xff]
        %v5197 = vld [vmem:[%s7 + $0x74] sm:$0xf]
        %v5198 = vld [vmem:[%s7 + $0x78] sm:$0xff]
        %v5199 = vld [vmem:[%s7 + $0x80] sm:$0xf]
        %v5200 = vld [vmem:[%s7 + $0x84] sm:$0xff]
        %v5201 = vld [vmem:[%s7 + $0x8c] sm:$0xf]
        %v5202 = vld [vmem:[%s7 + $0x90] sm:$0xff]
        %v5203 = vld [vmem:[%s7 + $0x98] sm:$0xf]
        %v5204 = vld [vmem:[%s7 + $0x9c] sm:$0xff]
        %v5205 = vld [vmem:[%s7 + $0xa4] sm:$0xf]
        %v5206 = vld [vmem:[%s7 + $0xa8] sm:$0xff]
        %v5207 = vld [vmem:[%s7 + $0xb0] sm:$0xf]
        %v5208 = vld [vmem:[%s7 + $0xb4] sm:$0xff]
        %v5209 = vld [vmem:[%s7 + $0xbc] sm:$0xf]
        %v5210 = vld [vmem:[%s7 + $0xc0] sm:$0xff]
        %v5211 = vld [vmem:[%s7 + $0xc8] sm:$0xf]
        %v5212 = vld [vmem:[%s7 + $0xcc] sm:$0xff]
        %v5213 = vld [vmem:[%s7 + $0xd4] sm:$0xf]
        %v5214 = vld [vmem:[%s7 + $0xd8] sm:$0xff]
        %v5215 = vld [vmem:[%s7 + $0xe0] sm:$0xf]
        %v5216 = vld [vmem:[%s7 + $0xe4] sm:$0xff]
        %v5217 = vld [vmem:[%s7 + $0xec] sm:$0xf]
        %v5258 = vunpack.c.l.b16 %v5178
        %v5259 = vunpack.c.h.b16 %v5178
        %v5260 = vunpack.c.l.b16 %v5179
        %v5261 = vunpack.c.l.b16 %v5180
        %v5262 = vunpack.c.h.b16 %v5180
        %v5263 = vunpack.c.l.b16 %v5181
        %v5264 = vunpack.c.l.b16 %v5182
        %v5265 = vunpack.c.h.b16 %v5182
        %v5266 = vunpack.c.l.b16 %v5183
        %v5267 = vunpack.c.l.b16 %v5184
        %v5268 = vunpack.c.h.b16 %v5184
        %v5269 = vunpack.c.l.b16 %v5185
        %v5270 = vunpack.c.l.b16 %v5186
        %v5271 = vunpack.c.h.b16 %v5186
        %v5272 = vunpack.c.l.b16 %v5187
        %v5273 = vunpack.c.l.b16 %v5188
        %v5274 = vunpack.c.h.b16 %v5188
        %v5275 = vunpack.c.l.b16 %v5189
        %v5276 = vunpack.c.l.b16 %v5190
        %v5277 = vunpack.c.h.b16 %v5190
        %v5278 = vunpack.c.l.b16 %v5191
        %v5279 = vunpack.c.l.b16 %v5192
        %v5280 = vunpack.c.h.b16 %v5192
        %v5281 = vunpack.c.l.b16 %v5193
        %v5282 = vunpack.c.l.b16 %v5194
        %v5283 = vunpack.c.h.b16 %v5194
        %v5284 = vunpack.c.l.b16 %v5195
        %v5285 = vunpack.c.l.b16 %v5196
        %v5286 = vunpack.c.h.b16 %v5196
        %v5287 = vunpack.c.l.b16 %v5197
        %v5288 = vunpack.c.l.b16 %v5198
        %v5289 = vunpack.c.h.b16 %v5198
        %v5290 = vunpack.c.l.b16 %v5199
        %v5291 = vunpack.c.l.b16 %v5200
        %v5292 = vunpack.c.h.b16 %v5200
        %v5293 = vunpack.c.l.b16 %v5201
        %v5294 = vunpack.c.l.b16 %v5202
        %v5295 = vunpack.c.h.b16 %v5202
        %v5296 = vunpack.c.l.b16 %v5203
        %v5297 = vunpack.c.l.b16 %v5204
        %v5298 = vunpack.c.h.b16 %v5204
        %v5299 = vunpack.c.l.b16 %v5205
        %v5300 = vunpack.c.l.b16 %v5206
        %v5301 = vunpack.c.h.b16 %v5206
        %v5302 = vunpack.c.l.b16 %v5207
        %v5303 = vunpack.c.l.b16 %v5208
        %v5304 = vunpack.c.h.b16 %v5208
        %v5305 = vunpack.c.l.b16 %v5209
        %v5306 = vunpack.c.l.b16 %v5210
        %v5307 = vunpack.c.h.b16 %v5210
        %v5308 = vunpack.c.l.b16 %v5211
        %v5309 = vunpack.c.l.b16 %v5212
        %v5310 = vunpack.c.h.b16 %v5212
        %v5311 = vunpack.c.l.b16 %v5213
        %v5312 = vunpack.c.l.b16 %v5214
        %v5313 = vunpack.c.h.b16 %v5214
        %v5314 = vunpack.c.l.b16 %v5215
        %v5315 = vunpack.c.l.b16 %v5216
        %v5316 = vunpack.c.h.b16 %v5216
        %v5317 = vunpack.c.l.b16 %v5217
        %v5318 = vpack.c.b16 %v5261, %v5258
        %v5319 = vpack.c.b16 %v5262, %v5259
        %v5320 = vpack.c.b16 %v5263, %v5260
        %v5321 = vpack.c.b16 %v5267, %v5264
        %v5322 = vpack.c.b16 %v5268, %v5265
        %v5323 = vpack.c.b16 %v5269, %v5266
        %v5324 = vpack.c.b16 %v5273, %v5270
        %v5325 = vpack.c.b16 %v5274, %v5271
        %v5326 = vpack.c.b16 %v5275, %v5272
        %v5327 = vpack.c.b16 %v5279, %v5276
        %v5328 = vpack.c.b16 %v5280, %v5277
        %v5329 = vpack.c.b16 %v5281, %v5278
        %v5330 = vpack.c.b16 %v5285, %v5282
        %v5331 = vpack.c.b16 %v5286, %v5283
        %v5332 = vpack.c.b16 %v5287, %v5284
        %v5333 = vpack.c.b16 %v5291, %v5288
        %v5334 = vpack.c.b16 %v5292, %v5289
        %v5335 = vpack.c.b16 %v5293, %v5290
        %v5336 = vpack.c.b16 %v5297, %v5294
        %v5337 = vpack.c.b16 %v5298, %v5295
        %v5338 = vpack.c.b16 %v5299, %v5296
        %v5339 = vpack.c.b16 %v5303, %v5300
        %v5340 = vpack.c.b16 %v5304, %v5301
        %v5341 = vpack.c.b16 %v5305, %v5302
        %v5342 = vpack.c.b16 %v5309, %v5306
        %v5343 = vpack.c.b16 %v5310, %v5307
        %v5344 = vpack.c.b16 %v5311, %v5308
        %v5345 = vpack.c.b16 %v5315, %v5312
        %v5346 = vpack.c.b16 %v5316, %v5313
        %v5347 = vpack.c.b16 %v5317, %v5314
        %v5379 = vsel %vm695, %v5147, 0
        %v5382 = vsel %vm695, %v5149, 0
        %v5385 = vsel %vm695, %v5151, 0
        %v5388 = vsel %vm695, %v5153, 0
        %v5391 = vsel %vm695, %v5155, 0
        %v5394 = vsel %vm695, %v5157, 0
        %v5397 = vsel %vm695, %v5159, 0
        %v5400 = vsel %vm695, %v5161, 0
        %v5403 = vsel %vm695, %v5163, 0
        %v5406 = vsel %vm695, %v5165, 0
        %v5409 = vsel %vm695, %v5167, 0
        %v5412 = vsel %vm695, %v5169, 0
        %v5415 = vsel %vm695, %v5171, 0
        %v5418 = vsel %vm695, %v5173, 0
        %v5421 = vsel %vm695, %v5175, 0
        %v5424 = vsel %vm695, %v5177, 0
        %5426 = vmatprep.subr.bf16.mxu0 %v5319
        %5427 = vmatpush1.bf16.msra.mxu0 %v5318
        %5428 = vmatprep.subr.bf16.mxu0 %v5322
        %5429 = vmatpush1.bf16.msra.mxu0 %v5321
        %5430 = vmatprep.subr.bf16.mxu0 %v5325
        %5431 = vmatpush1.bf16.msra.mxu0 %v5324
        %5432 = vmatprep.subr.bf16.mxu0 %v5328
        %5433 = vmatpush1.bf16.msra.mxu0 %v5327
        %5434 = vmatprep.subr.bf16.mxu0 %v5331
        %5435 = vmatpush1.bf16.msra.mxu0 %v5330
        %5436 = vmatprep.subr.bf16.mxu0 %v5334
        %5437 = vmatpush1.bf16.msra.mxu0 %v5333
        %5438 = vmatprep.subr.bf16.mxu0 %v5337
        %5439 = vmatpush1.bf16.msra.mxu0 %v5336
        %5440 = vmatprep.subr.bf16.mxu0 %v5340
        %5441 = vmatpush1.bf16.msra.mxu0 %v5339
        %5442 = vmatprep.subr.bf16.mxu0 %v5343
        %5443 = vmatpush1.bf16.msra.mxu0 %v5342
        %5444 = vmatprep.subr.bf16.mxu0 %v5346
        %5445 = vmatpush1.bf16.msra.mxu0 %v5345
        %5446 = vmatprep.subr.bf16.mxu0 0
        %5447 = vmatpush1.bf16.msra.mxu0 0
        %5448 = vmatprep.subr.bf16.mxu0 0
        %5449 = vmatpush1.bf16.msra.mxu0 0
        %5450 = vmatprep.subr.bf16.mxu0 0
        %5451 = vmatpush1.bf16.msra.mxu0 0
        %5452 = vmatprep.subr.bf16.mxu0 0
        %5453 = vmatpush1.bf16.msra.mxu0 0
        %5454 = vmatprep.subr.bf16.mxu0 0
        %5455 = vmatpush1.bf16.msra.mxu0 0
        %5456 = vmatprep.subr.bf16.mxu0 0
        %5457 = vmatpush1.bf16.msra.mxu0 0
        %5458 = vmatprep.mubr.bf16.mxu0 %v5379
        %5459 = vmatmul.mubr.bf16.gmra.mrb[0].mxu0 %v5146
        %v5460 = vpop.f32.mrb[0].mxu0
        %v5461 = vadd.f32 0.0, %v5460
        %v5462 = vpop.f32.mrb[0].mxu0
        %v5463 = vadd.f32 0.0, %v5462
        %v5464 = vpop.f32.mrb[0].mxu0
        %v5465 = vadd.f32 0.0, %v5464
        %v5466 = vpop.f32.mrb[0].mxu0
        %v5467 = vadd.f32 0.0, %v5466
        %5468 = vmatprep.mubr.bf16.mxu0 %v5382
        %5469 = vmatmul.mubr.bf16.gmra.mrb[0].mxu0 %v5148
        %v5470 = vpop.f32.mrb[0].mxu0
        %v5471 = vadd.f32 0.0, %v5470
        %v5472 = vpop.f32.mrb[0].mxu0
        %v5473 = vadd.f32 0.0, %v5472
        %v5474 = vpop.f32.mrb[0].mxu0
        %v5475 = vadd.f32 0.0, %v5474
        %v5476 = vpop.f32.mrb[0].mxu0
        %v5477 = vadd.f32 0.0, %v5476
        %5478 = vmatprep.mubr.bf16.mxu0 %v5385
        %5479 = vmatmul.mubr.bf16.gmra.mrb[0].mxu0 %v5150
        %v5480 = vpop.f32.mrb[0].mxu0
        %v5481 = vadd.f32 0.0, %v5480
        %v5482 = vpop.f32.mrb[0].mxu0
        %v5483 = vadd.f32 0.0, %v5482
        %v5484 = vpop.f32.mrb[0].mxu0
        %v5485 = vadd.f32 0.0, %v5484
        %v5486 = vpop.f32.mrb[0].mxu0
        %v5487 = vadd.f32 0.0, %v5486
        %5488 = vmatprep.mubr.bf16.mxu0 %v5388
        %5489 = vmatmul.mubr.bf16.gmra.mrb[0].mxu0 %v5152
        %v5490 = vpop.f32.mrb[0].mxu0
        %v5491 = vadd.f32 0.0, %v5490
        %v5492 = vpop.f32.mrb[0].mxu0
        %v5493 = vadd.f32 0.0, %v5492
        %v5494 = vpop.f32.mrb[0].mxu0
        %v5495 = vadd.f32 0.0, %v5494
        %v5496 = vpop.f32.mrb[0].mxu0
        %v5497 = vadd.f32 0.0, %v5496
        %5498 = vmatprep.mubr.bf16.mxu0 %v5391
        %5499 = vmatmul.mubr.bf16.gmra.mrb[0].mxu0 %v5154
        %v5500 = vpop.f32.mrb[0].mxu0
        %v5501 = vadd.f32 0.0, %v5500
        %v5502 = vpop.f32.mrb[0].mxu0
        %v5503 = vadd.f32 0.0, %v5502
        %v5504 = vpop.f32.mrb[0].mxu0
        %v5505 = vadd.f32 0.0, %v5504
        %v5506 = vpop.f32.mrb[0].mxu0
        %v5507 = vadd.f32 0.0, %v5506
        %5508 = vmatprep.mubr.bf16.mxu0 %v5394
        %5509 = vmatmul.mubr.bf16.gmra.mrb[0].mxu0 %v5156
        %v5510 = vpop.f32.mrb[0].mxu0
        %v5511 = vadd.f32 0.0, %v5510
        %v5512 = vpop.f32.mrb[0].mxu0
        %v5513 = vadd.f32 0.0, %v5512
        %v5514 = vpop.f32.mrb[0].mxu0
        %v5515 = vadd.f32 0.0, %v5514
        %v5516 = vpop.f32.mrb[0].mxu0
        %v5517 = vadd.f32 0.0, %v5516
        %5518 = vmatprep.mubr.bf16.mxu0 %v5397
        %5519 = vmatmul.mubr.bf16.gmra.mrb[0].mxu0 %v5158
        %v5520 = vpop.f32.mrb[0].mxu0
        %v5521 = vadd.f32 0.0, %v5520
        %v5522 = vpop.f32.mrb[0].mxu0
        %v5523 = vadd.f32 0.0, %v5522
        %v5524 = vpop.f32.mrb[0].mxu0
        %v5525 = vadd.f32 0.0, %v5524
        %v5526 = vpop.f32.mrb[0].mxu0
        %v5527 = vadd.f32 0.0, %v5526
        %5528 = vmatprep.mubr.bf16.mxu0 %v5400
        %5529 = vmatmul.mubr.bf16.gmra.mrb[0].mxu0 %v5160
        %v5530 = vpop.f32.mrb[0].mxu0
        %v5531 = vadd.f32 0.0, %v5530
        %v5532 = vpop.f32.mrb[0].mxu0
        %v5533 = vadd.f32 0.0, %v5532
        %v5534 = vpop.f32.mrb[0].mxu0
        %v5535 = vadd.f32 0.0, %v5534
        %v5536 = vpop.f32.mrb[0].mxu0
        %v5537 = vadd.f32 0.0, %v5536
        %5538 = vmatprep.mubr.bf16.mxu0 %v5403
        %5539 = vmatmul.mubr.bf16.gmra.mrb[0].mxu0 %v5162
        %v5540 = vpop.f32.mrb[0].mxu0
        %v5541 = vadd.f32 0.0, %v5540
        %v5542 = vpop.f32.mrb[0].mxu0
        %v5543 = vadd.f32 0.0, %v5542
        %v5544 = vpop.f32.mrb[0].mxu0
        %v5545 = vadd.f32 0.0, %v5544
        %v5546 = vpop.f32.mrb[0].mxu0
        %v5547 = vadd.f32 0.0, %v5546
        %5548 = vmatprep.mubr.bf16.mxu0 %v5406
        %5549 = vmatmul.mubr.bf16.gmra.mrb[0].mxu0 %v5164
        %v5550 = vpop.f32.mrb[0].mxu0
        %v5551 = vadd.f32 0.0, %v5550
        %v5552 = vpop.f32.mrb[0].mxu0
        %v5553 = vadd.f32 0.0, %v5552
        %v5554 = vpop.f32.mrb[0].mxu0
        %v5555 = vadd.f32 0.0, %v5554
        %v5556 = vpop.f32.mrb[0].mxu0
        %v5557 = vadd.f32 0.0, %v5556
        %5558 = vmatprep.mubr.bf16.mxu0 %v5409
        %5559 = vmatmul.mubr.bf16.gmra.mrb[0].mxu0 %v5166
        %v5560 = vpop.f32.mrb[0].mxu0
        %v5561 = vadd.f32 0.0, %v5560
        %v5562 = vpop.f32.mrb[0].mxu0
        %v5563 = vadd.f32 0.0, %v5562
        %v5564 = vpop.f32.mrb[0].mxu0
        %v5565 = vadd.f32 0.0, %v5564
        %v5566 = vpop.f32.mrb[0].mxu0
        %v5567 = vadd.f32 0.0, %v5566
        %5568 = vmatprep.mubr.bf16.mxu0 %v5412
        %5569 = vmatmul.mubr.bf16.gmra.mrb[0].mxu0 %v5168
        %v5570 = vpop.f32.mrb[0].mxu0
        %v5571 = vadd.f32 0.0, %v5570
        %v5572 = vpop.f32.mrb[0].mxu0
        %v5573 = vadd.f32 0.0, %v5572
        %v5574 = vpop.f32.mrb[0].mxu0
        %v5575 = vadd.f32 0.0, %v5574
        %v5576 = vpop.f32.mrb[0].mxu0
        %v5577 = vadd.f32 0.0, %v5576
        %5578 = vmatprep.mubr.bf16.mxu0 %v5415
        %5579 = vmatmul.mubr.bf16.gmra.mrb[0].mxu0 %v5170
        %v5580 = vpop.f32.mrb[0].mxu0
        %v5581 = vadd.f32 0.0, %v5580
        %v5582 = vpop.f32.mrb[0].mxu0
        %v5583 = vadd.f32 0.0, %v5582
        %v5584 = vpop.f32.mrb[0].mxu0
        %v5585 = vadd.f32 0.0, %v5584
        %v5586 = vpop.f32.mrb[0].mxu0
        %v5587 = vadd.f32 0.0, %v5586
        %5588 = vmatprep.mubr.bf16.mxu0 %v5418
        %5589 = vmatmul.mubr.bf16.gmra.mrb[0].mxu0 %v5172
        %v5590 = vpop.f32.mrb[0].mxu0
        %v5591 = vadd.f32 0.0, %v5590
        %v5592 = vpop.f32.mrb[0].mxu0
        %v5593 = vadd.f32 0.0, %v5592
        %v5594 = vpop.f32.mrb[0].mxu0
        %v5595 = vadd.f32 0.0, %v5594
        %v5596 = vpop.f32.mrb[0].mxu0
        %v5597 = vadd.f32 0.0, %v5596
        %5598 = vmatprep.mubr.bf16.mxu0 %v5421
        %5599 = vmatmul.mubr.bf16.gmra.mrb[0].mxu0 %v5174
        %v5600 = vpop.f32.mrb[0].mxu0
        %v5601 = vadd.f32 0.0, %v5600
        %v5602 = vpop.f32.mrb[0].mxu0
        %v5603 = vadd.f32 0.0, %v5602
        %v5604 = vpop.f32.mrb[0].mxu0
        %v5605 = vadd.f32 0.0, %v5604
        %v5606 = vpop.f32.mrb[0].mxu0
        %v5607 = vadd.f32 0.0, %v5606
        %5608 = vmatprep.mubr.bf16.mxu0 %v5424
        %5609 = vmatmul.mubr.bf16.gmra.mrb[0].mxu0 %v5176
        %v5610 = vpop.f32.mrb[0].mxu0
        %v5611 = vadd.f32 0.0, %v5610
        %v5612 = vpop.f32.mrb[0].mxu0
        %v5613 = vadd.f32 0.0, %v5612
        %v5614 = vpop.f32.mrb[0].mxu0
        %v5615 = vadd.f32 0.0, %v5614
        %v5616 = vpop.f32.mrb[0].mxu0
        %v5617 = vadd.f32 0.0, %v5616
        %5618 = vdwg.mxu0
        %5619 = vmatprep.subr.bf16.mxu0 0
        %5620 = vmatpush1.bf16.msra.mxu0 %v5320
        %5621 = vmatprep.subr.bf16.mxu0 0
        %5622 = vmatpush1.bf16.msra.mxu0 %v5323
        %5623 = vmatprep.subr.bf16.mxu0 0
        %5624 = vmatpush1.bf16.msra.mxu0 %v5326
        %5625 = vmatprep.subr.bf16.mxu0 0
        %5626 = vmatpush1.bf16.msra.mxu0 %v5329
        %5627 = vmatprep.subr.bf16.mxu0 0
        %5628 = vmatpush1.bf16.msra.mxu0 %v5332
        %5629 = vmatprep.subr.bf16.mxu0 0
        %5630 = vmatpush1.bf16.msra.mxu0 %v5335
        %5631 = vmatprep.subr.bf16.mxu0 0
        %5632 = vmatpush1.bf16.msra.mxu0 %v5338
        %5633 = vmatprep.subr.bf16.mxu0 0
        %5634 = vmatpush1.bf16.msra.mxu0 %v5341
        %5635 = vmatprep.subr.bf16.mxu0 0
        %5636 = vmatpush1.bf16.msra.mxu0 %v5344
        %5637 = vmatprep.subr.bf16.mxu0 0
        %5638 = vmatpush1.bf16.msra.mxu0 %v5347
        %5639 = vmatprep.subr.bf16.mxu0 0
        %5640 = vmatpush1.bf16.msra.mxu0 0
        %5641 = vmatprep.subr.bf16.mxu0 0
        %5642 = vmatpush1.bf16.msra.mxu0 0
        %5643 = vmatprep.subr.bf16.mxu0 0
        %5644 = vmatpush1.bf16.msra.mxu0 0
        %5645 = vmatprep.subr.bf16.mxu0 0
        %5646 = vmatpush1.bf16.msra.mxu0 0
        %5647 = vmatprep.subr.bf16.mxu0 0
        %5648 = vmatpush1.bf16.msra.mxu0 0
        %5649 = vmatprep.subr.bf16.mxu0 0
        %5650 = vmatpush1.bf16.msra.mxu0 0
        %5651 = vmatprep.mubr.bf16.mxu0 %v5379
        %5652 = vmatmul.mubr.bf16.gmra.mrb[0].mxu0 %v5146
        %v5653 = vpop.f32.mrb[0].mxu0
        %v5654 = vadd.f32 0.0, %v5653
        %v5655 = vpop.f32.mrb[0].mxu0
        %v5656 = vpop.f32.mrb[0].mxu0
        %v5657 = vadd.f32 0.0, %v5656
        %v5658 = vpop.f32.mrb[0].mxu0
        %5659 = vmatprep.mubr.bf16.mxu0 %v5382
        %5660 = vmatmul.mubr.bf16.gmra.mrb[0].mxu0 %v5148
        %v5661 = vpop.f32.mrb[0].mxu0
        %v5662 = vadd.f32 0.0, %v5661
        %v5663 = vpop.f32.mrb[0].mxu0
        %v5664 = vpop.f32.mrb[0].mxu0
        %v5665 = vadd.f32 0.0, %v5664
        %v5666 = vpop.f32.mrb[0].mxu0
        %5667 = vmatprep.mubr.bf16.mxu0 %v5385
        %5668 = vmatmul.mubr.bf16.gmra.mrb[0].mxu0 %v5150
        %v5669 = vpop.f32.mrb[0].mxu0
        %v5670 = vadd.f32 0.0, %v5669
        %v5671 = vpop.f32.mrb[0].mxu0
        %v5672 = vpop.f32.mrb[0].mxu0
        %v5673 = vadd.f32 0.0, %v5672
        %v5674 = vpop.f32.mrb[0].mxu0
        %5675 = vmatprep.mubr.bf16.mxu0 %v5388
        %5676 = vmatmul.mubr.bf16.gmra.mrb[0].mxu0 %v5152
        %v5677 = vpop.f32.mrb[0].mxu0
        %v5678 = vadd.f32 0.0, %v5677
        %v5679 = vpop.f32.mrb[0].mxu0
        %v5680 = vpop.f32.mrb[0].mxu0
        %v5681 = vadd.f32 0.0, %v5680
        %v5682 = vpop.f32.mrb[0].mxu0
        %5683 = vmatprep.mubr.bf16.mxu0 %v5391
        %5684 = vmatmul.mubr.bf16.gmra.mrb[0].mxu0 %v5154
        %v5685 = vpop.f32.mrb[0].mxu0
        %v5686 = vadd.f32 0.0, %v5685
        %v5687 = vpop.f32.mrb[0].mxu0
        %v5688 = vpop.f32.mrb[0].mxu0
        %v5689 = vadd.f32 0.0, %v5688
        %v5690 = vpop.f32.mrb[0].mxu0
        %5691 = vmatprep.mubr.bf16.mxu0 %v5394
        %5692 = vmatmul.mubr.bf16.gmra.mrb[0].mxu0 %v5156
        %v5693 = vpop.f32.mrb[0].mxu0
        %v5694 = vadd.f32 0.0, %v5693
        %v5695 = vpop.f32.mrb[0].mxu0
        %v5696 = vpop.f32.mrb[0].mxu0
        %v5697 = vadd.f32 0.0, %v5696
        %v5698 = vpop.f32.mrb[0].mxu0
        %5699 = vmatprep.mubr.bf16.mxu0 %v5397
        %5700 = vmatmul.mubr.bf16.gmra.mrb[0].mxu0 %v5158
        %v5701 = vpop.f32.mrb[0].mxu0
        %v5702 = vadd.f32 0.0, %v5701
        %v5703 = vpop.f32.mrb[0].mxu0
        %v5704 = vpop.f32.mrb[0].mxu0
        %v5705 = vadd.f32 0.0, %v5704
        %v5706 = vpop.f32.mrb[0].mxu0
        %5707 = vmatprep.mubr.bf16.mxu0 %v5400
        %5708 = vmatmul.mubr.bf16.gmra.mrb[0].mxu0 %v5160
        %v5709 = vpop.f32.mrb[0].mxu0
        %v5710 = vadd.f32 0.0, %v5709
        %v5711 = vpop.f32.mrb[0].mxu0
        %v5712 = vpop.f32.mrb[0].mxu0
        %v5713 = vadd.f32 0.0, %v5712
        %v5714 = vpop.f32.mrb[0].mxu0
        %5715 = vmatprep.mubr.bf16.mxu0 %v5403
        %5716 = vmatmul.mubr.bf16.gmra.mrb[0].mxu0 %v5162
        %v5717 = vpop.f32.mrb[0].mxu0
        %v5718 = vadd.f32 0.0, %v5717
        %v5719 = vpop.f32.mrb[0].mxu0
        %v5720 = vpop.f32.mrb[0].mxu0
        %v5721 = vadd.f32 0.0, %v5720
        %v5722 = vpop.f32.mrb[0].mxu0
        %5723 = vmatprep.mubr.bf16.mxu0 %v5406
        %5724 = vmatmul.mubr.bf16.gmra.mrb[0].mxu0 %v5164
        %v5725 = vpop.f32.mrb[0].mxu0
        %v5726 = vadd.f32 0.0, %v5725
        %v5727 = vpop.f32.mrb[0].mxu0
        %v5728 = vpop.f32.mrb[0].mxu0
        %v5729 = vadd.f32 0.0, %v5728
        %v5730 = vpop.f32.mrb[0].mxu0
        %5731 = vmatprep.mubr.bf16.mxu0 %v5409
        %5732 = vmatmul.mubr.bf16.gmra.mrb[0].mxu0 %v5166
        %v5733 = vpop.f32.mrb[0].mxu0
        %v5734 = vadd.f32 0.0, %v5733
        %v5735 = vpop.f32.mrb[0].mxu0
        %v5736 = vpop.f32.mrb[0].mxu0
        %v5737 = vadd.f32 0.0, %v5736
        %v5738 = vpop.f32.mrb[0].mxu0
        %5739 = vmatprep.mubr.bf16.mxu0 %v5412
        %5740 = vmatmul.mubr.bf16.gmra.mrb[0].mxu0 %v5168
        %v5741 = vpop.f32.mrb[0].mxu0
        %v5742 = vadd.f32 0.0, %v5741
        %v5743 = vpop.f32.mrb[0].mxu0
        %v5744 = vpop.f32.mrb[0].mxu0
        %v5745 = vadd.f32 0.0, %v5744
        %v5746 = vpop.f32.mrb[0].mxu0
        %5747 = vmatprep.mubr.bf16.mxu0 %v5415
        %5748 = vmatmul.mubr.bf16.gmra.mrb[0].mxu0 %v5170
        %v5749 = vpop.f32.mrb[0].mxu0
        %v5750 = vadd.f32 0.0, %v5749
        %v5751 = vpop.f32.mrb[0].mxu0
        %v5752 = vpop.f32.mrb[0].mxu0
        %v5753 = vadd.f32 0.0, %v5752
        %v5754 = vpop.f32.mrb[0].mxu0
        %5755 = vmatprep.mubr.bf16.mxu0 %v5418
        %5756 = vmatmul.mubr.bf16.gmra.mrb[0].mxu0 %v5172
        %v5757 = vpop.f32.mrb[0].mxu0
        %v5758 = vadd.f32 0.0, %v5757
        %v5759 = vpop.f32.mrb[0].mxu0
        %v5760 = vpop.f32.mrb[0].mxu0
        %v5761 = vadd.f32 0.0, %v5760
        %v5762 = vpop.f32.mrb[0].mxu0
        %5763 = vmatprep.mubr.bf16.mxu0 %v5421
        %5764 = vmatmul.mubr.bf16.gmra.mrb[0].mxu0 %v5174
        %v5765 = vpop.f32.mrb[0].mxu0
        %v5766 = vadd.f32 0.0, %v5765
        %v5767 = vpop.f32.mrb[0].mxu0
        %v5768 = vpop.f32.mrb[0].mxu0
        %v5769 = vadd.f32 0.0, %v5768
        %v5770 = vpop.f32.mrb[0].mxu0
        %5771 = vmatprep.mubr.bf16.mxu0 %v5424
        %5772 = vmatmul.mubr.bf16.gmra.mrb[0].mxu0 %v5176
        %v5773 = vpop.f32.mrb[0].mxu0
        %v5774 = vadd.f32 0.0, %v5773
        %v5775 = vpop.f32.mrb[0].mxu0
        %v5776 = vpop.f32.mrb[0].mxu0
        %v5777 = vadd.f32 0.0, %v5776
        %v5778 = vpop.f32.mrb[0].mxu0
        %5779 = vdwg.mxu0
        %v5780 = vld [vmem:[%s8] sm:$0x1f]
        %v5781 = vmul.f32 %v2514, %v5461
        %v5782 = vmul.f32 %v2519, %v5465
        %v5783 = vmul.f32 %v2524, %v5471
        %v5784 = vmul.f32 %v2529, %v5475
        %v5785 = vmul.f32 %v2534, %v5481
        %v5786 = vmul.f32 %v2539, %v5485
        %v5787 = vmul.f32 %v2544, %v5491
        %v5788 = vmul.f32 %v2549, %v5495
        %v5789 = vmul.f32 %v2554, %v5501
        %v5790 = vmul.f32 %v2559, %v5505
        %v5791 = vmul.f32 %v2564, %v5511
        %v5792 = vmul.f32 %v2569, %v5515
        %v5793 = vmul.f32 %v2574, %v5521
        %v5794 = vmul.f32 %v2579, %v5525
        %v5795 = vmul.f32 %v2584, %v5531
        %v5796 = vmul.f32 %v2589, %v5535
        %v5797 = vmul.f32 %v2594, %v5541
        %v5798 = vmul.f32 %v2599, %v5545
        %v5799 = vmul.f32 %v2604, %v5551
        %v5800 = vmul.f32 %v2609, %v5555
        %v5801 = vmul.f32 %v2614, %v5561
        %v5802 = vmul.f32 %v2619, %v5565
        %v5803 = vmul.f32 %v2624, %v5571
        %v5804 = vmul.f32 %v2629, %v5575
        %v5805 = vmul.f32 %v2634, %v5581
        %v5806 = vmul.f32 %v2639, %v5585
        %v5807 = vmul.f32 %v2644, %v5591
        %v5808 = vmul.f32 %v2649, %v5595
        %v5809 = vmul.f32 %v2654, %v5601
        %v5810 = vmul.f32 %v2659, %v5605
        %v5811 = vmul.f32 %v2664, %v5611
        %v5812 = vmul.f32 %v2669, %v5615
        %v5814 = vsel %vm2800, %v5780, 0
        %5816 = vmatprep.subr.mxu0 0.0
        %5817 = vmatpush1.msra.mxu0 %v5814
        %5818 = vmatprep.subr.mxu0 0.0
        %5819 = vmatpush1.msra.mxu0 0.0
        %5820 = vmatprep.subr.mxu0 0.0
        %5821 = vmatpush1.msra.mxu0 0.0
        %5822 = vmatprep.subr.mxu0 0.0
        %5823 = vmatpush1.msra.mxu0 0.0
        %5824 = vmatprep.subr.mxu0 0.0
        %5825 = vmatpush1.msra.mxu0 0.0
        %5826 = vmatprep.subr.mxu0 0.0
        %5827 = vmatpush1.msra.mxu0 0.0
        %5828 = vmatprep.subr.mxu0 0.0
        %5829 = vmatpush1.msra.mxu0 0.0
        %5830 = vmatprep.subr.mxu0 0.0
        %5831 = vmatpush1.msra.mxu0 0.0
        %5832 = vmatprep.subr.mxu0 0.0
        %5833 = vmatpush1.msra.mxu0 0.0
        %5834 = vmatprep.subr.mxu0 0.0
        %5835 = vmatpush1.msra.mxu0 0.0
        %5836 = vmatprep.subr.mxu0 0.0
        %5837 = vmatpush1.msra.mxu0 0.0
        %5838 = vmatprep.subr.mxu0 0.0
        %5839 = vmatpush1.msra.mxu0 0.0
        %5840 = vmatprep.subr.mxu0 0.0
        %5841 = vmatpush1.msra.mxu0 0.0
        %5842 = vmatprep.subr.mxu0 0.0
        %5843 = vmatpush1.msra.mxu0 0.0
        %5844 = vmatprep.subr.mxu0 0.0
        %5845 = vmatpush1.msra.mxu0 0.0
        %5846 = vmatprep.subr.mxu0 0.0
        %5847 = vmatpush1.msra.mxu0 0.0
        %5848 = vmatprep.subr.mxu0 0.0
        %5849 = vmatpush1.msra.mxu0 0.0
        %5850 = vmatprep.subr.mxu0 0.0
        %5851 = vmatpush1.msra.mxu0 0.0
        %5852 = vmatprep.subr.mxu0 0.0
        %5853 = vmatpush1.msra.mxu0 0.0
        %5854 = vmatprep.subr.mxu0 0.0
        %5855 = vmatpush1.msra.mxu0 0.0
        %5856 = vmatprep.subr.mxu0 0.0
        %5857 = vmatpush1.msra.mxu0 0.0
        %5858 = vmatprep.subr.mxu0 0.0
        %5859 = vmatpush1.msra.mxu0 0.0
        %5860 = vmatprep.subr.mxu0 0.0
        %5861 = vmatpush1.msra.mxu0 0.0
        %5862 = vmatprep.subr.mxu0 0.0
        %5863 = vmatpush1.msra.mxu0 0.0
        %5864 = vmatprep.subr.mxu0 0.0
        %5865 = vmatpush1.msra.mxu0 0.0
        %5866 = vmatprep.subr.mxu0 0.0
        %5867 = vmatpush1.msra.mxu0 0.0
        %5868 = vmatprep.subr.mxu0 0.0
        %5869 = vmatpush1.msra.mxu0 0.0
        %5870 = vmatprep.subr.mxu0 0.0
        %5871 = vmatpush1.msra.mxu0 0.0
        %5872 = vmatprep.subr.mxu0 0.0
        %5873 = vmatpush1.msra.mxu0 0.0
        %5874 = vmatprep.subr.mxu0 0.0
        %5875 = vmatpush1.msra.mxu0 0.0
        %5876 = vmatprep.subr.mxu0 0.0
        %5877 = vmatpush1.msra.mxu0 0.0
        %5878 = vmatprep.subr.mxu0 0.0
        %5879 = vmatpush1.msra.mxu0 0.0
        %5880 = vmatprep.mubr.f32.mxu0 0.0
        %5881 = vmatmul.mubr.f32.gmra.mrb[0].mxu0 %v2736
        %v5882 = vpop.f32.mrb[0].mxu0
        %v5883 = vadd.f32 %v5781, %v5882
        %v5884 = vpop.f32.mrb[0].mxu0
        %5885 = vmatprep.mubr.f32.mxu0 0.0
        %5886 = vmatmul.mubr.f32.gmra.mrb[0].mxu0 %v2738
        %v5887 = vpop.f32.mrb[0].mxu0
        %v5888 = vadd.f32 %v5782, %v5887
        %v5889 = vpop.f32.mrb[0].mxu0
        %5890 = vmatprep.mubr.f32.mxu0 0.0
        %5891 = vmatmul.mubr.f32.gmra.mrb[0].mxu0 %v2740
        %v5892 = vpop.f32.mrb[0].mxu0
        %v5893 = vadd.f32 %v5783, %v5892
        %v5894 = vpop.f32.mrb[0].mxu0
        %5895 = vmatprep.mubr.f32.mxu0 0.0
        %5896 = vmatmul.mubr.f32.gmra.mrb[0].mxu0 %v2742
        %v5897 = vpop.f32.mrb[0].mxu0
        %v5898 = vadd.f32 %v5784, %v5897
        %v5899 = vpop.f32.mrb[0].mxu0
        %5900 = vmatprep.mubr.f32.mxu0 0.0
        %5901 = vmatmul.mubr.f32.gmra.mrb[0].mxu0 %v2744
        %v5902 = vpop.f32.mrb[0].mxu0
        %v5903 = vadd.f32 %v5785, %v5902
        %v5904 = vpop.f32.mrb[0].mxu0
        %5905 = vmatprep.mubr.f32.mxu0 0.0
        %5906 = vmatmul.mubr.f32.gmra.mrb[0].mxu0 %v2746
        %v5907 = vpop.f32.mrb[0].mxu0
        %v5908 = vadd.f32 %v5786, %v5907
        %v5909 = vpop.f32.mrb[0].mxu0
        %5910 = vmatprep.mubr.f32.mxu0 0.0
        %5911 = vmatmul.mubr.f32.gmra.mrb[0].mxu0 %v2748
        %v5912 = vpop.f32.mrb[0].mxu0
        %v5913 = vadd.f32 %v5787, %v5912
        %v5914 = vpop.f32.mrb[0].mxu0
        %5915 = vmatprep.mubr.f32.mxu0 0.0
        %5916 = vmatmul.mubr.f32.gmra.mrb[0].mxu0 %v2750
        %v5917 = vpop.f32.mrb[0].mxu0
        %v5918 = vadd.f32 %v5788, %v5917
        %v5919 = vpop.f32.mrb[0].mxu0
        %5920 = vmatprep.mubr.f32.mxu0 0.0
        %5921 = vmatmul.mubr.f32.gmra.mrb[0].mxu0 %v2752
        %v5922 = vpop.f32.mrb[0].mxu0
        %v5923 = vadd.f32 %v5789, %v5922
        %v5924 = vpop.f32.mrb[0].mxu0
        %5925 = vmatprep.mubr.f32.mxu0 0.0
        %5926 = vmatmul.mubr.f32.gmra.mrb[0].mxu0 %v2754
        %v5927 = vpop.f32.mrb[0].mxu0
        %v5928 = vadd.f32 %v5790, %v5927
        %v5929 = vpop.f32.mrb[0].mxu0
        %5930 = vmatprep.mubr.f32.mxu0 0.0
        %5931 = vmatmul.mubr.f32.gmra.mrb[0].mxu0 %v2756
        %v5932 = vpop.f32.mrb[0].mxu0
        %v5933 = vadd.f32 %v5791, %v5932
        %v5934 = vpop.f32.mrb[0].mxu0
        %5935 = vmatprep.mubr.f32.mxu0 0.0
        %5936 = vmatmul.mubr.f32.gmra.mrb[0].mxu0 %v2758
        %v5937 = vpop.f32.mrb[0].mxu0
        %v5938 = vadd.f32 %v5792, %v5937
        %v5939 = vpop.f32.mrb[0].mxu0
        %5940 = vmatprep.mubr.f32.mxu0 0.0
        %5941 = vmatmul.mubr.f32.gmra.mrb[0].mxu0 %v2760
        %v5942 = vpop.f32.mrb[0].mxu0
        %v5943 = vadd.f32 %v5793, %v5942
        %v5944 = vpop.f32.mrb[0].mxu0
        %5945 = vmatprep.mubr.f32.mxu0 0.0
        %5946 = vmatmul.mubr.f32.gmra.mrb[0].mxu0 %v2762
        %v5947 = vpop.f32.mrb[0].mxu0
        %v5948 = vadd.f32 %v5794, %v5947
        %v5949 = vpop.f32.mrb[0].mxu0
        %5950 = vmatprep.mubr.f32.mxu0 0.0
        %5951 = vmatmul.mubr.f32.gmra.mrb[0].mxu0 %v2764
        %v5952 = vpop.f32.mrb[0].mxu0
        %v5953 = vadd.f32 %v5795, %v5952
        %v5954 = vpop.f32.mrb[0].mxu0
        %5955 = vmatprep.mubr.f32.mxu0 0.0
        %5956 = vmatmul.mubr.f32.gmra.mrb[0].mxu0 %v2766
        %v5957 = vpop.f32.mrb[0].mxu0
        %v5958 = vadd.f32 %v5796, %v5957
        %v5959 = vpop.f32.mrb[0].mxu0
        %5960 = vmatprep.mubr.f32.mxu0 0.0
        %5961 = vmatmul.mubr.f32.gmra.mrb[0].mxu0 %v2768
        %v5962 = vpop.f32.mrb[0].mxu0
        %v5963 = vadd.f32 %v5797, %v5962
        %v5964 = vpop.f32.mrb[0].mxu0
        %5965 = vmatprep.mubr.f32.mxu0 0.0
        %5966 = vmatmul.mubr.f32.gmra.mrb[0].mxu0 %v2770
        %v5967 = vpop.f32.mrb[0].mxu0
        %v5968 = vadd.f32 %v5798, %v5967
        %v5969 = vpop.f32.mrb[0].mxu0
        %5970 = vmatprep.mubr.f32.mxu0 0.0
        %5971 = vmatmul.mubr.f32.gmra.mrb[0].mxu0 %v2772
        %v5972 = vpop.f32.mrb[0].mxu0
        %v5973 = vadd.f32 %v5799, %v5972
        %v5974 = vpop.f32.mrb[0].mxu0
        %5975 = vmatprep.mubr.f32.mxu0 0.0
        %5976 = vmatmul.mubr.f32.gmra.mrb[0].mxu0 %v2774
        %v5977 = vpop.f32.mrb[0].mxu0
        %v5978 = vadd.f32 %v5800, %v5977
        %v5979 = vpop.f32.mrb[0].mxu0
        %5980 = vmatprep.mubr.f32.mxu0 0.0
        %5981 = vmatmul.mubr.f32.gmra.mrb[0].mxu0 %v2776
        %v5982 = vpop.f32.mrb[0].mxu0
        %v5983 = vadd.f32 %v5801, %v5982
        %v5984 = vpop.f32.mrb[0].mxu0
        %5985 = vmatprep.mubr.f32.mxu0 0.0
        %5986 = vmatmul.mubr.f32.gmra.mrb[0].mxu0 %v2778
        %v5987 = vpop.f32.mrb[0].mxu0
        %v5988 = vadd.f32 %v5802, %v5987
        %v5989 = vpop.f32.mrb[0].mxu0
        %5990 = vmatprep.mubr.f32.mxu0 0.0
        %5991 = vmatmul.mubr.f32.gmra.mrb[0].mxu0 %v2780
        %v5992 = vpop.f32.mrb[0].mxu0
        %v5993 = vadd.f32 %v5803, %v5992
        %v5994 = vpop.f32.mrb[0].mxu0
        %5995 = vmatprep.mubr.f32.mxu0 0.0
        %5996 = vmatmul.mubr.f32.gmra.mrb[0].mxu0 %v2782
        %v5997 = vpop.f32.mrb[0].mxu0
        %v5998 = vadd.f32 %v5804, %v5997
        %v5999 = vpop.f32.mrb[0].mxu0
        %6000 = vmatprep.mubr.f32.mxu0 0.0
        %6001 = vmatmul.mubr.f32.gmra.mrb[0].mxu0 %v2784
        %v6002 = vpop.f32.mrb[0].mxu0
        %v6003 = vadd.f32 %v5805, %v6002
        %v6004 = vpop.f32.mrb[0].mxu0
        %6005 = vmatprep.mubr.f32.mxu0 0.0
        %6006 = vmatmul.mubr.f32.gmra.mrb[0].mxu0 %v2786
        %v6007 = vpop.f32.mrb[0].mxu0
        %v6008 = vadd.f32 %v5806, %v6007
        %v6009 = vpop.f32.mrb[0].mxu0
        %6010 = vmatprep.mubr.f32.mxu0 0.0
        %6011 = vmatmul.mubr.f32.gmra.mrb[0].mxu0 %v2788
        %v6012 = vpop.f32.mrb[0].mxu0
        %v6013 = vadd.f32 %v5807, %v6012
        %v6014 = vpop.f32.mrb[0].mxu0
        %6015 = vmatprep.mubr.f32.mxu0 0.0
        %6016 = vmatmul.mubr.f32.gmra.mrb[0].mxu0 %v2790
        %v6017 = vpop.f32.mrb[0].mxu0
        %v6018 = vadd.f32 %v5808, %v6017
        %v6019 = vpop.f32.mrb[0].mxu0
        %6020 = vmatprep.mubr.f32.mxu0 0.0
        %6021 = vmatmul.mubr.f32.gmra.mrb[0].mxu0 %v2792
        %v6022 = vpop.f32.mrb[0].mxu0
        %v6023 = vadd.f32 %v5809, %v6022
        %v6024 = vpop.f32.mrb[0].mxu0
        %6025 = vmatprep.mubr.f32.mxu0 0.0
        %6026 = vmatmul.mubr.f32.gmra.mrb[0].mxu0 %v2794
        %v6027 = vpop.f32.mrb[0].mxu0
        %v6028 = vadd.f32 %v5810, %v6027
        %v6029 = vpop.f32.mrb[0].mxu0
        %6030 = vmatprep.mubr.f32.mxu0 0.0
        %6031 = vmatmul.mubr.f32.gmra.mrb[0].mxu0 %v2796
        %v6032 = vpop.f32.mrb[0].mxu0
        %v6033 = vadd.f32 %v5811, %v6032
        %v6034 = vpop.f32.mrb[0].mxu0
        %6035 = vmatprep.mubr.f32.mxu0 0.0
        %6036 = vmatmul.mubr.f32.gmra.mrb[0].mxu0 %v2798
        %v6037 = vpop.f32.mrb[0].mxu0
        %v6038 = vadd.f32 %v5812, %v6037
        %v6039 = vpop.f32.mrb[0].mxu0
        %6040 = vdwg.mxu0
        %v6041 = vmul.f32 %v3066, %v5461
        %v6042 = vmul.f32 %v3070, %v5465
        %v6043 = vmul.f32 %v3074, %v5471
        %v6044 = vmul.f32 %v3078, %v5475
        %v6045 = vmul.f32 %v3082, %v5481
        %v6046 = vmul.f32 %v3086, %v5485
        %v6047 = vmul.f32 %v3090, %v5491
        %v6048 = vmul.f32 %v3094, %v5495
        %v6049 = vmul.f32 %v3098, %v5501
        %v6050 = vmul.f32 %v3102, %v5505
        %v6051 = vmul.f32 %v3106, %v5511
        %v6052 = vmul.f32 %v3110, %v5515
        %v6053 = vmul.f32 %v3114, %v5521
        %v6054 = vmul.f32 %v3118, %v5525
        %v6055 = vmul.f32 %v3122, %v5531
        %v6056 = vmul.f32 %v3126, %v5535
        %v6057 = vmul.f32 %v3130, %v5541
        %v6058 = vmul.f32 %v3134, %v5545
        %v6059 = vmul.f32 %v3138, %v5551
        %v6060 = vmul.f32 %v3142, %v5555
        %v6061 = vmul.f32 %v3146, %v5561
        %v6062 = vmul.f32 %v3150, %v5565
        %v6063 = vmul.f32 %v3154, %v5571
        %v6064 = vmul.f32 %v3158, %v5575
        %v6065 = vmul.f32 %v3162, %v5581
        %v6066 = vmul.f32 %v3166, %v5585
        %v6067 = vmul.f32 %v3170, %v5591
        %v6068 = vmul.f32 %v3174, %v5595
        %v6069 = vmul.f32 %v3178, %v5601
        %v6070 = vmul.f32 %v3182, %v5605
        %v6071 = vmul.f32 %v3186, %v5611
        %v6072 = vmul.f32 %v3190, %v5615
        %6105 = vrot.lane.b32.xlu0 %v6041, 64
        %v6106 = vpop.permute.xlu0 %6105
        %6107 = vrot.lane.b32.xlu0 %v6042, 64
        %v6108 = vpop.permute.xlu0 %6107
        %6109 = vrot.lane.b32.xlu0 %v6043, 64
        %v6110 = vpop.permute.xlu0 %6109
        %6111 = vrot.lane.b32.xlu0 %v6044, 64
        %v6112 = vpop.permute.xlu0 %6111
        %6113 = vrot.lane.b32.xlu0 %v6045, 64
        %v6114 = vpop.permute.xlu0 %6113
        %6115 = vrot.lane.b32.xlu0 %v6046, 64
        %v6116 = vpop.permute.xlu0 %6115
        %6117 = vrot.lane.b32.xlu0 %v6047, 64
        %v6118 = vpop.permute.xlu0 %6117
        %6119 = vrot.lane.b32.xlu0 %v6048, 64
        %v6120 = vpop.permute.xlu0 %6119
        %6121 = vrot.lane.b32.xlu0 %v6049, 64
        %v6122 = vpop.permute.xlu0 %6121
        %6123 = vrot.lane.b32.xlu0 %v6050, 64
        %v6124 = vpop.permute.xlu0 %6123
        %6125 = vrot.lane.b32.xlu0 %v6051, 64
        %v6126 = vpop.permute.xlu0 %6125
        %6127 = vrot.lane.b32.xlu0 %v6052, 64
        %v6128 = vpop.permute.xlu0 %6127
        %6129 = vrot.lane.b32.xlu0 %v6053, 64
        %v6130 = vpop.permute.xlu0 %6129
        %6131 = vrot.lane.b32.xlu0 %v6054, 64
        %v6132 = vpop.permute.xlu0 %6131
        %6133 = vrot.lane.b32.xlu0 %v6055, 64
        %v6134 = vpop.permute.xlu0 %6133
        %6135 = vrot.lane.b32.xlu0 %v6056, 64
        %v6136 = vpop.permute.xlu0 %6135
        %6137 = vrot.lane.b32.xlu0 %v6057, 64
        %v6138 = vpop.permute.xlu0 %6137
        %6139 = vrot.lane.b32.xlu0 %v6058, 64
        %v6140 = vpop.permute.xlu0 %6139
        %6141 = vrot.lane.b32.xlu0 %v6059, 64
        %v6142 = vpop.permute.xlu0 %6141
        %6143 = vrot.lane.b32.xlu0 %v6060, 64
        %v6144 = vpop.permute.xlu0 %6143
        %6145 = vrot.lane.b32.xlu0 %v6061, 64
        %v6146 = vpop.permute.xlu0 %6145
        %6147 = vrot.lane.b32.xlu0 %v6062, 64
        %v6148 = vpop.permute.xlu0 %6147
        %6149 = vrot.lane.b32.xlu0 %v6063, 64
        %v6150 = vpop.permute.xlu0 %6149
        %6151 = vrot.lane.b32.xlu0 %v6064, 64
        %v6152 = vpop.permute.xlu0 %6151
        %6153 = vrot.lane.b32.xlu0 %v6065, 64
        %v6154 = vpop.permute.xlu0 %6153
        %6155 = vrot.lane.b32.xlu0 %v6066, 64
        %v6156 = vpop.permute.xlu0 %6155
        %6157 = vrot.lane.b32.xlu0 %v6067, 64
        %v6158 = vpop.permute.xlu0 %6157
        %6159 = vrot.lane.b32.xlu0 %v6068, 64
        %v6160 = vpop.permute.xlu0 %6159
        %6161 = vrot.lane.b32.xlu0 %v6069, 64
        %v6162 = vpop.permute.xlu0 %6161
        %6163 = vrot.lane.b32.xlu0 %v6070, 64
        %v6164 = vpop.permute.xlu0 %6163
        %6165 = vrot.lane.b32.xlu0 %v6071, 64
        %v6166 = vpop.permute.xlu0 %6165
        %6167 = vrot.lane.b32.xlu0 %v6072, 64
        %v6168 = vpop.permute.xlu0 %6167
        %v6201 = vadd.f32 %v5883, %v6106
        %v6202 = vadd.f32 %v5888, %v6108
        %v6203 = vadd.f32 %v5893, %v6110
        %v6204 = vadd.f32 %v5898, %v6112
        %v6205 = vadd.f32 %v5903, %v6114
        %v6206 = vadd.f32 %v5908, %v6116
        %v6207 = vadd.f32 %v5913, %v6118
        %v6208 = vadd.f32 %v5918, %v6120
        %v6209 = vadd.f32 %v5923, %v6122
        %v6210 = vadd.f32 %v5928, %v6124
        %v6211 = vadd.f32 %v5933, %v6126
        %v6212 = vadd.f32 %v5938, %v6128
        %v6213 = vadd.f32 %v5943, %v6130
        %v6214 = vadd.f32 %v5948, %v6132
        %v6215 = vadd.f32 %v5953, %v6134
        %v6216 = vadd.f32 %v5958, %v6136
        %v6217 = vadd.f32 %v5963, %v6138
        %v6218 = vadd.f32 %v5968, %v6140
        %v6219 = vadd.f32 %v5973, %v6142
        %v6220 = vadd.f32 %v5978, %v6144
        %v6221 = vadd.f32 %v5983, %v6146
        %v6222 = vadd.f32 %v5988, %v6148
        %v6223 = vadd.f32 %v5993, %v6150
        %v6224 = vadd.f32 %v5998, %v6152
        %v6225 = vadd.f32 %v6003, %v6154
        %v6226 = vadd.f32 %v6008, %v6156
        %v6227 = vadd.f32 %v6013, %v6158
        %v6228 = vadd.f32 %v6018, %v6160
        %v6229 = vadd.f32 %v6023, %v6162
        %v6230 = vadd.f32 %v6028, %v6164
        %v6231 = vadd.f32 %v6033, %v6166
        %v6232 = vadd.f32 %v6038, %v6168
        %v6233 = vmul.f32 %v3611, %v5463
        %v6234 = vmul.f32 %v3615, %v5467
        %v6235 = vmul.f32 %v3619, %v5473
        %v6236 = vmul.f32 %v3623, %v5477
        %v6237 = vmul.f32 %v3627, %v5483
        %v6238 = vmul.f32 %v3631, %v5487
        %v6239 = vmul.f32 %v3635, %v5493
        %v6240 = vmul.f32 %v3639, %v5497
        %v6241 = vmul.f32 %v3643, %v5503
        %v6242 = vmul.f32 %v3647, %v5507
        %v6243 = vmul.f32 %v3651, %v5513
        %v6244 = vmul.f32 %v3655, %v5517
        %v6245 = vmul.f32 %v3659, %v5523
        %v6246 = vmul.f32 %v3663, %v5527
        %v6247 = vmul.f32 %v3667, %v5533
        %v6248 = vmul.f32 %v3671, %v5537
        %v6249 = vmul.f32 %v3675, %v5543
        %v6250 = vmul.f32 %v3679, %v5547
        %v6251 = vmul.f32 %v3683, %v5553
        %v6252 = vmul.f32 %v3687, %v5557
        %v6253 = vmul.f32 %v3691, %v5563
        %v6254 = vmul.f32 %v3695, %v5567
        %v6255 = vmul.f32 %v3699, %v5573
        %v6256 = vmul.f32 %v3703, %v5577
        %v6257 = vmul.f32 %v3707, %v5583
        %v6258 = vmul.f32 %v3711, %v5587
        %v6259 = vmul.f32 %v3715, %v5593
        %v6260 = vmul.f32 %v3719, %v5597
        %v6261 = vmul.f32 %v3723, %v5603
        %v6262 = vmul.f32 %v3727, %v5607
        %v6263 = vmul.f32 %v3731, %v5613
        %v6264 = vmul.f32 %v3735, %v5617
        %v6265 = vadd.f32 %v6201, %v6233
        %v6266 = vadd.f32 %v6202, %v6234
        %v6267 = vadd.f32 %v6203, %v6235
        %v6268 = vadd.f32 %v6204, %v6236
        %v6269 = vadd.f32 %v6205, %v6237
        %v6270 = vadd.f32 %v6206, %v6238
        %v6271 = vadd.f32 %v6207, %v6239
        %v6272 = vadd.f32 %v6208, %v6240
        %v6273 = vadd.f32 %v6209, %v6241
        %v6274 = vadd.f32 %v6210, %v6242
        %v6275 = vadd.f32 %v6211, %v6243
        %v6276 = vadd.f32 %v6212, %v6244
        %v6277 = vadd.f32 %v6213, %v6245
        %v6278 = vadd.f32 %v6214, %v6246
        %v6279 = vadd.f32 %v6215, %v6247
        %v6280 = vadd.f32 %v6216, %v6248
        %v6281 = vadd.f32 %v6217, %v6249
        %v6282 = vadd.f32 %v6218, %v6250
        %v6283 = vadd.f32 %v6219, %v6251
        %v6284 = vadd.f32 %v6220, %v6252
        %v6285 = vadd.f32 %v6221, %v6253
        %v6286 = vadd.f32 %v6222, %v6254
        %v6287 = vadd.f32 %v6223, %v6255
        %v6288 = vadd.f32 %v6224, %v6256
        %v6289 = vadd.f32 %v6225, %v6257
        %v6290 = vadd.f32 %v6226, %v6258
        %v6291 = vadd.f32 %v6227, %v6259
        %v6292 = vadd.f32 %v6228, %v6260
        %v6293 = vadd.f32 %v6229, %v6261
        %v6294 = vadd.f32 %v6230, %v6262
        %v6295 = vadd.f32 %v6231, %v6263
        %v6296 = vadd.f32 %v6232, %v6264
        %v6297 = vmul.f32 %v4156, %v5463
        %v6298 = vmul.f32 %v4160, %v5467
        %v6299 = vmul.f32 %v4164, %v5473
        %v6300 = vmul.f32 %v4168, %v5477
        %v6301 = vmul.f32 %v4172, %v5483
        %v6302 = vmul.f32 %v4176, %v5487
        %v6303 = vmul.f32 %v4180, %v5493
        %v6304 = vmul.f32 %v4184, %v5497
        %v6305 = vmul.f32 %v4188, %v5503
        %v6306 = vmul.f32 %v4192, %v5507
        %v6307 = vmul.f32 %v4196, %v5513
        %v6308 = vmul.f32 %v4200, %v5517
        %v6309 = vmul.f32 %v4204, %v5523
        %v6310 = vmul.f32 %v4208, %v5527
        %v6311 = vmul.f32 %v4212, %v5533
        %v6312 = vmul.f32 %v4216, %v5537
        %v6313 = vmul.f32 %v4220, %v5543
        %v6314 = vmul.f32 %v4224, %v5547
        %v6315 = vmul.f32 %v4228, %v5553
        %v6316 = vmul.f32 %v4232, %v5557
        %v6317 = vmul.f32 %v4236, %v5563
        %v6318 = vmul.f32 %v4240, %v5567
        %v6319 = vmul.f32 %v4244, %v5573
        %v6320 = vmul.f32 %v4248, %v5577
        %v6321 = vmul.f32 %v4252, %v5583
        %v6322 = vmul.f32 %v4256, %v5587
        %v6323 = vmul.f32 %v4260, %v5593
        %v6324 = vmul.f32 %v4264, %v5597
        %v6325 = vmul.f32 %v4268, %v5603
        %v6326 = vmul.f32 %v4272, %v5607
        %v6327 = vmul.f32 %v4276, %v5613
        %v6328 = vmul.f32 %v4280, %v5617
        %6361 = vrot.lane.b32.xlu0 %v6297, 64
        %v6362 = vpop.permute.xlu0 %6361
        %6363 = vrot.lane.b32.xlu0 %v6298, 64
        %v6364 = vpop.permute.xlu0 %6363
        %6365 = vrot.lane.b32.xlu0 %v6299, 64
        %v6366 = vpop.permute.xlu0 %6365
        %6367 = vrot.lane.b32.xlu0 %v6300, 64
        %v6368 = vpop.permute.xlu0 %6367
        %6369 = vrot.lane.b32.xlu0 %v6301, 64
        %v6370 = vpop.permute.xlu0 %6369
        %6371 = vrot.lane.b32.xlu0 %v6302, 64
        %v6372 = vpop.permute.xlu0 %6371
        %6373 = vrot.lane.b32.xlu0 %v6303, 64
        %v6374 = vpop.permute.xlu0 %6373
        %6375 = vrot.lane.b32.xlu0 %v6304, 64
        %v6376 = vpop.permute.xlu0 %6375
        %6377 = vrot.lane.b32.xlu0 %v6305, 64
        %v6378 = vpop.permute.xlu0 %6377
        %6379 = vrot.lane.b32.xlu0 %v6306, 64
        %v6380 = vpop.permute.xlu0 %6379
        %6381 = vrot.lane.b32.xlu0 %v6307, 64
        %v6382 = vpop.permute.xlu0 %6381
        %6383 = vrot.lane.b32.xlu0 %v6308, 64
        %v6384 = vpop.permute.xlu0 %6383
        %6385 = vrot.lane.b32.xlu0 %v6309, 64
        %v6386 = vpop.permute.xlu0 %6385
        %6387 = vrot.lane.b32.xlu0 %v6310, 64
        %v6388 = vpop.permute.xlu0 %6387
        %6389 = vrot.lane.b32.xlu0 %v6311, 64
        %v6390 = vpop.permute.xlu0 %6389
        %6391 = vrot.lane.b32.xlu0 %v6312, 64
        %v6392 = vpop.permute.xlu0 %6391
        %6393 = vrot.lane.b32.xlu0 %v6313, 64
        %v6394 = vpop.permute.xlu0 %6393
        %6395 = vrot.lane.b32.xlu0 %v6314, 64
        %v6396 = vpop.permute.xlu0 %6395
        %6397 = vrot.lane.b32.xlu0 %v6315, 64
        %v6398 = vpop.permute.xlu0 %6397
        %6399 = vrot.lane.b32.xlu0 %v6316, 64
        %v6400 = vpop.permute.xlu0 %6399
        %6401 = vrot.lane.b32.xlu0 %v6317, 64
        %v6402 = vpop.permute.xlu0 %6401
        %6403 = vrot.lane.b32.xlu0 %v6318, 64
        %v6404 = vpop.permute.xlu0 %6403
        %6405 = vrot.lane.b32.xlu0 %v6319, 64
        %v6406 = vpop.permute.xlu0 %6405
        %6407 = vrot.lane.b32.xlu0 %v6320, 64
        %v6408 = vpop.permute.xlu0 %6407
        %6409 = vrot.lane.b32.xlu0 %v6321, 64
        %v6410 = vpop.permute.xlu0 %6409
        %6411 = vrot.lane.b32.xlu0 %v6322, 64
        %v6412 = vpop.permute.xlu0 %6411
        %6413 = vrot.lane.b32.xlu0 %v6323, 64
        %v6414 = vpop.permute.xlu0 %6413
        %6415 = vrot.lane.b32.xlu0 %v6324, 64
        %v6416 = vpop.permute.xlu0 %6415
        %6417 = vrot.lane.b32.xlu0 %v6325, 64
        %v6418 = vpop.permute.xlu0 %6417
        %6419 = vrot.lane.b32.xlu0 %v6326, 64
        %v6420 = vpop.permute.xlu0 %6419
        %6421 = vrot.lane.b32.xlu0 %v6327, 64
        %v6422 = vpop.permute.xlu0 %6421
        %6423 = vrot.lane.b32.xlu0 %v6328, 64
        %v6424 = vpop.permute.xlu0 %6423
        %v6457 = vadd.f32 %v6265, %v6362
        %v6458 = vadd.f32 %v6266, %v6364
        %v6459 = vadd.f32 %v6267, %v6366
        %v6460 = vadd.f32 %v6268, %v6368
        %v6461 = vadd.f32 %v6269, %v6370
        %v6462 = vadd.f32 %v6270, %v6372
        %v6463 = vadd.f32 %v6271, %v6374
        %v6464 = vadd.f32 %v6272, %v6376
        %v6465 = vadd.f32 %v6273, %v6378
        %v6466 = vadd.f32 %v6274, %v6380
        %v6467 = vadd.f32 %v6275, %v6382
        %v6468 = vadd.f32 %v6276, %v6384
        %v6469 = vadd.f32 %v6277, %v6386
        %v6470 = vadd.f32 %v6278, %v6388
        %v6471 = vadd.f32 %v6279, %v6390
        %v6472 = vadd.f32 %v6280, %v6392
        %v6473 = vadd.f32 %v6281, %v6394
        %v6474 = vadd.f32 %v6282, %v6396
        %v6475 = vadd.f32 %v6283, %v6398
        %v6476 = vadd.f32 %v6284, %v6400
        %v6477 = vadd.f32 %v6285, %v6402
        %v6478 = vadd.f32 %v6286, %v6404
        %v6479 = vadd.f32 %v6287, %v6406
        %v6480 = vadd.f32 %v6288, %v6408
        %v6481 = vadd.f32 %v6289, %v6410
        %v6482 = vadd.f32 %v6290, %v6412
        %v6483 = vadd.f32 %v6291, %v6414
        %v6484 = vadd.f32 %v6292, %v6416
        %v6485 = vadd.f32 %v6293, %v6418
        %v6486 = vadd.f32 %v6294, %v6420
        %v6487 = vadd.f32 %v6295, %v6422
        %v6488 = vadd.f32 %v6296, %v6424
        %v6489 = vmul.f32 %v4700, %v5654
        %v6490 = vmul.f32 %v4704, %v5657
        %v6491 = vmul.f32 %v4708, %v5662
        %v6492 = vmul.f32 %v4712, %v5665
        %v6493 = vmul.f32 %v4716, %v5670
        %v6494 = vmul.f32 %v4720, %v5673
        %v6495 = vmul.f32 %v4724, %v5678
        %v6496 = vmul.f32 %v4728, %v5681
        %v6497 = vmul.f32 %v4732, %v5686
        %v6498 = vmul.f32 %v4736, %v5689
        %v6499 = vmul.f32 %v4740, %v5694
        %v6500 = vmul.f32 %v4744, %v5697
        %v6501 = vmul.f32 %v4748, %v5702
        %v6502 = vmul.f32 %v4752, %v5705
        %v6503 = vmul.f32 %v4756, %v5710
        %v6504 = vmul.f32 %v4760, %v5713
        %v6505 = vmul.f32 %v4764, %v5718
        %v6506 = vmul.f32 %v4768, %v5721
        %v6507 = vmul.f32 %v4772, %v5726
        %v6508 = vmul.f32 %v4776, %v5729
        %v6509 = vmul.f32 %v4780, %v5734
        %v6510 = vmul.f32 %v4784, %v5737
        %v6511 = vmul.f32 %v4788, %v5742
        %v6512 = vmul.f32 %v4792, %v5745
        %v6513 = vmul.f32 %v4796, %v5750
        %v6514 = vmul.f32 %v4800, %v5753
        %v6515 = vmul.f32 %v4804, %v5758
        %v6516 = vmul.f32 %v4808, %v5761
        %v6517 = vmul.f32 %v4812, %v5766
        %v6518 = vmul.f32 %v4816, %v5769
        %v6519 = vmul.f32 %v4820, %v5774
        %v6520 = vmul.f32 %v4824, %v5777
        %v6521 = vadd.f32 %v6457, %v6489
        %v6522 = vadd.f32 %v6458, %v6490
        %v6523 = vadd.f32 %v6459, %v6491
        %v6524 = vadd.f32 %v6460, %v6492
        %v6525 = vadd.f32 %v6461, %v6493
        %v6526 = vadd.f32 %v6462, %v6494
        %v6527 = vadd.f32 %v6463, %v6495
        %v6528 = vadd.f32 %v6464, %v6496
        %v6529 = vadd.f32 %v6465, %v6497
        %v6530 = vadd.f32 %v6466, %v6498
        %v6531 = vadd.f32 %v6467, %v6499
        %v6532 = vadd.f32 %v6468, %v6500
        %v6533 = vadd.f32 %v6469, %v6501
        %v6534 = vadd.f32 %v6470, %v6502
        %v6535 = vadd.f32 %v6471, %v6503
        %v6536 = vadd.f32 %v6472, %v6504
        %v6537 = vadd.f32 %v6473, %v6505
        %v6538 = vadd.f32 %v6474, %v6506
        %v6539 = vadd.f32 %v6475, %v6507
        %v6540 = vadd.f32 %v6476, %v6508
        %v6541 = vadd.f32 %v6477, %v6509
        %v6542 = vadd.f32 %v6478, %v6510
        %v6543 = vadd.f32 %v6479, %v6511
        %v6544 = vadd.f32 %v6480, %v6512
        %v6545 = vadd.f32 %v6481, %v6513
        %v6546 = vadd.f32 %v6482, %v6514
        %v6547 = vadd.f32 %v6483, %v6515
        %v6548 = vadd.f32 %v6484, %v6516
        %v6549 = vadd.f32 %v6485, %v6517
        %v6550 = vadd.f32 %v6486, %v6518
        %v6551 = vadd.f32 %v6487, %v6519
        %v6552 = vadd.f32 %v6488, %v6520
        %v6553 = vld [vmem:[%s383] sm:$0xff]
        %v6554 = vld [vmem:[%s383 + $0x8] sm:$0xff]
        %v6555 = vld [vmem:[%s383 + $0x10] sm:$0xff]
        %v6556 = vld [vmem:[%s383 + $0x18] sm:$0xff]
        %v6557 = vld [vmem:[%s383 + $0x20] sm:$0xff]
        %v6558 = vld [vmem:[%s383 + $0x28] sm:$0xff]
        %v6559 = vld [vmem:[%s383 + $0x30] sm:$0xff]
        %v6560 = vld [vmem:[%s383 + $0x38] sm:$0xff]
        %v6561 = vld [vmem:[%s383 + $0x40] sm:$0xff]
        %v6562 = vld [vmem:[%s383 + $0x48] sm:$0xff]
        %v6563 = vld [vmem:[%s383 + $0x50] sm:$0xff]
        %v6564 = vld [vmem:[%s383 + $0x58] sm:$0xff]
        %v6565 = vld [vmem:[%s383 + $0x60] sm:$0xff]
        %v6566 = vld [vmem:[%s383 + $0x68] sm:$0xff]
        %v6567 = vld [vmem:[%s383 + $0x70] sm:$0xff]
        %v6568 = vld [vmem:[%s383 + $0x78] sm:$0xff]
        %v6569 = vld [vmem:[%s383 + $0x80] sm:$0xff]
        %v6570 = vld [vmem:[%s383 + $0x88] sm:$0xff]
        %v6571 = vld [vmem:[%s383 + $0x90] sm:$0xff]
        %v6572 = vld [vmem:[%s383 + $0x98] sm:$0xff]
        %v6573 = vld [vmem:[%s383 + $0xa0] sm:$0xff]
        %v6574 = vld [vmem:[%s383 + $0xa8] sm:$0xff]
        %v6575 = vld [vmem:[%s383 + $0xb0] sm:$0xff]
        %v6576 = vld [vmem:[%s383 + $0xb8] sm:$0xff]
        %v6577 = vld [vmem:[%s383 + $0xc0] sm:$0xff]
        %v6578 = vld [vmem:[%s383 + $0xc8] sm:$0xff]
        %v6579 = vld [vmem:[%s383 + $0xd0] sm:$0xff]
        %v6580 = vld [vmem:[%s383 + $0xd8] sm:$0xff]
        %v6581 = vld [vmem:[%s383 + $0xe0] sm:$0xff]
        %v6582 = vld [vmem:[%s383 + $0xe8] sm:$0xff]
        %v6583 = vld [vmem:[%s383 + $0xf0] sm:$0xff]
        %v6584 = vld [vmem:[%s383 + $0xf8] sm:$0xff]
        %6617 = vrot.lane.b32.xlu0 %v6553, 64
        %v6618 = vpop.permute.xlu0 %6617
        %6619 = vrot.lane.b32.xlu0 %v6554, 64
        %v6620 = vpop.permute.xlu0 %6619
        %6621 = vrot.lane.b32.xlu0 %v6555, 64
        %v6622 = vpop.permute.xlu0 %6621
        %6623 = vrot.lane.b32.xlu0 %v6556, 64
        %v6624 = vpop.permute.xlu0 %6623
        %6625 = vrot.lane.b32.xlu0 %v6557, 64
        %v6626 = vpop.permute.xlu0 %6625
        %6627 = vrot.lane.b32.xlu0 %v6558, 64
        %v6628 = vpop.permute.xlu0 %6627
        %6629 = vrot.lane.b32.xlu0 %v6559, 64
        %v6630 = vpop.permute.xlu0 %6629
        %6631 = vrot.lane.b32.xlu0 %v6560, 64
        %v6632 = vpop.permute.xlu0 %6631
        %6633 = vrot.lane.b32.xlu0 %v6561, 64
        %v6634 = vpop.permute.xlu0 %6633
        %6635 = vrot.lane.b32.xlu0 %v6562, 64
        %v6636 = vpop.permute.xlu0 %6635
        %6637 = vrot.lane.b32.xlu0 %v6563, 64
        %v6638 = vpop.permute.xlu0 %6637
        %6639 = vrot.lane.b32.xlu0 %v6564, 64
        %v6640 = vpop.permute.xlu0 %6639
        %6641 = vrot.lane.b32.xlu0 %v6565, 64
        %v6642 = vpop.permute.xlu0 %6641
        %6643 = vrot.lane.b32.xlu0 %v6566, 64
        %v6644 = vpop.permute.xlu0 %6643
        %6645 = vrot.lane.b32.xlu0 %v6567, 64
        %v6646 = vpop.permute.xlu0 %6645
        %6647 = vrot.lane.b32.xlu0 %v6568, 64
        %v6648 = vpop.permute.xlu0 %6647
        %6649 = vrot.lane.b32.xlu0 %v6569, 64
        %v6650 = vpop.permute.xlu0 %6649
        %6651 = vrot.lane.b32.xlu0 %v6570, 64
        %v6652 = vpop.permute.xlu0 %6651
        %6653 = vrot.lane.b32.xlu0 %v6571, 64
        %v6654 = vpop.permute.xlu0 %6653
        %6655 = vrot.lane.b32.xlu0 %v6572, 64
        %v6656 = vpop.permute.xlu0 %6655
        %6657 = vrot.lane.b32.xlu0 %v6573, 64
        %v6658 = vpop.permute.xlu0 %6657
        %6659 = vrot.lane.b32.xlu0 %v6574, 64
        %v6660 = vpop.permute.xlu0 %6659
        %6661 = vrot.lane.b32.xlu0 %v6575, 64
        %v6662 = vpop.permute.xlu0 %6661
        %6663 = vrot.lane.b32.xlu0 %v6576, 64
        %v6664 = vpop.permute.xlu0 %6663
        %6665 = vrot.lane.b32.xlu0 %v6577, 64
        %v6666 = vpop.permute.xlu0 %6665
        %6667 = vrot.lane.b32.xlu0 %v6578, 64
        %v6668 = vpop.permute.xlu0 %6667
        %6669 = vrot.lane.b32.xlu0 %v6579, 64
        %v6670 = vpop.permute.xlu0 %6669
        %6671 = vrot.lane.b32.xlu0 %v6580, 64
        %v6672 = vpop.permute.xlu0 %6671
        %6673 = vrot.lane.b32.xlu0 %v6581, 64
        %v6674 = vpop.permute.xlu0 %6673
        %6675 = vrot.lane.b32.xlu0 %v6582, 64
        %v6676 = vpop.permute.xlu0 %6675
        %6677 = vrot.lane.b32.xlu0 %v6583, 64
        %v6678 = vpop.permute.xlu0 %6677
        %6679 = vrot.lane.b32.xlu0 %v6584, 64
        %v6680 = vpop.permute.xlu0 %6679
        %v6713 = vsel %vm3993, %v6521, %v6618
        %v6714 = vsel %vm3993, %v6522, %v6620
        %v6715 = vsel %vm3993, %v6523, %v6622
        %v6716 = vsel %vm3993, %v6524, %v6624
        %v6717 = vsel %vm3993, %v6525, %v6626
        %v6718 = vsel %vm3993, %v6526, %v6628
        %v6719 = vsel %vm3993, %v6527, %v6630
        %v6720 = vsel %vm3993, %v6528, %v6632
        %v6721 = vsel %vm3993, %v6529, %v6634
        %v6722 = vsel %vm3993, %v6530, %v6636
        %v6723 = vsel %vm3993, %v6531, %v6638
        %v6724 = vsel %vm3993, %v6532, %v6640
        %v6725 = vsel %vm3993, %v6533, %v6642
        %v6726 = vsel %vm3993, %v6534, %v6644
        %v6727 = vsel %vm3993, %v6535, %v6646
        %v6728 = vsel %vm3993, %v6536, %v6648
        %v6729 = vsel %vm3993, %v6537, %v6650
        %v6730 = vsel %vm3993, %v6538, %v6652
        %v6731 = vsel %vm3993, %v6539, %v6654
        %v6732 = vsel %vm3993, %v6540, %v6656
        %v6733 = vsel %vm3993, %v6541, %v6658
        %v6734 = vsel %vm3993, %v6542, %v6660
        %v6735 = vsel %vm3993, %v6543, %v6662
        %v6736 = vsel %vm3993, %v6544, %v6664
        %v6737 = vsel %vm3993, %v6545, %v6666
        %v6738 = vsel %vm3993, %v6546, %v6668
        %v6739 = vsel %vm3993, %v6547, %v6670
        %v6740 = vsel %vm3993, %v6548, %v6672
        %v6741 = vsel %vm3993, %v6549, %v6674
        %v6742 = vsel %vm3993, %v6550, %v6676
        %v6743 = vsel %vm3993, %v6551, %v6678
        %v6744 = vsel %vm3993, %v6552, %v6680
        %6745 = vst [vmem:[%s371] sm:$0xff] %v6713
        %6746 = vst [vmem:[%s371 + $0x8] sm:$0xff] %v6714
        %6747 = vst [vmem:[%s371 + $0x10] sm:$0xff] %v6715
        %6748 = vst [vmem:[%s371 + $0x18] sm:$0xff] %v6716
        %6749 = vst [vmem:[%s371 + $0x20] sm:$0xff] %v6717
        %6750 = vst [vmem:[%s371 + $0x28] sm:$0xff] %v6718
        %6751 = vst [vmem:[%s371 + $0x30] sm:$0xff] %v6719
        %6752 = vst [vmem:[%s371 + $0x38] sm:$0xff] %v6720
        %6753 = vst [vmem:[%s371 + $0x40] sm:$0xff] %v6721
        %6754 = vst [vmem:[%s371 + $0x48] sm:$0xff] %v6722
        %6755 = vst [vmem:[%s371 + $0x50] sm:$0xff] %v6723
        %6756 = vst [vmem:[%s371 + $0x58] sm:$0xff] %v6724
        %6757 = vst [vmem:[%s371 + $0x60] sm:$0xff] %v6725
        %6758 = vst [vmem:[%s371 + $0x68] sm:$0xff] %v6726
        %6759 = vst [vmem:[%s371 + $0x70] sm:$0xff] %v6727
        %6760 = vst [vmem:[%s371 + $0x78] sm:$0xff] %v6728
        %6761 = vst [vmem:[%s371 + $0x80] sm:$0xff] %v6729
        %6762 = vst [vmem:[%s371 + $0x88] sm:$0xff] %v6730
        %6763 = vst [vmem:[%s371 + $0x90] sm:$0xff] %v6731
        %6764 = vst [vmem:[%s371 + $0x98] sm:$0xff] %v6732
        %6765 = vst [vmem:[%s371 + $0xa0] sm:$0xff] %v6733
        %6766 = vst [vmem:[%s371 + $0xa8] sm:$0xff] %v6734
        %6767 = vst [vmem:[%s371 + $0xb0] sm:$0xff] %v6735
        %6768 = vst [vmem:[%s371 + $0xb8] sm:$0xff] %v6736
        %6769 = vst [vmem:[%s371 + $0xc0] sm:$0xff] %v6737
        %6770 = vst [vmem:[%s371 + $0xc8] sm:$0xff] %v6738
        %6771 = vst [vmem:[%s371 + $0xd0] sm:$0xff] %v6739
        %6772 = vst [vmem:[%s371 + $0xd8] sm:$0xff] %v6740
        %6773 = vst [vmem:[%s371 + $0xe0] sm:$0xff] %v6741
        %6774 = vst [vmem:[%s371 + $0xe8] sm:$0xff] %v6742
        %6775 = vst [vmem:[%s371 + $0xf0] sm:$0xff] %v6743
        %6776 = vst [vmem:[%s371 + $0xf8] sm:$0xff] %v6744
        %s6777 = sand.u32 %s252, 1
        %s6778 = scalar_lea.sflag [#allocation3], %s6777
        %s6779 = sand.u32 %s252, 1
        %s6780 = smul.addr %s6779, 256
        %s6781 = scalar_lea.vmem [#allocation2], %s6780
        // Predicated region
        $region61: #{tpu_custom_call.1} parent=59 // pred_check
          %p6782 = pneg %p262
        $region62: #{tpu_custom_call.1} parent=59 // pred_check_branch
          %6784 = sbr.rel (%p6782) target = $region64
        $region63: #{tpu_custom_call.1} parent=59 // pred_region
          %s6785 = smul.u32 32, %s24
          %s6787 = ssub.s32 4096, 4096
          %6788 = vsyncadd %s6778, %s6787
          %s6789 = smul.addr %s6785, 128
          %s6790 = scalar_lea.hbm %s10, %s6789
          %s6791 = sshll.u32 %s6781, 4
          %s6792 = int_to_ptr.vmem [resolvable:$true] %s6791
          %6797 = dma.vmem_to_hbm [thread:$0]  %s6792, 4096, %s6790, %s6778, 128, 128, 8
        $region64: #{tpu_custom_call.1} parent=59 // pred_fallthru
          _
      $region60: #{tpu_custom_call.1} parent=5 // pred_fallthru
        _
      %p6798 = scmp.le.s32.totalorder 2, %s19
      // Predicated region
      $region65: #{tpu_custom_call.1} parent=5 // pred_check
        %p6799 = pneg %p6798
      $region66: #{tpu_custom_call.1} parent=5 // pred_check_branch
        %6801 = sbr.rel (%p6799) target = $region68
      $region67: #{tpu_custom_call.1} parent=5 // pred_region
        %s6802 = ssub.s32 %s19, 2
        // Predicated region
        $region69: #{tpu_custom_call.1} parent=67 // pred_check
          %p6803 = pneg %p268
        $region70: #{tpu_custom_call.1} parent=67 // pred_check_branch
          %6805 = sbr.rel (%p6803) target = $region72
        $region71: #{tpu_custom_call.1} parent=67 // pred_region
          %s6806 = sand.u32 %s253, 1
          %s6807 = scalar_lea.sflag [#allocation3], %s6806
          %s6808 = sand.u32 %s253, 1
          %s6809 = smul.addr %s6808, 256
          %s6810 = scalar_lea.vmem [#allocation2], %s6809
          %6811 = dma.done %s6807, 4096
        $region72: #{tpu_custom_call.1} parent=67 // pred_fallthru
          _
      $region68: #{tpu_custom_call.1} parent=5 // pred_fallthru
        _
    $region6: #{tpu_custom_call.1} parent=1 // loop_footer
      %s23 = sadd.s32 1, %s19
    $region7: #{tpu_custom_call.1} parent=1 // loop_footer_branch
      %18 = sbr.rel target = $region3
    $region8: #{tpu_custom_call.1} parent=1 // loop_exit
      _
    %6812 = vsyncpa [#allocation3], 1
    %s6813 = scalar_lea.sflag [#allocation3], 1
    %6814 = vsyncpa %s6813, 1

</llo_original>
